<compile_context>
chip_gen: v7x
topology: tpu7x:2x2x1
jax: 0.10.0
libtpu: 0.0.40
codegen_flags: <defaults>
</compile_context>

<pallas_src>
import jax
import jax.numpy as jnp
import numpy as np
from jax.experimental import pallas as pl
from jax.experimental.pallas import tpu as pltpu


def _fuse_weights(weights_hwio, scales):
    """Zero-pad every scale's kernel to (max_k, max_k) and fuse along Cout.

    Returns (max_k*max_k, S*Cout, Cin): per-tap weight matrices, already transposed so the
    per-tap matmul is (S*Cout, Cin) @ (Cin, L_TILE) with a lane-dense result.
    """
    max_k = max(scales)
    cin, cout = weights_hwio[0].shape[2], weights_hwio[0].shape[3]
    padded = []
    for w, k in zip(weights_hwio, scales):
        off = (max_k - k) // 2
        wp = jnp.zeros((max_k, max_k, cin, cout), jnp.float32)
        wp = wp.at[off:off + k, off:off + k, :, :].set(w.astype(jnp.float32))
        padded.append(wp)
    wf = jnp.concatenate(padded, axis=-1)          # (K, K, Cin, S*Cout)
    wf = jnp.transpose(wf, (0, 1, 3, 2))           # (K, K, S*Cout, Cin)
    return wf.reshape(max_k * max_k, len(scales) * cout, cin)


def _make_kernel(Wp, l_tile, cin, cout, num_scales, max_k):
    def kernel(xb_ref, xh_ref, w_ref, sw_ref, o_ref):
        # Stitch body tile + halo tile into one (Cin, 2*l_tile) window.
        # Concat offset is a multiple of 128 lanes -> cheap vreg placement, no reshuffle.
        xw = jnp.concatenate([xb_ref[0], xh_ref[0]], axis=-1)

        # Direct conv over the fused 7x7 stencil; all scales accumulated at once.
        # Accumulator (S*Cout, L_TILE) f32 = 6 vregs -> stays in registers, no spills.
        acc = jnp.zeros((num_scales * cout, l_tile), jnp.float32)
        for kh in range(max_k):
            row_acc = jnp.zeros((num_scales * cout, l_tile), jnp.float32)
            for kw in range(max_k):
                d = kh * Wp + kw                       # static flat shift of this tap
                xs = xw[:, d:d + l_tile]               # (Cin, L_TILE), lane-dense
                w_tap = w_ref[kh * max_k + kw]         # (S*Cout, Cin)
                row_acc = row_acc + jnp.dot(
                    w_tap, xs, preferred_element_type=jnp.float32)
            acc = acc + row_acc                        # shorter serial add chain (7+7)

        # Epilogue: per-scale ReLU, learned scalar weight (read from SMEM), sum of scales.
        out = sw_ref[0] * jnp.maximum(acc[0:cout, :], 0.0)
        for s in range(1, num_scales):
            out = out + sw_ref[s] * jnp.maximum(acc[s * cout:(s + 1) * cout, :], 0.0)

        # Lane-dense, unmasked store: (1, Cout, L_TILE) with 128-multiple minor dim.
        o_ref[...] = out[None].astype(o_ref.dtype)

    return kernel


def weighted_multiscale_mla(x_nchw, weights_hwio, scale_weights, scales=(3, 5, 7),
                            l_tile=256):
    """Forward pass of WeightedMultiScaleMLA.

    x_nchw       : (N, Cin, H, W) float32   (PyTorch NCHW convention)
    weights_hwio : list of (k, k, Cin, Cout) float32, one per scale
    scale_weights: (num_scales,) float32
    returns      : (N, Cout, H, W) float32
    """
    N, cin, H, W = x_nchw.shape
    cout = weights_hwio[0].shape[-1]
    S = len(scales)
    max_k = max(scales)
    max_pad = max_k // 2
    Hp, Wp = H + 2 * max_pad, W + 2 * max_pad

    L_out = H * Wp                                   # flat output length (ghost cols cropped)
    d_max = (max_k - 1) * Wp + (max_k - 1)           # largest flat tap shift (the halo)
    l_tile = pl.cdiv(l_tile, 128) * 128
    L_TILE = max(l_tile, pl.cdiv(d_max, 128) * 128)  # tile must cover the halo, lane-aligned
    assert d_max <= L_TILE
    T = pl.cdiv(L_out, L_TILE)                       # spatial grid axis
    L_pad = T * L_TILE
    P2 = (T + 1) * L_TILE                            # +1 tile so the halo BlockSpec never OOBs

    # ---- JAX glue: channels-first, spatially zero-padded, flattened + zero tail ----
    x_pad = jnp.pad(x_nchw.astype(jnp.float32),
                    ((0, 0), (0, 0), (max_pad, max_pad), (max_pad, max_pad)))
    x_flat = x_pad.reshape(N, cin, Hp * Wp)
    x_flat = jnp.pad(x_flat, ((0, 0), (0, 0), (0, P2 - Hp * Wp)))

    w_fused = _fuse_weights(weights_hwio, scales)            # (max_k^2, S*Cout, Cin)
    sw = jnp.asarray(scale_weights, jnp.float32).reshape(S)  # scalars -> SMEM

    kernel = _make_kernel(Wp, L_TILE, cin, cout, S, max_k)

    in_specs = [
        pl.BlockSpec((1, cin, L_TILE), lambda n, t: (n, 0, t)),      # body tile
        pl.BlockSpec((1, cin, L_TILE), lambda n, t: (n, 0, t + 1)),  # halo tile (next block)
        pl.BlockSpec((max_k * max_k, S * cout, cin), lambda n, t: (0, 0, 0)),  # fused weights
        pl.BlockSpec(memory_space=pltpu.MemorySpace.SMEM),           # scale weights
    ]
    out_spec = pl.BlockSpec((1, cout, L_TILE), lambda n, t: (n, 0, t))

    flops = 2 * N * L_pad * (max_k * max_k) * cin * (S * cout)
    bytes_accessed = 4 * (2 * x_flat.size + w_fused.size + sw.size + N * cout * L_pad)

    out_flat = pl.pallas_call(
        kernel,
        out_shape=jax.ShapeDtypeStruct((N, cout, L_pad), jnp.float32),
        grid=(N, T),
        in_specs=in_specs,
        out_specs=out_spec,
        compiler_params=pltpu.CompilerParams(
            dimension_semantics=("parallel", "parallel"),
            vmem_limit_bytes=32 * 1024 * 1024),
        cost_estimate=pl.CostEstimate(flops=int(flops), transcendentals=0,
                                      bytes_accessed=int(bytes_accessed)),
    )(x_flat, x_flat, w_fused, sw)

    # ---- JAX glue: crop tile/width padding; already NCHW ----
    out = out_flat[:, :, :L_out].reshape(N, cout, H, Wp)[:, :, :, :W]
    return out


def _reference(x_nchw, weights_hwio, scale_weights, scales=(3, 5, 7)):
    """Plain-JAX reference implementing the PyTorch forward semantics."""
    outs = []
    for w in weights_hwio:
        y = jax.lax.conv_general_dilated(
            x_nchw.astype(jnp.float32),
            w,
            window_strides=(1, 1),
            padding="SAME",
            dimension_numbers=("NCHW", "HWIO", "NCHW"),
        )
        outs.append(jnp.maximum(y, 0.0))
    total = 0.0
    for wgt, y in zip(scale_weights, outs):
        total = total + wgt * y
    return total


if __name__ == "__main__":
    # Small, module-consistent shapes.
    N, Cin, Cout, H, W = 2, 4, 8, 16, 16
    scales = (3, 5, 7)

    key = jax.random.PRNGKey(0)
    kx, *kw = jax.random.split(key, 1 + len(scales))

    x = jax.random.normal(kx, (N, Cin, H, W), dtype=jnp.float32)

    # Deterministic synthetic conv weights (HWIO), one per scale (kernel sizes 3/5/7).
    weights = [
        0.1 * jax.random.normal(k, (s, s, Cin, Cout), dtype=jnp.float32)
        for k, s in zip(kw, scales)
    ]
    # nn.Parameter(torch.ones(3)) at init; distinct deterministic values used here so the
    # weighted sum is non-trivial to verify.
    scale_weights = jnp.array([1.0, 0.5, 0.25], dtype=jnp.float32)

    out = weighted_multiscale_mla(x, weights, scale_weights, scales)
    out = jax.block_until_ready(out)

    ref = jax.block_until_ready(_reference(x, weights, scale_weights, scales))
    assert out.shape == (N, Cout, H, W), out.shape
    np.testing.assert_allclose(np.asarray(out), np.asarray(ref), rtol=1e-4, atol=1e-4)

    print("KERNEL_OK")
</pallas_src>

<mosaic_0001>
module attributes {stable_mosaic.version = 11 : i64} {
  func.func @kernel(%arg0: i32, %arg1: i32, %arg2: memref<1x4x256xf32, #tpu.memory_space<vmem>>, %arg3: memref<1x4x256xf32, #tpu.memory_space<vmem>>, %arg4: memref<49x24x4xf32, #tpu.memory_space<vmem>>, %arg5: memref<3xf32, #tpu.memory_space<smem>>, %arg6: memref<1x8x256xf32, #tpu.memory_space<vmem>>) attributes {dimension_semantics = [#tpu.dimension_semantics<parallel>, #tpu.dimension_semantics<parallel>], iteration_bounds = array<i64: 2, 2>, scalar_prefetch = 0 : i64, scratch_operands = 0 : i64, tpu.core_type = #tpu.core_type<tc>, window_params = [{transform_indices = @transform_0, window_bounds = array<i64: 1, 4, 256>}, {transform_indices = @transform_1, window_bounds = array<i64: 1, 4, 256>}, {pipeline_mode = #tpu.pipeline_mode<synchronous>, transform_indices = @transform_2, window_bounds = array<i64: 49, 24, 4>}, {transform_indices = @transform_3, window_bounds = array<i64: 3>}, {transform_indices = @transform_4, window_bounds = array<i64: 1, 8, 256>}]} {
    %c0 = arith.constant 0 : index
    %c0_0 = arith.constant 0 : index
    %c0_1 = arith.constant 0 : index
    %0 = vector.load %arg2[%c0, %c0_0, %c0_1] : memref<1x4x256xf32, #tpu.memory_space<vmem>>, vector<1x4x256xf32>
    %1 = vector.shape_cast %0 : vector<1x4x256xf32> to vector<4x256xf32>
    %c0_2 = arith.constant 0 : index
    %c0_3 = arith.constant 0 : index
    %c0_4 = arith.constant 0 : index
    %2 = vector.load %arg3[%c0_2, %c0_3, %c0_4] : memref<1x4x256xf32, #tpu.memory_space<vmem>>, vector<1x4x256xf32>
    %3 = vector.shape_cast %2 : vector<1x4x256xf32> to vector<4x256xf32>
    %4 = tpu.concatenate %1, %3 in 1 : vector<4x256xf32>, vector<4x256xf32> -> vector<4x512xf32>
    %cst = arith.constant 0.000000e+00 : f32
    %5 = vector.broadcast %cst : f32 to vector<24x256xf32>
    %cst_5 = arith.constant 0.000000e+00 : f32
    %6 = vector.broadcast %cst_5 : f32 to vector<24x256xf32>
    %7 = vector.extract_strided_slice %4 {offsets = [0, 0], sizes = [4, 256], strides = [1, 1]} : vector<4x512xf32> to vector<4x256xf32>
    %c0_6 = arith.constant 0 : index
    %c0_7 = arith.constant 0 : index
    %c0_8 = arith.constant 0 : index
    %8 = vector.load %arg4[%c0_6, %c0_7, %c0_8] : memref<49x24x4xf32, #tpu.memory_space<vmem>>, vector<1x24x4xf32>
    %9 = vector.shape_cast %8 : vector<1x24x4xf32> to vector<24x4xf32>
    %cst_9 = arith.constant dense<0.000000e+00> : vector<24x256xf32>
    %10 = tpu.matmul %9, %7, %cst_9 {dimension_numbers = #tpu.dot_dimension_numbers<[1], [0], [0], [1], [0, 0, 1, 1], [], []>} : vector<24x4xf32>, vector<4x256xf32>, vector<24x256xf32> -> vector<24x256xf32>
    %11 = arith.addf %6, %10 : vector<24x256xf32>
    %12 = vector.extract_strided_slice %4 {offsets = [0, 1], sizes = [4, 256], strides = [1, 1]} : vector<4x512xf32> to vector<4x256xf32>
    %c1 = arith.constant 1 : index
    %c0_10 = arith.constant 0 : index
    %c0_11 = arith.constant 0 : index
    %13 = vector.load %arg4[%c1, %c0_10, %c0_11] : memref<49x24x4xf32, #tpu.memory_space<vmem>>, vector<1x24x4xf32>
    %14 = vector.shape_cast %13 : vector<1x24x4xf32> to vector<24x4xf32>
    %cst_12 = arith.constant dense<0.000000e+00> : vector<24x256xf32>
    %15 = tpu.matmul %14, %12, %cst_12 {dimension_numbers = #tpu.dot_dimension_numbers<[1], [0], [0], [1], [0, 0, 1, 1], [], []>} : vector<24x4xf32>, vector<4x256xf32>, vector<24x256xf32> -> vector<24x256xf32>
    %16 = arith.addf %11, %15 : vector<24x256xf32>
    %17 = vector.extract_strided_slice %4 {offsets = [0, 2], sizes = [4, 256], strides = [1, 1]} : vector<4x512xf32> to vector<4x256xf32>
    %c2 = arith.constant 2 : index
    %c0_13 = arith.constant 0 : index
    %c0_14 = arith.constant 0 : index
    %18 = vector.load %arg4[%c2, %c0_13, %c0_14] : memref<49x24x4xf32, #tpu.memory_space<vmem>>, vector<1x24x4xf32>
    %19 = vector.shape_cast %18 : vector<1x24x4xf32> to vector<24x4xf32>
    %cst_15 = arith.constant dense<0.000000e+00> : vector<24x256xf32>
    %20 = tpu.matmul %19, %17, %cst_15 {dimension_numbers = #tpu.dot_dimension_numbers<[1], [0], [0], [1], [0, 0, 1, 1], [], []>} : vector<24x4xf32>, vector<4x256xf32>, vector<24x256xf32> -> vector<24x256xf32>
    %21 = arith.addf %16, %20 : vector<24x256xf32>
    %22 = vector.extract_strided_slice %4 {offsets = [0, 3], sizes = [4, 256], strides = [1, 1]} : vector<4x512xf32> to vector<4x256xf32>
    %c3 = arith.constant 3 : index
    %c0_16 = arith.constant 0 : index
    %c0_17 = arith.constant 0 : index
    %23 = vector.load %arg4[%c3, %c0_16, %c0_17] : memref<49x24x4xf32, #tpu.memory_space<vmem>>, vector<1x24x4xf32>
    %24 = vector.shape_cast %23 : vector<1x24x4xf32> to vector<24x4xf32>
    %cst_18 = arith.constant dense<0.000000e+00> : vector<24x256xf32>
    %25 = tpu.matmul %24, %22, %cst_18 {dimension_numbers = #tpu.dot_dimension_numbers<[1], [0], [0], [1], [0, 0, 1, 1], [], []>} : vector<24x4xf32>, vector<4x256xf32>, vector<24x256xf32> -> vector<24x256xf32>
    %26 = arith.addf %21, %25 : vector<24x256xf32>
    %27 = vector.extract_strided_slice %4 {offsets = [0, 4], sizes = [4, 256], strides = [1, 1]} : vector<4x512xf32> to vector<4x256xf32>
    %c4 = arith.constant 4 : index
    %c0_19 = arith.constant 0 : index
    %c0_20 = arith.constant 0 : index
    %28 = vector.load %arg4[%c4, %c0_19, %c0_20] : memref<49x24x4xf32, #tpu.memory_space<vmem>>, vector<1x24x4xf32>
    %29 = vector.shape_cast %28 : vector<1x24x4xf32> to vector<24x4xf32>
    %cst_21 = arith.constant dense<0.000000e+00> : vector<24x256xf32>
    %30 = tpu.matmul %29, %27, %cst_21 {dimension_numbers = #tpu.dot_dimension_numbers<[1], [0], [0], [1], [0, 0, 1, 1], [], []>} : vector<24x4xf32>, vector<4x256xf32>, vector<24x256xf32> -> vector<24x256xf32>
    %31 = arith.addf %26, %30 : vector<24x256xf32>
    %32 = vector.extract_strided_slice %4 {offsets = [0, 5], sizes = [4, 256], strides = [1, 1]} : vector<4x512xf32> to vector<4x256xf32>
    %c5 = arith.constant 5 : index
    %c0_22 = arith.constant 0 : index
    %c0_23 = arith.constant 0 : index
    %33 = vector.load %arg4[%c5, %c0_22, %c0_23] : memref<49x24x4xf32, #tpu.memory_space<vmem>>, vector<1x24x4xf32>
    %34 = vector.shape_cast %33 : vector<1x24x4xf32> to vector<24x4xf32>
    %cst_24 = arith.constant dense<0.000000e+00> : vector<24x256xf32>
    %35 = tpu.matmul %34, %32, %cst_24 {dimension_numbers = #tpu.dot_dimension_numbers<[1], [0], [0], [1], [0, 0, 1, 1], [], []>} : vector<24x4xf32>, vector<4x256xf32>, vector<24x256xf32> -> vector<24x256xf32>
    %36 = arith.addf %31, %35 : vector<24x256xf32>
    %37 = vector.extract_strided_slice %4 {offsets = [0, 6], sizes = [4, 256], strides = [1, 1]} : vector<4x512xf32> to vector<4x256xf32>
    %c6 = arith.constant 6 : index
    %c0_25 = arith.constant 0 : index
    %c0_26 = arith.constant 0 : index
    %38 = vector.load %arg4[%c6, %c0_25, %c0_26] : memref<49x24x4xf32, #tpu.memory_space<vmem>>, vector<1x24x4xf32>
    %39 = vector.shape_cast %38 : vector<1x24x4xf32> to vector<24x4xf32>
    %cst_27 = arith.constant dense<0.000000e+00> : vector<24x256xf32>
    %40 = tpu.matmul %39, %37, %cst_27 {dimension_numbers = #tpu.dot_dimension_numbers<[1], [0], [0], [1], [0, 0, 1, 1], [], []>} : vector<24x4xf32>, vector<4x256xf32>, vector<24x256xf32> -> vector<24x256xf32>
    %41 = arith.addf %36, %40 : vector<24x256xf32>
    %42 = arith.addf %5, %41 : vector<24x256xf32>
    %cst_28 = arith.constant 0.000000e+00 : f32
    %43 = vector.broadcast %cst_28 : f32 to vector<24x256xf32>
    %44 = vector.extract_strided_slice %4 {offsets = [0, 22], sizes = [4, 256], strides = [1, 1]} : vector<4x512xf32> to vector<4x256xf32>
    %c7 = arith.constant 7 : index
    %c0_29 = arith.constant 0 : index
    %c0_30 = arith.constant 0 : index
    %45 = vector.load %arg4[%c7, %c0_29, %c0_30] : memref<49x24x4xf32, #tpu.memory_space<vmem>>, vector<1x24x4xf32>
    %46 = vector.shape_cast %45 : vector<1x24x4xf32> to vector<24x4xf32>
    %cst_31 = arith.constant dense<0.000000e+00> : vector<24x256xf32>
    %47 = tpu.matmul %46, %44, %cst_31 {dimension_numbers = #tpu.dot_dimension_numbers<[1], [0], [0], [1], [0, 0, 1, 1], [], []>} : vector<24x4xf32>, vector<4x256xf32>, vector<24x256xf32> -> vector<24x256xf32>
    %48 = arith.addf %43, %47 : vector<24x256xf32>
    %49 = vector.extract_strided_slice %4 {offsets = [0, 23], sizes = [4, 256], strides = [1, 1]} : vector<4x512xf32> to vector<4x256xf32>
    %c8 = arith.constant 8 : index
    %c0_32 = arith.constant 0 : index
    %c0_33 = arith.constant 0 : index
    %50 = vector.load %arg4[%c8, %c0_32, %c0_33] : memref<49x24x4xf32, #tpu.memory_space<vmem>>, vector<1x24x4xf32>
    %51 = vector.shape_cast %50 : vector<1x24x4xf32> to vector<24x4xf32>
    %cst_34 = arith.constant dense<0.000000e+00> : vector<24x256xf32>
    %52 = tpu.matmul %51, %49, %cst_34 {dimension_numbers = #tpu.dot_dimension_numbers<[1], [0], [0], [1], [0, 0, 1, 1], [], []>} : vector<24x4xf32>, vector<4x256xf32>, vector<24x256xf32> -> vector<24x256xf32>
    %53 = arith.addf %48, %52 : vector<24x256xf32>
    %54 = vector.extract_strided_slice %4 {offsets = [0, 24], sizes = [4, 256], strides = [1, 1]} : vector<4x512xf32> to vector<4x256xf32>
    %c9 = arith.constant 9 : index
    %c0_35 = arith.constant 0 : index
    %c0_36 = arith.constant 0 : index
    %55 = vector.load %arg4[%c9, %c0_35, %c0_36] : memref<49x24x4xf32, #tpu.memory_space<vmem>>, vector<1x24x4xf32>
    %56 = vector.shape_cast %55 : vector<1x24x4xf32> to vector<24x4xf32>
    %cst_37 = arith.constant dense<0.000000e+00> : vector<24x256xf32>
    %57 = tpu.matmul %56, %54, %cst_37 {dimension_numbers = #tpu.dot_dimension_numbers<[1], [0], [0], [1], [0, 0, 1, 1], [], []>} : vector<24x4xf32>, vector<4x256xf32>, vector<24x256xf32> -> vector<24x256xf32>
    %58 = arith.addf %53, %57 : vector<24x256xf32>
    %59 = vector.extract_strided_slice %4 {offsets = [0, 25], sizes = [4, 256], strides = [1, 1]} : vector<4x512xf32> to vector<4x256xf32>
    %c10 = arith.constant 10 : index
    %c0_38 = arith.constant 0 : index
    %c0_39 = arith.constant 0 : index
    %60 = vector.load %arg4[%c10, %c0_38, %c0_39] : memref<49x24x4xf32, #tpu.memory_space<vmem>>, vector<1x24x4xf32>
    %61 = vector.shape_cast %60 : vector<1x24x4xf32> to vector<24x4xf32>
    %cst_40 = arith.constant dense<0.000000e+00> : vector<24x256xf32>
    %62 = tpu.matmul %61, %59, %cst_40 {dimension_numbers = #tpu.dot_dimension_numbers<[1], [0], [0], [1], [0, 0, 1, 1], [], []>} : vector<24x4xf32>, vector<4x256xf32>, vector<24x256xf32> -> vector<24x256xf32>
    %63 = arith.addf %58, %62 : vector<24x256xf32>
    %64 = vector.extract_strided_slice %4 {offsets = [0, 26], sizes = [4, 256], strides = [1, 1]} : vector<4x512xf32> to vector<4x256xf32>
    %c11 = arith.constant 11 : index
    %c0_41 = arith.constant 0 : index
    %c0_42 = arith.constant 0 : index
    %65 = vector.load %arg4[%c11, %c0_41, %c0_42] : memref<49x24x4xf32, #tpu.memory_space<vmem>>, vector<1x24x4xf32>
    %66 = vector.shape_cast %65 : vector<1x24x4xf32> to vector<24x4xf32>
    %cst_43 = arith.constant dense<0.000000e+00> : vector<24x256xf32>
    %67 = tpu.matmul %66, %64, %cst_43 {dimension_numbers = #tpu.dot_dimension_numbers<[1], [0], [0], [1], [0, 0, 1, 1], [], []>} : vector<24x4xf32>, vector<4x256xf32>, vector<24x256xf32> -> vector<24x256xf32>
    %68 = arith.addf %63, %67 : vector<24x256xf32>
    %69 = vector.extract_strided_slice %4 {offsets = [0, 27], sizes = [4, 256], strides = [1, 1]} : vector<4x512xf32> to vector<4x256xf32>
    %c12 = arith.constant 12 : index
    %c0_44 = arith.constant 0 : index
    %c0_45 = arith.constant 0 : index
    %70 = vector.load %arg4[%c12, %c0_44, %c0_45] : memref<49x24x4xf32, #tpu.memory_space<vmem>>, vector<1x24x4xf32>
    %71 = vector.shape_cast %70 : vector<1x24x4xf32> to vector<24x4xf32>
    %cst_46 = arith.constant dense<0.000000e+00> : vector<24x256xf32>
    %72 = tpu.matmul %71, %69, %cst_46 {dimension_numbers = #tpu.dot_dimension_numbers<[1], [0], [0], [1], [0, 0, 1, 1], [], []>} : vector<24x4xf32>, vector<4x256xf32>, vector<24x256xf32> -> vector<24x256xf32>
    %73 = arith.addf %68, %72 : vector<24x256xf32>
    %74 = vector.extract_strided_slice %4 {offsets = [0, 28], sizes = [4, 256], strides = [1, 1]} : vector<4x512xf32> to vector<4x256xf32>
    %c13 = arith.constant 13 : index
    %c0_47 = arith.constant 0 : index
    %c0_48 = arith.constant 0 : index
    %75 = vector.load %arg4[%c13, %c0_47, %c0_48] : memref<49x24x4xf32, #tpu.memory_space<vmem>>, vector<1x24x4xf32>
    %76 = vector.shape_cast %75 : vector<1x24x4xf32> to vector<24x4xf32>
    %cst_49 = arith.constant dense<0.000000e+00> : vector<24x256xf32>
    %77 = tpu.matmul %76, %74, %cst_49 {dimension_numbers = #tpu.dot_dimension_numbers<[1], [0], [0], [1], [0, 0, 1, 1], [], []>} : vector<24x4xf32>, vector<4x256xf32>, vector<24x256xf32> -> vector<24x256xf32>
    %78 = arith.addf %73, %77 : vector<24x256xf32>
    %79 = arith.addf %42, %78 : vector<24x256xf32>
    %cst_50 = arith.constant 0.000000e+00 : f32
    %80 = vector.broadcast %cst_50 : f32 to vector<24x256xf32>
    %81 = vector.extract_strided_slice %4 {offsets = [0, 44], sizes = [4, 256], strides = [1, 1]} : vector<4x512xf32> to vector<4x256xf32>
    %c14 = arith.constant 14 : index
    %c0_51 = arith.constant 0 : index
    %c0_52 = arith.constant 0 : index
    %82 = vector.load %arg4[%c14, %c0_51, %c0_52] : memref<49x24x4xf32, #tpu.memory_space<vmem>>, vector<1x24x4xf32>
    %83 = vector.shape_cast %82 : vector<1x24x4xf32> to vector<24x4xf32>
    %cst_53 = arith.constant dense<0.000000e+00> : vector<24x256xf32>
    %84 = tpu.matmul %83, %81, %cst_53 {dimension_numbers = #tpu.dot_dimension_numbers<[1], [0], [0], [1], [0, 0, 1, 1], [], []>} : vector<24x4xf32>, vector<4x256xf32>, vector<24x256xf32> -> vector<24x256xf32>
    %85 = arith.addf %80, %84 : vector<24x256xf32>
    %86 = vector.extract_strided_slice %4 {offsets = [0, 45], sizes = [4, 256], strides = [1, 1]} : vector<4x512xf32> to vector<4x256xf32>
    %c15 = arith.constant 15 : index
    %c0_54 = arith.constant 0 : index
    %c0_55 = arith.constant 0 : index
    %87 = vector.load %arg4[%c15, %c0_54, %c0_55] : memref<49x24x4xf32, #tpu.memory_space<vmem>>, vector<1x24x4xf32>
    %88 = vector.shape_cast %87 : vector<1x24x4xf32> to vector<24x4xf32>
    %cst_56 = arith.constant dense<0.000000e+00> : vector<24x256xf32>
    %89 = tpu.matmul %88, %86, %cst_56 {dimension_numbers = #tpu.dot_dimension_numbers<[1], [0], [0], [1], [0, 0, 1, 1], [], []>} : vector<24x4xf32>, vector<4x256xf32>, vector<24x256xf32> -> vector<24x256xf32>
    %90 = arith.addf %85, %89 : vector<24x256xf32>
    %91 = vector.extract_strided_slice %4 {offsets = [0, 46], sizes = [4, 256], strides = [1, 1]} : vector<4x512xf32> to vector<4x256xf32>
    %c16 = arith.constant 16 : index
    %c0_57 = arith.constant 0 : index
    %c0_58 = arith.constant 0 : index
    %92 = vector.load %arg4[%c16, %c0_57, %c0_58] : memref<49x24x4xf32, #tpu.memory_space<vmem>>, vector<1x24x4xf32>
    %93 = vector.shape_cast %92 : vector<1x24x4xf32> to vector<24x4xf32>
    %cst_59 = arith.constant dense<0.000000e+00> : vector<24x256xf32>
    %94 = tpu.matmul %93, %91, %cst_59 {dimension_numbers = #tpu.dot_dimension_numbers<[1], [0], [0], [1], [0, 0, 1, 1], [], []>} : vector<24x4xf32>, vector<4x256xf32>, vector<24x256xf32> -> vector<24x256xf32>
    %95 = arith.addf %90, %94 : vector<24x256xf32>
    %96 = vector.extract_strided_slice %4 {offsets = [0, 47], sizes = [4, 256], strides = [1, 1]} : vector<4x512xf32> to vector<4x256xf32>
    %c17 = arith.constant 17 : index
    %c0_60 = arith.constant 0 : index
    %c0_61 = arith.constant 0 : index
    %97 = vector.load %arg4[%c17, %c0_60, %c0_61] : memref<49x24x4xf32, #tpu.memory_space<vmem>>, vector<1x24x4xf32>
    %98 = vector.shape_cast %97 : vector<1x24x4xf32> to vector<24x4xf32>
    %cst_62 = arith.constant dense<0.000000e+00> : vector<24x256xf32>
    %99 = tpu.matmul %98, %96, %cst_62 {dimension_numbers = #tpu.dot_dimension_numbers<[1], [0], [0], [1], [0, 0, 1, 1], [], []>} : vector<24x4xf32>, vector<4x256xf32>, vector<24x256xf32> -> vector<24x256xf32>
    %100 = arith.addf %95, %99 : vector<24x256xf32>
    %101 = vector.extract_strided_slice %4 {offsets = [0, 48], sizes = [4, 256], strides = [1, 1]} : vector<4x512xf32> to vector<4x256xf32>
    %c18 = arith.constant 18 : index
    %c0_63 = arith.constant 0 : index
    %c0_64 = arith.constant 0 : index
    %102 = vector.load %arg4[%c18, %c0_63, %c0_64] : memref<49x24x4xf32, #tpu.memory_space<vmem>>, vector<1x24x4xf32>
    %103 = vector.shape_cast %102 : vector<1x24x4xf32> to vector<24x4xf32>
    %cst_65 = arith.constant dense<0.000000e+00> : vector<24x256xf32>
    %104 = tpu.matmul %103, %101, %cst_65 {dimension_numbers = #tpu.dot_dimension_numbers<[1], [0], [0], [1], [0, 0, 1, 1], [], []>} : vector<24x4xf32>, vector<4x256xf32>, vector<24x256xf32> -> vector<24x256xf32>
    %105 = arith.addf %100, %104 : vector<24x256xf32>
    %106 = vector.extract_strided_slice %4 {offsets = [0, 49], sizes = [4, 256], strides = [1, 1]} : vector<4x512xf32> to vector<4x256xf32>
    %c19 = arith.constant 19 : index
    %c0_66 = arith.constant 0 : index
    %c0_67 = arith.constant 0 : index
    %107 = vector.load %arg4[%c19, %c0_66, %c0_67] : memref<49x24x4xf32, #tpu.memory_space<vmem>>, vector<1x24x4xf32>
    %108 = vector.shape_cast %107 : vector<1x24x4xf32> to vector<24x4xf32>
    %cst_68 = arith.constant dense<0.000000e+00> : vector<24x256xf32>
    %109 = tpu.matmul %108, %106, %cst_68 {dimension_numbers = #tpu.dot_dimension_numbers<[1], [0], [0], [1], [0, 0, 1, 1], [], []>} : vector<24x4xf32>, vector<4x256xf32>, vector<24x256xf32> -> vector<24x256xf32>
    %110 = arith.addf %105, %109 : vector<24x256xf32>
    %111 = vector.extract_strided_slice %4 {offsets = [0, 50], sizes = [4, 256], strides = [1, 1]} : vector<4x512xf32> to vector<4x256xf32>
    %c20 = arith.constant 20 : index
    %c0_69 = arith.constant 0 : index
    %c0_70 = arith.constant 0 : index
    %112 = vector.load %arg4[%c20, %c0_69, %c0_70] : memref<49x24x4xf32, #tpu.memory_space<vmem>>, vector<1x24x4xf32>
    %113 = vector.shape_cast %112 : vector<1x24x4xf32> to vector<24x4xf32>
    %cst_71 = arith.constant dense<0.000000e+00> : vector<24x256xf32>
    %114 = tpu.matmul %113, %111, %cst_71 {dimension_numbers = #tpu.dot_dimension_numbers<[1], [0], [0], [1], [0, 0, 1, 1], [], []>} : vector<24x4xf32>, vector<4x256xf32>, vector<24x256xf32> -> vector<24x256xf32>
    %115 = arith.addf %110, %114 : vector<24x256xf32>
    %116 = arith.addf %79, %115 : vector<24x256xf32>
    %cst_72 = arith.constant 0.000000e+00 : f32
    %117 = vector.broadcast %cst_72 : f32 to vector<24x256xf32>
    %118 = vector.extract_strided_slice %4 {offsets = [0, 66], sizes = [4, 256], strides = [1, 1]} : vector<4x512xf32> to vector<4x256xf32>
    %c21 = arith.constant 21 : index
    %c0_73 = arith.constant 0 : index
    %c0_74 = arith.constant 0 : index
    %119 = vector.load %arg4[%c21, %c0_73, %c0_74] : memref<49x24x4xf32, #tpu.memory_space<vmem>>, vector<1x24x4xf32>
    %120 = vector.shape_cast %119 : vector<1x24x4xf32> to vector<24x4xf32>
    %cst_75 = arith.constant dense<0.000000e+00> : vector<24x256xf32>
    %121 = tpu.matmul %120, %118, %cst_75 {dimension_numbers = #tpu.dot_dimension_numbers<[1], [0], [0], [1], [0, 0, 1, 1], [], []>} : vector<24x4xf32>, vector<4x256xf32>, vector<24x256xf32> -> vector<24x256xf32>
    %122 = arith.addf %117, %121 : vector<24x256xf32>
    %123 = vector.extract_strided_slice %4 {offsets = [0, 67], sizes = [4, 256], strides = [1, 1]} : vector<4x512xf32> to vector<4x256xf32>
    %c22 = arith.constant 22 : index
    %c0_76 = arith.constant 0 : index
    %c0_77 = arith.constant 0 : index
    %124 = vector.load %arg4[%c22, %c0_76, %c0_77] : memref<49x24x4xf32, #tpu.memory_space<vmem>>, vector<1x24x4xf32>
    %125 = vector.shape_cast %124 : vector<1x24x4xf32> to vector<24x4xf32>
    %cst_78 = arith.constant dense<0.000000e+00> : vector<24x256xf32>
    %126 = tpu.matmul %125, %123, %cst_78 {dimension_numbers = #tpu.dot_dimension_numbers<[1], [0], [0], [1], [0, 0, 1, 1], [], []>} : vector<24x4xf32>, vector<4x256xf32>, vector<24x256xf32> -> vector<24x256xf32>
    %127 = arith.addf %122, %126 : vector<24x256xf32>
    %128 = vector.extract_strided_slice %4 {offsets = [0, 68], sizes = [4, 256], strides = [1, 1]} : vector<4x512xf32> to vector<4x256xf32>
    %c23 = arith.constant 23 : index
    %c0_79 = arith.constant 0 : index
    %c0_80 = arith.constant 0 : index
    %129 = vector.load %arg4[%c23, %c0_79, %c0_80] : memref<49x24x4xf32, #tpu.memory_space<vmem>>, vector<1x24x4xf32>
    %130 = vector.shape_cast %129 : vector<1x24x4xf32> to vector<24x4xf32>
    %cst_81 = arith.constant dense<0.000000e+00> : vector<24x256xf32>
    %131 = tpu.matmul %130, %128, %cst_81 {dimension_numbers = #tpu.dot_dimension_numbers<[1], [0], [0], [1], [0, 0, 1, 1], [], []>} : vector<24x4xf32>, vector<4x256xf32>, vector<24x256xf32> -> vector<24x256xf32>
    %132 = arith.addf %127, %131 : vector<24x256xf32>
    %133 = vector.extract_strided_slice %4 {offsets = [0, 69], sizes = [4, 256], strides = [1, 1]} : vector<4x512xf32> to vector<4x256xf32>
    %c24 = arith.constant 24 : index
    %c0_82 = arith.constant 0 : index
    %c0_83 = arith.constant 0 : index
    %134 = vector.load %arg4[%c24, %c0_82, %c0_83] : memref<49x24x4xf32, #tpu.memory_space<vmem>>, vector<1x24x4xf32>
    %135 = vector.shape_cast %134 : vector<1x24x4xf32> to vector<24x4xf32>
    %cst_84 = arith.constant dense<0.000000e+00> : vector<24x256xf32>
    %136 = tpu.matmul %135, %133, %cst_84 {dimension_numbers = #tpu.dot_dimension_numbers<[1], [0], [0], [1], [0, 0, 1, 1], [], []>} : vector<24x4xf32>, vector<4x256xf32>, vector<24x256xf32> -> vector<24x256xf32>
    %137 = arith.addf %132, %136 : vector<24x256xf32>
    %138 = vector.extract_strided_slice %4 {offsets = [0, 70], sizes = [4, 256], strides = [1, 1]} : vector<4x512xf32> to vector<4x256xf32>
    %c25 = arith.constant 25 : index
    %c0_85 = arith.constant 0 : index
    %c0_86 = arith.constant 0 : index
    %139 = vector.load %arg4[%c25, %c0_85, %c0_86] : memref<49x24x4xf32, #tpu.memory_space<vmem>>, vector<1x24x4xf32>
    %140 = vector.shape_cast %139 : vector<1x24x4xf32> to vector<24x4xf32>
    %cst_87 = arith.constant dense<0.000000e+00> : vector<24x256xf32>
    %141 = tpu.matmul %140, %138, %cst_87 {dimension_numbers = #tpu.dot_dimension_numbers<[1], [0], [0], [1], [0, 0, 1, 1], [], []>} : vector<24x4xf32>, vector<4x256xf32>, vector<24x256xf32> -> vector<24x256xf32>
    %142 = arith.addf %137, %141 : vector<24x256xf32>
    %143 = vector.extract_strided_slice %4 {offsets = [0, 71], sizes = [4, 256], strides = [1, 1]} : vector<4x512xf32> to vector<4x256xf32>
    %c26 = arith.constant 26 : index
    %c0_88 = arith.constant 0 : index
    %c0_89 = arith.constant 0 : index
    %144 = vector.load %arg4[%c26, %c0_88, %c0_89] : memref<49x24x4xf32, #tpu.memory_space<vmem>>, vector<1x24x4xf32>
    %145 = vector.shape_cast %144 : vector<1x24x4xf32> to vector<24x4xf32>
    %cst_90 = arith.constant dense<0.000000e+00> : vector<24x256xf32>
    %146 = tpu.matmul %145, %143, %cst_90 {dimension_numbers = #tpu.dot_dimension_numbers<[1], [0], [0], [1], [0, 0, 1, 1], [], []>} : vector<24x4xf32>, vector<4x256xf32>, vector<24x256xf32> -> vector<24x256xf32>
    %147 = arith.addf %142, %146 : vector<24x256xf32>
    %148 = vector.extract_strided_slice %4 {offsets = [0, 72], sizes = [4, 256], strides = [1, 1]} : vector<4x512xf32> to vector<4x256xf32>
    %c27 = arith.constant 27 : index
    %c0_91 = arith.constant 0 : index
    %c0_92 = arith.constant 0 : index
    %149 = vector.load %arg4[%c27, %c0_91, %c0_92] : memref<49x24x4xf32, #tpu.memory_space<vmem>>, vector<1x24x4xf32>
    %150 = vector.shape_cast %149 : vector<1x24x4xf32> to vector<24x4xf32>
    %cst_93 = arith.constant dense<0.000000e+00> : vector<24x256xf32>
    %151 = tpu.matmul %150, %148, %cst_93 {dimension_numbers = #tpu.dot_dimension_numbers<[1], [0], [0], [1], [0, 0, 1, 1], [], []>} : vector<24x4xf32>, vector<4x256xf32>, vector<24x256xf32> -> vector<24x256xf32>
    %152 = arith.addf %147, %151 : vector<24x256xf32>
    %153 = arith.addf %116, %152 : vector<24x256xf32>
    %cst_94 = arith.constant 0.000000e+00 : f32
    %154 = vector.broadcast %cst_94 : f32 to vector<24x256xf32>
    %155 = vector.extract_strided_slice %4 {offsets = [0, 88], sizes = [4, 256], strides = [1, 1]} : vector<4x512xf32> to vector<4x256xf32>
    %c28 = arith.constant 28 : index
    %c0_95 = arith.constant 0 : index
    %c0_96 = arith.constant 0 : index
    %156 = vector.load %arg4[%c28, %c0_95, %c0_96] : memref<49x24x4xf32, #tpu.memory_space<vmem>>, vector<1x24x4xf32>
    %157 = vector.shape_cast %156 : vector<1x24x4xf32> to vector<24x4xf32>
    %cst_97 = arith.constant dense<0.000000e+00> : vector<24x256xf32>
    %158 = tpu.matmul %157, %155, %cst_97 {dimension_numbers = #tpu.dot_dimension_numbers<[1], [0], [0], [1], [0, 0, 1, 1], [], []>} : vector<24x4xf32>, vector<4x256xf32>, vector<24x256xf32> -> vector<24x256xf32>
    %159 = arith.addf %154, %158 : vector<24x256xf32>
    %160 = vector.extract_strided_slice %4 {offsets = [0, 89], sizes = [4, 256], strides = [1, 1]} : vector<4x512xf32> to vector<4x256xf32>
    %c29 = arith.constant 29 : index
    %c0_98 = arith.constant 0 : index
    %c0_99 = arith.constant 0 : index
    %161 = vector.load %arg4[%c29, %c0_98, %c0_99] : memref<49x24x4xf32, #tpu.memory_space<vmem>>, vector<1x24x4xf32>
    %162 = vector.shape_cast %161 : vector<1x24x4xf32> to vector<24x4xf32>
    %cst_100 = arith.constant dense<0.000000e+00> : vector<24x256xf32>
    %163 = tpu.matmul %162, %160, %cst_100 {dimension_numbers = #tpu.dot_dimension_numbers<[1], [0], [0], [1], [0, 0, 1, 1], [], []>} : vector<24x4xf32>, vector<4x256xf32>, vector<24x256xf32> -> vector<24x256xf32>
    %164 = arith.addf %159, %163 : vector<24x256xf32>
    %165 = vector.extract_strided_slice %4 {offsets = [0, 90], sizes = [4, 256], strides = [1, 1]} : vector<4x512xf32> to vector<4x256xf32>
    %c30 = arith.constant 30 : index
    %c0_101 = arith.constant 0 : index
    %c0_102 = arith.constant 0 : index
    %166 = vector.load %arg4[%c30, %c0_101, %c0_102] : memref<49x24x4xf32, #tpu.memory_space<vmem>>, vector<1x24x4xf32>
    %167 = vector.shape_cast %166 : vector<1x24x4xf32> to vector<24x4xf32>
    %cst_103 = arith.constant dense<0.000000e+00> : vector<24x256xf32>
    %168 = tpu.matmul %167, %165, %cst_103 {dimension_numbers = #tpu.dot_dimension_numbers<[1], [0], [0], [1], [0, 0, 1, 1], [], []>} : vector<24x4xf32>, vector<4x256xf32>, vector<24x256xf32> -> vector<24x256xf32>
    %169 = arith.addf %164, %168 : vector<24x256xf32>
    %170 = vector.extract_strided_slice %4 {offsets = [0, 91], sizes = [4, 256], strides = [1, 1]} : vector<4x512xf32> to vector<4x256xf32>
    %c31 = arith.constant 31 : index
    %c0_104 = arith.constant 0 : index
    %c0_105 = arith.constant 0 : index
    %171 = vector.load %arg4[%c31, %c0_104, %c0_105] : memref<49x24x4xf32, #tpu.memory_space<vmem>>, vector<1x24x4xf32>
    %172 = vector.shape_cast %171 : vector<1x24x4xf32> to vector<24x4xf32>
    %cst_106 = arith.constant dense<0.000000e+00> : vector<24x256xf32>
    %173 = tpu.matmul %172, %170, %cst_106 {dimension_numbers = #tpu.dot_dimension_numbers<[1], [0], [0], [1], [0, 0, 1, 1], [], []>} : vector<24x4xf32>, vector<4x256xf32>, vector<24x256xf32> -> vector<24x256xf32>
    %174 = arith.addf %169, %173 : vector<24x256xf32>
    %175 = vector.extract_strided_slice %4 {offsets = [0, 92], sizes = [4, 256], strides = [1, 1]} : vector<4x512xf32> to vector<4x256xf32>
    %c32 = arith.constant 32 : index
    %c0_107 = arith.constant 0 : index
    %c0_108 = arith.constant 0 : index
    %176 = vector.load %arg4[%c32, %c0_107, %c0_108] : memref<49x24x4xf32, #tpu.memory_space<vmem>>, vector<1x24x4xf32>
    %177 = vector.shape_cast %176 : vector<1x24x4xf32> to vector<24x4xf32>
    %cst_109 = arith.constant dense<0.000000e+00> : vector<24x256xf32>
    %178 = tpu.matmul %177, %175, %cst_109 {dimension_numbers = #tpu.dot_dimension_numbers<[1], [0], [0], [1], [0, 0, 1, 1], [], []>} : vector<24x4xf32>, vector<4x256xf32>, vector<24x256xf32> -> vector<24x256xf32>
    %179 = arith.addf %174, %178 : vector<24x256xf32>
    %180 = vector.extract_strided_slice %4 {offsets = [0, 93], sizes = [4, 256], strides = [1, 1]} : vector<4x512xf32> to vector<4x256xf32>
    %c33 = arith.constant 33 : index
    %c0_110 = arith.constant 0 : index
    %c0_111 = arith.constant 0 : index
    %181 = vector.load %arg4[%c33, %c0_110, %c0_111] : memref<49x24x4xf32, #tpu.memory_space<vmem>>, vector<1x24x4xf32>
    %182 = vector.shape_cast %181 : vector<1x24x4xf32> to vector<24x4xf32>
    %cst_112 = arith.constant dense<0.000000e+00> : vector<24x256xf32>
    %183 = tpu.matmul %182, %180, %cst_112 {dimension_numbers = #tpu.dot_dimension_numbers<[1], [0], [0], [1], [0, 0, 1, 1], [], []>} : vector<24x4xf32>, vector<4x256xf32>, vector<24x256xf32> -> vector<24x256xf32>
    %184 = arith.addf %179, %183 : vector<24x256xf32>
    %185 = vector.extract_strided_slice %4 {offsets = [0, 94], sizes = [4, 256], strides = [1, 1]} : vector<4x512xf32> to vector<4x256xf32>
    %c34 = arith.constant 34 : index
    %c0_113 = arith.constant 0 : index
    %c0_114 = arith.constant 0 : index
    %186 = vector.load %arg4[%c34, %c0_113, %c0_114] : memref<49x24x4xf32, #tpu.memory_space<vmem>>, vector<1x24x4xf32>
    %187 = vector.shape_cast %186 : vector<1x24x4xf32> to vector<24x4xf32>
    %cst_115 = arith.constant dense<0.000000e+00> : vector<24x256xf32>
    %188 = tpu.matmul %187, %185, %cst_115 {dimension_numbers = #tpu.dot_dimension_numbers<[1], [0], [0], [1], [0, 0, 1, 1], [], []>} : vector<24x4xf32>, vector<4x256xf32>, vector<24x256xf32> -> vector<24x256xf32>
    %189 = arith.addf %184, %188 : vector<24x256xf32>
    %190 = arith.addf %153, %189 : vector<24x256xf32>
    %cst_116 = arith.constant 0.000000e+00 : f32
    %191 = vector.broadcast %cst_116 : f32 to vector<24x256xf32>
    %192 = vector.extract_strided_slice %4 {offsets = [0, 110], sizes = [4, 256], strides = [1, 1]} : vector<4x512xf32> to vector<4x256xf32>
    %c35 = arith.constant 35 : index
    %c0_117 = arith.constant 0 : index
    %c0_118 = arith.constant 0 : index
    %193 = vector.load %arg4[%c35, %c0_117, %c0_118] : memref<49x24x4xf32, #tpu.memory_space<vmem>>, vector<1x24x4xf32>
    %194 = vector.shape_cast %193 : vector<1x24x4xf32> to vector<24x4xf32>
    %cst_119 = arith.constant dense<0.000000e+00> : vector<24x256xf32>
    %195 = tpu.matmul %194, %192, %cst_119 {dimension_numbers = #tpu.dot_dimension_numbers<[1], [0], [0], [1], [0, 0, 1, 1], [], []>} : vector<24x4xf32>, vector<4x256xf32>, vector<24x256xf32> -> vector<24x256xf32>
    %196 = arith.addf %191, %195 : vector<24x256xf32>
    %197 = vector.extract_strided_slice %4 {offsets = [0, 111], sizes = [4, 256], strides = [1, 1]} : vector<4x512xf32> to vector<4x256xf32>
    %c36 = arith.constant 36 : index
    %c0_120 = arith.constant 0 : index
    %c0_121 = arith.constant 0 : index
    %198 = vector.load %arg4[%c36, %c0_120, %c0_121] : memref<49x24x4xf32, #tpu.memory_space<vmem>>, vector<1x24x4xf32>
    %199 = vector.shape_cast %198 : vector<1x24x4xf32> to vector<24x4xf32>
    %cst_122 = arith.constant dense<0.000000e+00> : vector<24x256xf32>
    %200 = tpu.matmul %199, %197, %cst_122 {dimension_numbers = #tpu.dot_dimension_numbers<[1], [0], [0], [1], [0, 0, 1, 1], [], []>} : vector<24x4xf32>, vector<4x256xf32>, vector<24x256xf32> -> vector<24x256xf32>
    %201 = arith.addf %196, %200 : vector<24x256xf32>
    %202 = vector.extract_strided_slice %4 {offsets = [0, 112], sizes = [4, 256], strides = [1, 1]} : vector<4x512xf32> to vector<4x256xf32>
    %c37 = arith.constant 37 : index
    %c0_123 = arith.constant 0 : index
    %c0_124 = arith.constant 0 : index
    %203 = vector.load %arg4[%c37, %c0_123, %c0_124] : memref<49x24x4xf32, #tpu.memory_space<vmem>>, vector<1x24x4xf32>
    %204 = vector.shape_cast %203 : vector<1x24x4xf32> to vector<24x4xf32>
    %cst_125 = arith.constant dense<0.000000e+00> : vector<24x256xf32>
    %205 = tpu.matmul %204, %202, %cst_125 {dimension_numbers = #tpu.dot_dimension_numbers<[1], [0], [0], [1], [0, 0, 1, 1], [], []>} : vector<24x4xf32>, vector<4x256xf32>, vector<24x256xf32> -> vector<24x256xf32>
    %206 = arith.addf %201, %205 : vector<24x256xf32>
    %207 = vector.extract_strided_slice %4 {offsets = [0, 113], sizes = [4, 256], strides = [1, 1]} : vector<4x512xf32> to vector<4x256xf32>
    %c38 = arith.constant 38 : index
    %c0_126 = arith.constant 0 : index
    %c0_127 = arith.constant 0 : index
    %208 = vector.load %arg4[%c38, %c0_126, %c0_127] : memref<49x24x4xf32, #tpu.memory_space<vmem>>, vector<1x24x4xf32>
    %209 = vector.shape_cast %208 : vector<1x24x4xf32> to vector<24x4xf32>
    %cst_128 = arith.constant dense<0.000000e+00> : vector<24x256xf32>
    %210 = tpu.matmul %209, %207, %cst_128 {dimension_numbers = #tpu.dot_dimension_numbers<[1], [0], [0], [1], [0, 0, 1, 1], [], []>} : vector<24x4xf32>, vector<4x256xf32>, vector<24x256xf32> -> vector<24x256xf32>
    %211 = arith.addf %206, %210 : vector<24x256xf32>
    %212 = vector.extract_strided_slice %4 {offsets = [0, 114], sizes = [4, 256], strides = [1, 1]} : vector<4x512xf32> to vector<4x256xf32>
    %c39 = arith.constant 39 : index
    %c0_129 = arith.constant 0 : index
    %c0_130 = arith.constant 0 : index
    %213 = vector.load %arg4[%c39, %c0_129, %c0_130] : memref<49x24x4xf32, #tpu.memory_space<vmem>>, vector<1x24x4xf32>
    %214 = vector.shape_cast %213 : vector<1x24x4xf32> to vector<24x4xf32>
    %cst_131 = arith.constant dense<0.000000e+00> : vector<24x256xf32>
    %215 = tpu.matmul %214, %212, %cst_131 {dimension_numbers = #tpu.dot_dimension_numbers<[1], [0], [0], [1], [0, 0, 1, 1], [], []>} : vector<24x4xf32>, vector<4x256xf32>, vector<24x256xf32> -> vector<24x256xf32>
    %216 = arith.addf %211, %215 : vector<24x256xf32>
    %217 = vector.extract_strided_slice %4 {offsets = [0, 115], sizes = [4, 256], strides = [1, 1]} : vector<4x512xf32> to vector<4x256xf32>
    %c40 = arith.constant 40 : index
    %c0_132 = arith.constant 0 : index
    %c0_133 = arith.constant 0 : index
    %218 = vector.load %arg4[%c40, %c0_132, %c0_133] : memref<49x24x4xf32, #tpu.memory_space<vmem>>, vector<1x24x4xf32>
    %219 = vector.shape_cast %218 : vector<1x24x4xf32> to vector<24x4xf32>
    %cst_134 = arith.constant dense<0.000000e+00> : vector<24x256xf32>
    %220 = tpu.matmul %219, %217, %cst_134 {dimension_numbers = #tpu.dot_dimension_numbers<[1], [0], [0], [1], [0, 0, 1, 1], [], []>} : vector<24x4xf32>, vector<4x256xf32>, vector<24x256xf32> -> vector<24x256xf32>
    %221 = arith.addf %216, %220 : vector<24x256xf32>
    %222 = vector.extract_strided_slice %4 {offsets = [0, 116], sizes = [4, 256], strides = [1, 1]} : vector<4x512xf32> to vector<4x256xf32>
    %c41 = arith.constant 41 : index
    %c0_135 = arith.constant 0 : index
    %c0_136 = arith.constant 0 : index
    %223 = vector.load %arg4[%c41, %c0_135, %c0_136] : memref<49x24x4xf32, #tpu.memory_space<vmem>>, vector<1x24x4xf32>
    %224 = vector.shape_cast %223 : vector<1x24x4xf32> to vector<24x4xf32>
    %cst_137 = arith.constant dense<0.000000e+00> : vector<24x256xf32>
    %225 = tpu.matmul %224, %222, %cst_137 {dimension_numbers = #tpu.dot_dimension_numbers<[1], [0], [0], [1], [0, 0, 1, 1], [], []>} : vector<24x4xf32>, vector<4x256xf32>, vector<24x256xf32> -> vector<24x256xf32>
    %226 = arith.addf %221, %225 : vector<24x256xf32>
    %227 = arith.addf %190, %226 : vector<24x256xf32>
    %cst_138 = arith.constant 0.000000e+00 : f32
    %228 = vector.broadcast %cst_138 : f32 to vector<24x256xf32>
    %229 = vector.extract_strided_slice %4 {offsets = [0, 132], sizes = [4, 256], strides = [1, 1]} : vector<4x512xf32> to vector<4x256xf32>
    %c42 = arith.constant 42 : index
    %c0_139 = arith.constant 0 : index
    %c0_140 = arith.constant 0 : index
    %230 = vector.load %arg4[%c42, %c0_139, %c0_140] : memref<49x24x4xf32, #tpu.memory_space<vmem>>, vector<1x24x4xf32>
    %231 = vector.shape_cast %230 : vector<1x24x4xf32> to vector<24x4xf32>
    %cst_141 = arith.constant dense<0.000000e+00> : vector<24x256xf32>
    %232 = tpu.matmul %231, %229, %cst_141 {dimension_numbers = #tpu.dot_dimension_numbers<[1], [0], [0], [1], [0, 0, 1, 1], [], []>} : vector<24x4xf32>, vector<4x256xf32>, vector<24x256xf32> -> vector<24x256xf32>
    %233 = arith.addf %228, %232 : vector<24x256xf32>
    %234 = vector.extract_strided_slice %4 {offsets = [0, 133], sizes = [4, 256], strides = [1, 1]} : vector<4x512xf32> to vector<4x256xf32>
    %c43 = arith.constant 43 : index
    %c0_142 = arith.constant 0 : index
    %c0_143 = arith.constant 0 : index
    %235 = vector.load %arg4[%c43, %c0_142, %c0_143] : memref<49x24x4xf32, #tpu.memory_space<vmem>>, vector<1x24x4xf32>
    %236 = vector.shape_cast %235 : vector<1x24x4xf32> to vector<24x4xf32>
    %cst_144 = arith.constant dense<0.000000e+00> : vector<24x256xf32>
    %237 = tpu.matmul %236, %234, %cst_144 {dimension_numbers = #tpu.dot_dimension_numbers<[1], [0], [0], [1], [0, 0, 1, 1], [], []>} : vector<24x4xf32>, vector<4x256xf32>, vector<24x256xf32> -> vector<24x256xf32>
    %238 = arith.addf %233, %237 : vector<24x256xf32>
    %239 = vector.extract_strided_slice %4 {offsets = [0, 134], sizes = [4, 256], strides = [1, 1]} : vector<4x512xf32> to vector<4x256xf32>
    %c44 = arith.constant 44 : index
    %c0_145 = arith.constant 0 : index
    %c0_146 = arith.constant 0 : index
    %240 = vector.load %arg4[%c44, %c0_145, %c0_146] : memref<49x24x4xf32, #tpu.memory_space<vmem>>, vector<1x24x4xf32>
    %241 = vector.shape_cast %240 : vector<1x24x4xf32> to vector<24x4xf32>
    %cst_147 = arith.constant dense<0.000000e+00> : vector<24x256xf32>
    %242 = tpu.matmul %241, %239, %cst_147 {dimension_numbers = #tpu.dot_dimension_numbers<[1], [0], [0], [1], [0, 0, 1, 1], [], []>} : vector<24x4xf32>, vector<4x256xf32>, vector<24x256xf32> -> vector<24x256xf32>
    %243 = arith.addf %238, %242 : vector<24x256xf32>
    %244 = vector.extract_strided_slice %4 {offsets = [0, 135], sizes = [4, 256], strides = [1, 1]} : vector<4x512xf32> to vector<4x256xf32>
    %c45 = arith.constant 45 : index
    %c0_148 = arith.constant 0 : index
    %c0_149 = arith.constant 0 : index
    %245 = vector.load %arg4[%c45, %c0_148, %c0_149] : memref<49x24x4xf32, #tpu.memory_space<vmem>>, vector<1x24x4xf32>
    %246 = vector.shape_cast %245 : vector<1x24x4xf32> to vector<24x4xf32>
    %cst_150 = arith.constant dense<0.000000e+00> : vector<24x256xf32>
    %247 = tpu.matmul %246, %244, %cst_150 {dimension_numbers = #tpu.dot_dimension_numbers<[1], [0], [0], [1], [0, 0, 1, 1], [], []>} : vector<24x4xf32>, vector<4x256xf32>, vector<24x256xf32> -> vector<24x256xf32>
    %248 = arith.addf %243, %247 : vector<24x256xf32>
    %249 = vector.extract_strided_slice %4 {offsets = [0, 136], sizes = [4, 256], strides = [1, 1]} : vector<4x512xf32> to vector<4x256xf32>
    %c46 = arith.constant 46 : index
    %c0_151 = arith.constant 0 : index
    %c0_152 = arith.constant 0 : index
    %250 = vector.load %arg4[%c46, %c0_151, %c0_152] : memref<49x24x4xf32, #tpu.memory_space<vmem>>, vector<1x24x4xf32>
    %251 = vector.shape_cast %250 : vector<1x24x4xf32> to vector<24x4xf32>
    %cst_153 = arith.constant dense<0.000000e+00> : vector<24x256xf32>
    %252 = tpu.matmul %251, %249, %cst_153 {dimension_numbers = #tpu.dot_dimension_numbers<[1], [0], [0], [1], [0, 0, 1, 1], [], []>} : vector<24x4xf32>, vector<4x256xf32>, vector<24x256xf32> -> vector<24x256xf32>
    %253 = arith.addf %248, %252 : vector<24x256xf32>
    %254 = vector.extract_strided_slice %4 {offsets = [0, 137], sizes = [4, 256], strides = [1, 1]} : vector<4x512xf32> to vector<4x256xf32>
    %c47 = arith.constant 47 : index
    %c0_154 = arith.constant 0 : index
    %c0_155 = arith.constant 0 : index
    %255 = vector.load %arg4[%c47, %c0_154, %c0_155] : memref<49x24x4xf32, #tpu.memory_space<vmem>>, vector<1x24x4xf32>
    %256 = vector.shape_cast %255 : vector<1x24x4xf32> to vector<24x4xf32>
    %cst_156 = arith.constant dense<0.000000e+00> : vector<24x256xf32>
    %257 = tpu.matmul %256, %254, %cst_156 {dimension_numbers = #tpu.dot_dimension_numbers<[1], [0], [0], [1], [0, 0, 1, 1], [], []>} : vector<24x4xf32>, vector<4x256xf32>, vector<24x256xf32> -> vector<24x256xf32>
    %258 = arith.addf %253, %257 : vector<24x256xf32>
    %259 = vector.extract_strided_slice %4 {offsets = [0, 138], sizes = [4, 256], strides = [1, 1]} : vector<4x512xf32> to vector<4x256xf32>
    %c48 = arith.constant 48 : index
    %c0_157 = arith.constant 0 : index
    %c0_158 = arith.constant 0 : index
    %260 = vector.load %arg4[%c48, %c0_157, %c0_158] : memref<49x24x4xf32, #tpu.memory_space<vmem>>, vector<1x24x4xf32>
    %261 = vector.shape_cast %260 : vector<1x24x4xf32> to vector<24x4xf32>
    %cst_159 = arith.constant dense<0.000000e+00> : vector<24x256xf32>
    %262 = tpu.matmul %261, %259, %cst_159 {dimension_numbers = #tpu.dot_dimension_numbers<[1], [0], [0], [1], [0, 0, 1, 1], [], []>} : vector<24x4xf32>, vector<4x256xf32>, vector<24x256xf32> -> vector<24x256xf32>
    %263 = arith.addf %258, %262 : vector<24x256xf32>
    %264 = arith.addf %227, %263 : vector<24x256xf32>
    %c0_160 = arith.constant 0 : index
    %265 = memref.load %arg5[%c0_160] : memref<3xf32, #tpu.memory_space<smem>>
    %266 = vector.extract_strided_slice %264 {offsets = [0, 0], sizes = [8, 256], strides = [1, 1]} : vector<24x256xf32> to vector<8x256xf32>
    %cst_161 = arith.constant 0.000000e+00 : f32
    %267 = vector.broadcast %cst_161 : f32 to vector<8x256xf32>
    %268 = arith.maximumf %266, %267 : vector<8x256xf32>
    %269 = vector.broadcast %265 : f32 to vector<8x256xf32>
    %270 = arith.mulf %269, %268 : vector<8x256xf32>
    %c1_162 = arith.constant 1 : index
    %271 = memref.load %arg5[%c1_162] : memref<3xf32, #tpu.memory_space<smem>>
    %272 = vector.extract_strided_slice %264 {offsets = [8, 0], sizes = [8, 256], strides = [1, 1]} : vector<24x256xf32> to vector<8x256xf32>
    %cst_163 = arith.constant 0.000000e+00 : f32
    %273 = vector.broadcast %cst_163 : f32 to vector<8x256xf32>
    %274 = arith.maximumf %272, %273 : vector<8x256xf32>
    %275 = vector.broadcast %271 : f32 to vector<8x256xf32>
    %276 = arith.mulf %275, %274 : vector<8x256xf32>
    %277 = arith.addf %270, %276 : vector<8x256xf32>
    %c2_164 = arith.constant 2 : index
    %278 = memref.load %arg5[%c2_164] : memref<3xf32, #tpu.memory_space<smem>>
    %279 = vector.extract_strided_slice %264 {offsets = [16, 0], sizes = [8, 256], strides = [1, 1]} : vector<24x256xf32> to vector<8x256xf32>
    %cst_165 = arith.constant 0.000000e+00 : f32
    %280 = vector.broadcast %cst_165 : f32 to vector<8x256xf32>
    %281 = arith.maximumf %279, %280 : vector<8x256xf32>
    %282 = vector.broadcast %278 : f32 to vector<8x256xf32>
    %283 = arith.mulf %282, %281 : vector<8x256xf32>
    %284 = arith.addf %277, %283 : vector<8x256xf32>
    %285 = vector.shape_cast %284 : vector<8x256xf32> to vector<1x8x256xf32>
    %c0_166 = arith.constant 0 : index
    %c0_167 = arith.constant 0 : index
    %c0_168 = arith.constant 0 : index
    %286 = vector.load %arg6[%c0_166, %c0_167, %c0_168] : memref<1x8x256xf32, #tpu.memory_space<vmem>>, vector<1x8x256xf32>
    tpu.vector_store %arg6[%c0_166, %c0_167, %c0_168], %285 {strides = array<i32>} : memref<1x8x256xf32, #tpu.memory_space<vmem>>, vector<1x8x256xf32>,
    return
  }
  func.func @transform_0(%arg0: i32, %arg1: i32) -> (i32, i32, i32) {
    %c0_i32 = arith.constant 0 : i32
    %c0_i32_0 = arith.constant 0 : i32
    return %arg0, %c0_i32, %arg1 : i32, i32, i32
  }
  func.func @transform_1(%arg0: i32, %arg1: i32) -> (i32, i32, i32) {
    %c1_i32 = arith.constant 1 : i32
    %0 = arith.addi %arg1, %c1_i32 : i32
    %c0_i32 = arith.constant 0 : i32
    %c0_i32_0 = arith.constant 0 : i32
    return %arg0, %c0_i32, %0 : i32, i32, i32
  }
  func.func @transform_2(%arg0: i32, %arg1: i32) -> (i32, i32, i32) {
    %c0_i32 = arith.constant 0 : i32
    %c0_i32_0 = arith.constant 0 : i32
    %c0_i32_1 = arith.constant 0 : i32
    %c0_i32_2 = arith.constant 0 : i32
    return %c0_i32, %c0_i32_0, %c0_i32_1 : i32, i32, i32
  }
  func.func @transform_3(%arg0: i32, %arg1: i32) -> i32 {
    %c0_i32 = arith.constant 0 : i32
    %c0_i32_0 = arith.constant 0 : i32
    return %c0_i32 : i32
  }
  func.func @transform_4(%arg0: i32, %arg1: i32) -> (i32, i32, i32) {
    %c0_i32 = arith.constant 0 : i32
    %c0_i32_0 = arith.constant 0 : i32
    return %arg0, %c0_i32, %arg1 : i32, i32, i32
  }
}

</mosaic_0001>

<llo_original>
// kernel: tpu_custom_call.1
$region0: #{tpu_custom_call.1}
  #allocation0 [shape = 'u32[]', space=smem, size = 0x4, offset = 0x4, fixed_abs, tag = 'smem constant byte address 0x4 - core index']
  #allocation1 [shape = 'u32[144,128]{1,0:T(1,128)}', space=vmem, size = 0x12000, scoped, tag = 'internal scratch']
  %s0 = inlined_call_operand.vmem [shape: f32[2,4,768], index: 0, kind: input, shape index: {}]
  %s1 = inlined_call_operand.vmem [shape: f32[2,4,768], index: 1, kind: input, shape index: {}]
  %s2 = inlined_call_operand.vmem [shape: f32[49,24,4], index: 2, kind: input, shape index: {}]
  %s3 = inlined_call_operand.vmem [shape: f32[3], index: 3, kind: input, shape index: {}]
  %s4 = inlined_call_operand.hbm [shape: f32[2,8,512], index: 4, kind: output, shape index: {}]
  %s5 = sld [smem:[#allocation0]]
  $region53: #{tpu_custom_call.1} parent=0
    _
  %s7 = ssub.s32 1, %s5
  %s8 = scalar_select 0, %s7, %s5
  $region1: #{tpu_custom_call.1} parent=0
    #allocation2 [shape = 'u8[512]{0}', space=smem, size = 0x200, scoped, tag = 'input window, operand 3, single buffered']
    #allocation3 [shape = 's32[2]{0}', space=sflag, size = 0x8, scoped, tag = 'scoped memory for tpu_custom_call.1']
    #allocation4 [shape = 's32[2]{0}', space=sflag, size = 0x8, scoped, tag = 'scoped memory for tpu_custom_call.1']
    #allocation5 [shape = 'u8[16384]{0}', space=vmem, size = 0x4000, scoped, tag = 'output window, operand 0']
    %9 = vsyncpa [#allocation4], 0
    %10 = vsyncpa [#allocation3], 0
    %s11 = scalar_lea.sflag [#allocation3], 1
    %12 = vsyncpa %s11, 0
    loop: start=0, step=1, limit=6
    $region2: #{tpu_custom_call.1} parent=1 // loop_pre_header
      _
    $region3: #{tpu_custom_call.1} parent=1 // loop_header
      %s14 = sphi 0, %s18
      %p15 = scmp.ge.s32.totalorder %s14, 6
      %s21 = sphi 0, %s33
      %s22 = sphi 0, %s29
      %s23 = sphi 0, %s21
      %s24 = sphi 0, %s22
      %s25 = sphi 0, %s23
      %s26 = sphi 0, %s24
      %s38 = sphi 0, %s40
      %s41 = sphi 0, %s38
      %s42 = sphi 0, %s41
      %s58 = sphi 0, %s42
      %s68 = sphi 0, %s70
      %s71 = sphi 0, %s68
      %s72 = sphi 0, %s71
      %s88 = sphi 0, %s72
      %s92 = sphi 0, %s92
      %s94 = sphi 0, %s92
      %s95 = sphi 0, %s94
      %s109 = sphi 0, %s95
      %s113 = sphi 0, %s113
      %s115 = sphi 0, %s113
      %s116 = sphi 0, %s115
      %s130 = sphi 0, %s116
      %s138 = sphi 0, %s140
      %s141 = sphi 0, %s138
      %s142 = sphi 0, %s141
      %s158 = sphi 0, %s142
    $region4: #{tpu_custom_call.1} parent=1 // loop_header_branch
      %17 = sbr.rel (%p15) target = $region8
    $region5: #{tpu_custom_call.1} parent=1 // loop_body
      %s19 = ssub.s32 %s14, 1
      %s20 = ssub.s32 %s14, 2
      %s27 = sadd.s32 1, %s22
      %p28 = scmp.ge.s32.totalorder %s27, 2
      %s29 = scalar_select %p28, 0, %s27
      %s30 = sadd.s32 1, %s21
      %s31 = scalar_select %p28, %s30, %s21
      %p32 = scmp.ge.s32.totalorder %s31, 2
      %s33 = scalar_select %p32, 0, %s31
      %s34 = ssub.s32 %s21, %s33
      %s35 = ssub.s32 %s22, %s29
      %s36 = sor.u32 %s34, %s35
      %p37 = scmp.eq.s32.totalorder %s36, 0
      %s39 = sadd.s32 %s38, 1
      %s40 = scalar_select %p37, %s38, %s39
      %p43 = pneg %p37
      %p44 = scmp.eq.s32.totalorder %s14, 3
      %p45 = por %p43, %p44
      %p46 = scmp.ne.s32.totalorder %s38, %s41
      %p47 = scmp.eq.s32.totalorder %s14, 0
      %p48 = por %p46, %p47
      %p49 = scmp.ne.s32.totalorder %s38, %s41
      %p50 = scmp.eq.s32.totalorder %s19, 3
      %p51 = por %p49, %p50
      %p52 = scmp.ne.s32.totalorder %s41, %s42
      %p53 = scmp.eq.s32.totalorder %s19, 0
      %p54 = por %p52, %p53
      %p55 = scmp.ne.s32.totalorder %s41, %s42
      %p56 = scmp.eq.s32.totalorder %s20, 3
      %p57 = por %p55, %p56
      %p59 = scmp.ne.s32.totalorder %s42, %s58
      %p60 = scmp.eq.s32.totalorder %s20, 0
      %p61 = por %p59, %p60
      %s62 = sadd.s32 %s22, 1
      %s63 = sadd.s32 %s29, 1
      %s64 = ssub.s32 %s21, %s33
      %s65 = ssub.s32 %s62, %s63
      %s66 = sor.u32 %s64, %s65
      %p67 = scmp.eq.s32.totalorder %s66, 0
      %s69 = sadd.s32 %s68, 1
      %s70 = scalar_select %p67, %s68, %s69
      %p73 = pneg %p67
      %p74 = scmp.eq.s32.totalorder %s14, 3
      %p75 = por %p73, %p74
      %p76 = scmp.ne.s32.totalorder %s68, %s71
      %p77 = scmp.eq.s32.totalorder %s14, 0
      %p78 = por %p76, %p77
      %p79 = scmp.ne.s32.totalorder %s68, %s71
      %p80 = scmp.eq.s32.totalorder %s19, 3
      %p81 = por %p79, %p80
      %p82 = scmp.ne.s32.totalorder %s71, %s72
      %p83 = scmp.eq.s32.totalorder %s19, 0
      %p84 = por %p82, %p83
      %p85 = scmp.ne.s32.totalorder %s71, %s72
      %p86 = scmp.eq.s32.totalorder %s20, 3
      %p87 = por %p85, %p86
      %p89 = scmp.ne.s32.totalorder %s72, %s88
      %p90 = scmp.eq.s32.totalorder %s20, 0
      %p91 = por %p89, %p90
      %s93 = sadd.s32 %s92, 1
      %p96 = scmp.eq.s32.totalorder %s14, 3
      %p97 = scmp.ne.s32.totalorder %s92, %s94
      %p98 = scmp.eq.s32.totalorder %s14, 0
      %p99 = por %p97, %p98
      %p100 = scmp.ne.s32.totalorder %s92, %s94
      %p101 = scmp.eq.s32.totalorder %s19, 3
      %p102 = por %p100, %p101
      %p103 = scmp.ne.s32.totalorder %s94, %s95
      %p104 = scmp.eq.s32.totalorder %s19, 0
      %p105 = por %p103, %p104
      %p106 = scmp.ne.s32.totalorder %s94, %s95
      %p107 = scmp.eq.s32.totalorder %s20, 3
      %p108 = por %p106, %p107
      %p110 = scmp.ne.s32.totalorder %s95, %s109
      %p111 = scmp.eq.s32.totalorder %s20, 0
      %p112 = por %p110, %p111
      %s114 = sadd.s32 %s113, 1
      %p117 = scmp.eq.s32.totalorder %s14, 3
      %p118 = scmp.ne.s32.totalorder %s113, %s115
      %p119 = scmp.eq.s32.totalorder %s14, 0
      %p120 = por %p118, %p119
      %p121 = scmp.ne.s32.totalorder %s113, %s115
      %p122 = scmp.eq.s32.totalorder %s19, 3
      %p123 = por %p121, %p122
      %p124 = scmp.ne.s32.totalorder %s115, %s116
      %p125 = scmp.eq.s32.totalorder %s19, 0
      %p126 = por %p124, %p125
      %p127 = scmp.ne.s32.totalorder %s115, %s116
      %p128 = scmp.eq.s32.totalorder %s20, 3
      %p129 = por %p127, %p128
      %p131 = scmp.ne.s32.totalorder %s116, %s130
      %p132 = scmp.eq.s32.totalorder %s20, 0
      %p133 = por %p131, %p132
      %s134 = ssub.s32 %s21, %s33
      %s135 = ssub.s32 %s22, %s29
      %s136 = sor.u32 %s134, %s135
      %p137 = scmp.eq.s32.totalorder %s136, 0
      %s139 = sadd.s32 %s138, 1
      %s140 = scalar_select %p137, %s138, %s139
      %p143 = pneg %p137
      %p144 = scmp.eq.s32.totalorder %s14, 3
      %p145 = por %p143, %p144
      %p146 = scmp.ne.s32.totalorder %s138, %s141
      %p147 = scmp.eq.s32.totalorder %s14, 0
      %p148 = por %p146, %p147
      %p149 = scmp.ne.s32.totalorder %s138, %s141
      %p150 = scmp.eq.s32.totalorder %s19, 3
      %p151 = por %p149, %p150
      %p152 = scmp.ne.s32.totalorder %s141, %s142
      %p153 = scmp.eq.s32.totalorder %s19, 0
      %p154 = por %p152, %p153
      %p155 = scmp.ne.s32.totalorder %s141, %s142
      %p156 = scmp.eq.s32.totalorder %s20, 3
      %p157 = por %p155, %p156
      %p159 = scmp.ne.s32.totalorder %s142, %s158
      %p160 = scmp.eq.s32.totalorder %s20, 0
      %p161 = por %p159, %p160
      %p162 = scmp.le.s32.totalorder 1, %s14
      %p163 = scmp.lt.s32.totalorder %s14, 5
      %p164 = pnand %p162, %p163
      %p165 = pneg %p164
      // Predicated region
      $region9: #{tpu_custom_call.1} parent=5 // pred_check
        _
      $region10: #{tpu_custom_call.1} parent=5 // pred_check_branch
        %167 = sbr.rel (%p164) target = $region12
      $region11: #{tpu_custom_call.1} parent=5 // pred_region
        %s168 = ssub.s32 %s14, 1
        // Predicated region
        $region13: #{tpu_custom_call.1} parent=11 // pred_check
          %p169 = pneg %p105
        $region14: #{tpu_custom_call.1} parent=11 // pred_check_branch
          %171 = sbr.rel (%p169) target = $region16
        $region15: #{tpu_custom_call.1} parent=11 // pred_region
          _
        $region16: #{tpu_custom_call.1} parent=11 // pred_fallthru
          _
        // Predicated region
        $region17: #{tpu_custom_call.1} parent=11 // pred_check
          %p172 = pneg %p126
        $region18: #{tpu_custom_call.1} parent=11 // pred_check_branch
          %174 = sbr.rel (%p172) target = $region20
        $region19: #{tpu_custom_call.1} parent=11 // pred_region
          %s176 = ssub.s32 16, 16
          %177 = vsyncadd [#allocation4], %s176
          %s179 = sshll.u32 %s3, 4
          %s180 = int_to_ptr.vmem [resolvable:$true] %s179
          %182 = dma.vmem_to_smem %s180, 16, [#allocation2], [#allocation4]
        $region20: #{tpu_custom_call.1} parent=11 // pred_fallthru
          _
      $region12: #{tpu_custom_call.1} parent=5 // pred_fallthru
        _
      %p183 = scmp.lt.s32.totalorder %s14, 4
      // Predicated region
      $region21: #{tpu_custom_call.1} parent=5 // pred_check
        %p184 = pneg %p183
      $region22: #{tpu_custom_call.1} parent=5 // pred_check_branch
        %186 = sbr.rel (%p184) target = $region24
      $region23: #{tpu_custom_call.1} parent=5 // pred_region
        // Predicated region
        $region25: #{tpu_custom_call.1} parent=23 // pred_check
          %p187 = pneg %p48
        $region26: #{tpu_custom_call.1} parent=23 // pred_check_branch
          %189 = sbr.rel (%p187) target = $region28
        $region27: #{tpu_custom_call.1} parent=23 // pred_region
          %s190 = smul.u32 2, %s22
          %p191 = scmp.lt.s32.totalorder %s21, 1
          %s192 = scalar_select %p191, %s21, 1
          %p193 = scmp.lt.s32.totalorder %s190, 5
          %s194 = scalar_select %p193, %s190, 5
          %s195 = smul.addr %s192, 6
          %s196 = sadd.s32 %s194, %s195
          %s197 = smul.addr %s196, 4
          %s198 = scalar_lea.vmem %s0, %s197
          %s199 = smul.u32 2, %s22
        $region28: #{tpu_custom_call.1} parent=23 // pred_fallthru
          _
        // Predicated region
        $region29: #{tpu_custom_call.1} parent=23 // pred_check
          %p200 = pneg %p78
        $region30: #{tpu_custom_call.1} parent=23 // pred_check_branch
          %202 = sbr.rel (%p200) target = $region32
        $region31: #{tpu_custom_call.1} parent=23 // pred_region
          %s203 = sadd.s32 %s22, 1
          %s204 = smul.u32 2, %s203
          %p205 = scmp.lt.s32.totalorder %s21, 1
          %s206 = scalar_select %p205, %s21, 1
          %p207 = scmp.lt.s32.totalorder %s204, 5
          %s208 = scalar_select %p207, %s204, 5
          %s209 = smul.addr %s206, 6
          %s210 = sadd.s32 %s208, %s209
          %s211 = smul.addr %s210, 4
          %s212 = scalar_lea.vmem %s1, %s211
          %s213 = sadd.s32 %s22, 1
          %s214 = smul.u32 2, %s213
        $region32: #{tpu_custom_call.1} parent=23 // pred_fallthru
          _
      $region24: #{tpu_custom_call.1} parent=5 // pred_fallthru
        _
      %p215 = scmp.le.s32.totalorder 1, %s14
      %p216 = scmp.lt.s32.totalorder %s14, 5
      %p217 = pnand %p215, %p216
      %p218 = pneg %p217
      // Predicated region
      $region33: #{tpu_custom_call.1} parent=5 // pred_check
        _
      $region34: #{tpu_custom_call.1} parent=5 // pred_check_branch
        %220 = sbr.rel (%p217) target = $region36
      $region35: #{tpu_custom_call.1} parent=5 // pred_region
        %s221 = ssub.s32 %s14, 1
        // Predicated region
        $region37: #{tpu_custom_call.1} parent=35 // pred_check
          %p222 = pneg %p126
        $region38: #{tpu_custom_call.1} parent=35 // pred_check_branch
          %224 = sbr.rel (%p222) target = $region40
        $region39: #{tpu_custom_call.1} parent=35 // pred_region
          %225 = dma.done [#allocation4], 16
        $region40: #{tpu_custom_call.1} parent=35 // pred_fallthru
          _
        %226 = sfence
        %s227 = smul.u32 2, %s24
        %p228 = scmp.lt.s32.totalorder %s23, 1
        %s229 = scalar_select %p228, %s23, 1
        %p230 = scmp.lt.s32.totalorder %s227, 5
        %s231 = scalar_select %p230, %s227, 5
        %s232 = smul.addr %s229, 6
        %s233 = sadd.s32 %s231, %s232
        %s234 = smul.addr %s233, 4
        %s235 = scalar_lea.vmem %s0, %s234
        %p236 = pneg %p54
        %p237 = pneg %p51
        %s238 = sadd.s32 %s24, 1
        %s239 = smul.u32 2, %s238
        %p240 = scmp.lt.s32.totalorder %s23, 1
        %s241 = scalar_select %p240, %s23, 1
        %p242 = scmp.lt.s32.totalorder %s239, 5
        %s243 = scalar_select %p242, %s239, 5
        %s244 = smul.addr %s241, 6
        %s245 = sadd.s32 %s243, %s244
        %s246 = smul.addr %s245, 4
        %s247 = scalar_lea.vmem %s1, %s246
        %p248 = pneg %p84
        %p249 = pneg %p81
        %p250 = pneg %p105
        %p251 = pneg %p102
        %p252 = pneg %p126
        %p253 = pneg %p123
        %p254 = pneg %p154
        %p255 = pneg %p151
        %s256 = sand.u32 %s141, 1
        %s257 = scalar_lea.sflag [#allocation3], %s256
        %s258 = sand.u32 %s141, 1
        %s259 = smul.addr %s258, 16
        %s260 = scalar_lea.vmem [#allocation5], %s259
        %s261 = smul.u32 2, %s24
        %p262 = scmp.lt.s32.totalorder %s23, 1
        %s263 = scalar_select %p262, %s23, 1
        %p264 = scmp.lt.s32.totalorder %s261, 5
        %s265 = scalar_select %p264, %s261, 5
        %s266 = smul.addr %s263, 6
        %s267 = sadd.s32 %s265, %s266
        %s268 = smul.addr %s267, 4
        %s269 = scalar_lea.vmem %s0, %s268
        %s270 = smul.u32 2, %s24
        %s271 = sadd.s32 %s24, 1
        %s272 = smul.u32 2, %s271
        %p273 = scmp.lt.s32.totalorder %s23, 1
        %s274 = scalar_select %p273, %s23, 1
        %p275 = scmp.lt.s32.totalorder %s272, 5
        %s276 = scalar_select %p275, %s272, 5
        %s277 = smul.addr %s274, 6
        %s278 = sadd.s32 %s276, %s277
        %s279 = smul.addr %s278, 4
        %s280 = scalar_lea.vmem %s1, %s279
        %s281 = sadd.s32 %s24, 1
        %s282 = smul.u32 2, %s281
        %s283 = smul.u32 2, %s24
        %v284 = vld [vmem:[%s269] sm:$0xff]
        %v285 = vld [vmem:[%s280] sm:$0xff]
        %v287 = vcombine.high %v284, %v284
        %v289 = vcombine.high %v285, %v285
        %v290 = vld [vmem:[%s2] sm:$0xff]
        %v291 = vld [vmem:[%s2 + $0x8] sm:$0xff]
        %v292 = vld [vmem:[%s2 + $0x10] sm:$0xff]
        %s293 = scalar_lea.vmem %s2, 24
        %v294 = vld [vmem:[%s293] sm:$0xff]
        %v295 = vld [vmem:[%s293 + $0x8] sm:$0xff]
        %v296 = vld [vmem:[%s293 + $0x10] sm:$0xff]
        %297 = vrot.lane.b32.xlu0 %v284, 127
        %v298 = vpop.permute.xlu0 %297
        %299 = vrot.lane.b32.xlu0 %v287, 127
        %v300 = vpop.permute.xlu0 %299
        %301 = vrot.lane.b32.xlu0 %v285, 127
        %v302 = vpop.permute.xlu0 %301
        %vm303 = vcmask 1039360
        %v304 = vsel %vm303, %v298, %v300
        %v305 = vsel %vm303, %v300, %v302
        %vm306 = vcmask 31744
        %v308 = vsel %vm306, %v294, 0
        %v311 = vsel %vm306, %v295, 0
        %v314 = vsel %vm306, %v296, 0
        %vm316 = vcmask 1043456
        %v317 = vsel %vm316, %v304, 0
        %v319 = vsel %vm316, %v305, 0
        %321 = vmatprep.subr.mxu0 %v319
        %322 = vmatpush1.msra.mxu0 %v317
        %323 = vmatprep.subr.mxu0 0.0
        %324 = vmatpush1.msra.mxu0 0.0
        %325 = vmatprep.subr.mxu0 0.0
        %326 = vmatpush1.msra.mxu0 0.0
        %327 = vmatprep.subr.mxu0 0.0
        %328 = vmatpush1.msra.mxu0 0.0
        %329 = vmatprep.subr.mxu0 0.0
        %330 = vmatpush1.msra.mxu0 0.0
        %331 = vmatprep.subr.mxu0 0.0
        %332 = vmatpush1.msra.mxu0 0.0
        %333 = vmatprep.subr.mxu0 0.0
        %334 = vmatpush1.msra.mxu0 0.0
        %335 = vmatprep.subr.mxu0 0.0
        %336 = vmatpush1.msra.mxu0 0.0
        %337 = vmatprep.subr.mxu0 0.0
        %338 = vmatpush1.msra.mxu0 0.0
        %339 = vmatprep.subr.mxu0 0.0
        %340 = vmatpush1.msra.mxu0 0.0
        %341 = vmatprep.subr.mxu0 0.0
        %342 = vmatpush1.msra.mxu0 0.0
        %343 = vmatprep.subr.mxu0 0.0
        %344 = vmatpush1.msra.mxu0 0.0
        %345 = vmatprep.subr.mxu0 0.0
        %346 = vmatpush1.msra.mxu0 0.0
        %347 = vmatprep.subr.mxu0 0.0
        %348 = vmatpush1.msra.mxu0 0.0
        %349 = vmatprep.subr.mxu0 0.0
        %350 = vmatpush1.msra.mxu0 0.0
        %351 = vmatprep.subr.mxu0 0.0
        %352 = vmatpush1.msra.mxu0 0.0
        %353 = vmatprep.subr.mxu0 0.0
        %354 = vmatpush1.msra.mxu0 0.0
        %355 = vmatprep.subr.mxu0 0.0
        %356 = vmatpush1.msra.mxu0 0.0
        %357 = vmatprep.subr.mxu0 0.0
        %358 = vmatpush1.msra.mxu0 0.0
        %359 = vmatprep.subr.mxu0 0.0
        %360 = vmatpush1.msra.mxu0 0.0
        %361 = vmatprep.subr.mxu0 0.0
        %362 = vmatpush1.msra.mxu0 0.0
        %363 = vmatprep.subr.mxu0 0.0
        %364 = vmatpush1.msra.mxu0 0.0
        %365 = vmatprep.subr.mxu0 0.0
        %366 = vmatpush1.msra.mxu0 0.0
        %367 = vmatprep.subr.mxu0 0.0
        %368 = vmatpush1.msra.mxu0 0.0
        %369 = vmatprep.subr.mxu0 0.0
        %370 = vmatpush1.msra.mxu0 0.0
        %371 = vmatprep.subr.mxu0 0.0
        %372 = vmatpush1.msra.mxu0 0.0
        %373 = vmatprep.subr.mxu0 0.0
        %374 = vmatpush1.msra.mxu0 0.0
        %375 = vmatprep.subr.mxu0 0.0
        %376 = vmatpush1.msra.mxu0 0.0
        %377 = vmatprep.subr.mxu0 0.0
        %378 = vmatpush1.msra.mxu0 0.0
        %379 = vmatprep.subr.mxu0 0.0
        %380 = vmatpush1.msra.mxu0 0.0
        %381 = vmatprep.subr.mxu0 0.0
        %382 = vmatpush1.msra.mxu0 0.0
        %383 = vmatprep.subr.mxu0 0.0
        %384 = vmatpush1.msra.mxu0 0.0
        %385 = vmatprep.mubr.f32.mxu0 0.0
        %386 = vmatmul.mubr.f32.gmra.mrb[0].mxu0 %v308
        %v387 = vpop.f32.mrb[0].mxu0
        %v388 = vadd.f32 0.0, %v387
        %v389 = vpop.f32.mrb[0].mxu0
        %v390 = vadd.f32 0.0, %v389
        %391 = vmatprep.mubr.f32.mxu0 0.0
        %392 = vmatmul.mubr.f32.gmra.mrb[0].mxu0 %v311
        %v393 = vpop.f32.mrb[0].mxu0
        %v394 = vadd.f32 0.0, %v393
        %v395 = vpop.f32.mrb[0].mxu0
        %v396 = vadd.f32 0.0, %v395
        %397 = vmatprep.mubr.f32.mxu0 0.0
        %398 = vmatmul.mubr.f32.gmra.mrb[0].mxu0 %v314
        %v399 = vpop.f32.mrb[0].mxu0
        %v400 = vadd.f32 0.0, %v399
        %v401 = vpop.f32.mrb[0].mxu0
        %v402 = vadd.f32 0.0, %v401
        %403 = vdwg.mxu0
        %v405 = vsel %vm306, %v290, 0
        %v408 = vsel %vm306, %v291, 0
        %v411 = vsel %vm306, %v292, 0
        %v413 = vsel %vm316, %v284, 0
        %v415 = vsel %vm316, %v287, 0
        %417 = vmatprep.subr.mxu0 %v415
        %418 = vmatpush1.msra.mxu0 %v413
        %419 = vmatprep.subr.mxu0 0.0
        %420 = vmatpush1.msra.mxu0 0.0
        %421 = vmatprep.subr.mxu0 0.0
        %422 = vmatpush1.msra.mxu0 0.0
        %423 = vmatprep.subr.mxu0 0.0
        %424 = vmatpush1.msra.mxu0 0.0
        %425 = vmatprep.subr.mxu0 0.0
        %426 = vmatpush1.msra.mxu0 0.0
        %427 = vmatprep.subr.mxu0 0.0
        %428 = vmatpush1.msra.mxu0 0.0
        %429 = vmatprep.subr.mxu0 0.0
        %430 = vmatpush1.msra.mxu0 0.0
        %431 = vmatprep.subr.mxu0 0.0
        %432 = vmatpush1.msra.mxu0 0.0
        %433 = vmatprep.subr.mxu0 0.0
        %434 = vmatpush1.msra.mxu0 0.0
        %435 = vmatprep.subr.mxu0 0.0
        %436 = vmatpush1.msra.mxu0 0.0
        %437 = vmatprep.subr.mxu0 0.0
        %438 = vmatpush1.msra.mxu0 0.0
        %439 = vmatprep.subr.mxu0 0.0
        %440 = vmatpush1.msra.mxu0 0.0
        %441 = vmatprep.subr.mxu0 0.0
        %442 = vmatpush1.msra.mxu0 0.0
        %443 = vmatprep.subr.mxu0 0.0
        %444 = vmatpush1.msra.mxu0 0.0
        %445 = vmatprep.subr.mxu0 0.0
        %446 = vmatpush1.msra.mxu0 0.0
        %447 = vmatprep.subr.mxu0 0.0
        %448 = vmatpush1.msra.mxu0 0.0
        %449 = vmatprep.subr.mxu0 0.0
        %450 = vmatpush1.msra.mxu0 0.0
        %451 = vmatprep.subr.mxu0 0.0
        %452 = vmatpush1.msra.mxu0 0.0
        %453 = vmatprep.subr.mxu0 0.0
        %454 = vmatpush1.msra.mxu0 0.0
        %455 = vmatprep.subr.mxu0 0.0
        %456 = vmatpush1.msra.mxu0 0.0
        %457 = vmatprep.subr.mxu0 0.0
        %458 = vmatpush1.msra.mxu0 0.0
        %459 = vmatprep.subr.mxu0 0.0
        %460 = vmatpush1.msra.mxu0 0.0
        %461 = vmatprep.subr.mxu0 0.0
        %462 = vmatpush1.msra.mxu0 0.0
        %463 = vmatprep.subr.mxu0 0.0
        %464 = vmatpush1.msra.mxu0 0.0
        %465 = vmatprep.subr.mxu0 0.0
        %466 = vmatpush1.msra.mxu0 0.0
        %467 = vmatprep.subr.mxu0 0.0
        %468 = vmatpush1.msra.mxu0 0.0
        %469 = vmatprep.subr.mxu0 0.0
        %470 = vmatpush1.msra.mxu0 0.0
        %471 = vmatprep.subr.mxu0 0.0
        %472 = vmatpush1.msra.mxu0 0.0
        %473 = vmatprep.subr.mxu0 0.0
        %474 = vmatpush1.msra.mxu0 0.0
        %475 = vmatprep.subr.mxu0 0.0
        %476 = vmatpush1.msra.mxu0 0.0
        %477 = vmatprep.subr.mxu0 0.0
        %478 = vmatpush1.msra.mxu0 0.0
        %479 = vmatprep.subr.mxu0 0.0
        %480 = vmatpush1.msra.mxu0 0.0
        %481 = vmatprep.mubr.f32.mxu0 0.0
        %482 = vmatmul.mubr.f32.gmra.mrb[0].mxu0 %v405
        %v483 = vpop.f32.mrb[0].mxu0
        %v484 = vadd.f32 %v388, %v483
        %v485 = vpop.f32.mrb[0].mxu0
        %v486 = vadd.f32 %v390, %v485
        %487 = vmatprep.mubr.f32.mxu0 0.0
        %488 = vmatmul.mubr.f32.gmra.mrb[0].mxu0 %v408
        %v489 = vpop.f32.mrb[0].mxu0
        %v490 = vadd.f32 %v394, %v489
        %v491 = vpop.f32.mrb[0].mxu0
        %v492 = vadd.f32 %v396, %v491
        %493 = vmatprep.mubr.f32.mxu0 0.0
        %494 = vmatmul.mubr.f32.gmra.mrb[0].mxu0 %v411
        %v495 = vpop.f32.mrb[0].mxu0
        %v496 = vadd.f32 %v400, %v495
        %v497 = vpop.f32.mrb[0].mxu0
        %v498 = vadd.f32 %v402, %v497
        %499 = vdwg.mxu0
        %s500 = scalar_lea.vmem %s2, 48
        %v501 = vld [vmem:[%s500] sm:$0xff]
        %v502 = vld [vmem:[%s500 + $0x8] sm:$0xff]
        %v503 = vld [vmem:[%s500 + $0x10] sm:$0xff]
        %504 = vrot.lane.b32.xlu0 %v284, 126
        %v505 = vpop.permute.xlu0 %504
        %506 = vrot.lane.b32.xlu0 %v287, 126
        %v507 = vpop.permute.xlu0 %506
        %508 = vrot.lane.b32.xlu0 %v285, 126
        %v509 = vpop.permute.xlu0 %508
        %vm510 = vcmask 1031168
        %v511 = vsel %vm510, %v505, %v507
        %v512 = vsel %vm510, %v507, %v509
        %v514 = vsel %vm306, %v501, 0
        %v517 = vsel %vm306, %v502, 0
        %v520 = vsel %vm306, %v503, 0
        %v522 = vsel %vm316, %v511, 0
        %v524 = vsel %vm316, %v512, 0
        %526 = vmatprep.subr.mxu0 %v524
        %527 = vmatpush1.msra.mxu0 %v522
        %528 = vmatprep.subr.mxu0 0.0
        %529 = vmatpush1.msra.mxu0 0.0
        %530 = vmatprep.subr.mxu0 0.0
        %531 = vmatpush1.msra.mxu0 0.0
        %532 = vmatprep.subr.mxu0 0.0
        %533 = vmatpush1.msra.mxu0 0.0
        %534 = vmatprep.subr.mxu0 0.0
        %535 = vmatpush1.msra.mxu0 0.0
        %536 = vmatprep.subr.mxu0 0.0
        %537 = vmatpush1.msra.mxu0 0.0
        %538 = vmatprep.subr.mxu0 0.0
        %539 = vmatpush1.msra.mxu0 0.0
        %540 = vmatprep.subr.mxu0 0.0
        %541 = vmatpush1.msra.mxu0 0.0
        %542 = vmatprep.subr.mxu0 0.0
        %543 = vmatpush1.msra.mxu0 0.0
        %544 = vmatprep.subr.mxu0 0.0
        %545 = vmatpush1.msra.mxu0 0.0
        %546 = vmatprep.subr.mxu0 0.0
        %547 = vmatpush1.msra.mxu0 0.0
        %548 = vmatprep.subr.mxu0 0.0
        %549 = vmatpush1.msra.mxu0 0.0
        %550 = vmatprep.subr.mxu0 0.0
        %551 = vmatpush1.msra.mxu0 0.0
        %552 = vmatprep.subr.mxu0 0.0
        %553 = vmatpush1.msra.mxu0 0.0
        %554 = vmatprep.subr.mxu0 0.0
        %555 = vmatpush1.msra.mxu0 0.0
        %556 = vmatprep.subr.mxu0 0.0
        %557 = vmatpush1.msra.mxu0 0.0
        %558 = vmatprep.subr.mxu0 0.0
        %559 = vmatpush1.msra.mxu0 0.0
        %560 = vmatprep.subr.mxu0 0.0
        %561 = vmatpush1.msra.mxu0 0.0
        %562 = vmatprep.subr.mxu0 0.0
        %563 = vmatpush1.msra.mxu0 0.0
        %564 = vmatprep.subr.mxu0 0.0
        %565 = vmatpush1.msra.mxu0 0.0
        %566 = vmatprep.subr.mxu0 0.0
        %567 = vmatpush1.msra.mxu0 0.0
        %568 = vmatprep.subr.mxu0 0.0
        %569 = vmatpush1.msra.mxu0 0.0
        %570 = vmatprep.subr.mxu0 0.0
        %571 = vmatpush1.msra.mxu0 0.0
        %572 = vmatprep.subr.mxu0 0.0
        %573 = vmatpush1.msra.mxu0 0.0
        %574 = vmatprep.subr.mxu0 0.0
        %575 = vmatpush1.msra.mxu0 0.0
        %576 = vmatprep.subr.mxu0 0.0
        %577 = vmatpush1.msra.mxu0 0.0
        %578 = vmatprep.subr.mxu0 0.0
        %579 = vmatpush1.msra.mxu0 0.0
        %580 = vmatprep.subr.mxu0 0.0
        %581 = vmatpush1.msra.mxu0 0.0
        %582 = vmatprep.subr.mxu0 0.0
        %583 = vmatpush1.msra.mxu0 0.0
        %584 = vmatprep.subr.mxu0 0.0
        %585 = vmatpush1.msra.mxu0 0.0
        %586 = vmatprep.subr.mxu0 0.0
        %587 = vmatpush1.msra.mxu0 0.0
        %588 = vmatprep.subr.mxu0 0.0
        %589 = vmatpush1.msra.mxu0 0.0
        %590 = vmatprep.mubr.f32.mxu0 0.0
        %591 = vmatmul.mubr.f32.gmra.mrb[0].mxu0 %v514
        %v592 = vpop.f32.mrb[0].mxu0
        %v593 = vadd.f32 0.0, %v592
        %v594 = vpop.f32.mrb[0].mxu0
        %v595 = vadd.f32 0.0, %v594
        %596 = vmatprep.mubr.f32.mxu0 0.0
        %597 = vmatmul.mubr.f32.gmra.mrb[0].mxu0 %v517
        %v598 = vpop.f32.mrb[0].mxu0
        %v599 = vadd.f32 0.0, %v598
        %v600 = vpop.f32.mrb[0].mxu0
        %v601 = vadd.f32 0.0, %v600
        %602 = vmatprep.mubr.f32.mxu0 0.0
        %603 = vmatmul.mubr.f32.gmra.mrb[0].mxu0 %v520
        %v604 = vpop.f32.mrb[0].mxu0
        %v605 = vadd.f32 0.0, %v604
        %v606 = vpop.f32.mrb[0].mxu0
        %v607 = vadd.f32 0.0, %v606
        %608 = vdwg.mxu0
        %v609 = vadd.f32 %v484, %v593
        %v610 = vadd.f32 %v486, %v595
        %v611 = vadd.f32 %v490, %v599
        %v612 = vadd.f32 %v492, %v601
        %v613 = vadd.f32 %v496, %v605
        %v614 = vadd.f32 %v498, %v607
        %s615 = scalar_lea.vmem %s2, 72
        %v616 = vld [vmem:[%s615] sm:$0xff]
        %v617 = vld [vmem:[%s615 + $0x8] sm:$0xff]
        %v618 = vld [vmem:[%s615 + $0x10] sm:$0xff]
        %619 = vrot.lane.b32.xlu0 %v284, 125
        %v620 = vpop.permute.xlu0 %619
        %621 = vrot.lane.b32.xlu0 %v287, 125
        %v622 = vpop.permute.xlu0 %621
        %623 = vrot.lane.b32.xlu0 %v285, 125
        %v624 = vpop.permute.xlu0 %623
        %vm625 = vcmask 1022976
        %v626 = vsel %vm625, %v620, %v622
        %v627 = vsel %vm625, %v622, %v624
        %v629 = vsel %vm306, %v616, 0
        %v632 = vsel %vm306, %v617, 0
        %v635 = vsel %vm306, %v618, 0
        %v637 = vsel %vm316, %v626, 0
        %v639 = vsel %vm316, %v627, 0
        %641 = vmatprep.subr.mxu0 %v639
        %642 = vmatpush1.msra.mxu0 %v637
        %643 = vmatprep.subr.mxu0 0.0
        %644 = vmatpush1.msra.mxu0 0.0
        %645 = vmatprep.subr.mxu0 0.0
        %646 = vmatpush1.msra.mxu0 0.0
        %647 = vmatprep.subr.mxu0 0.0
        %648 = vmatpush1.msra.mxu0 0.0
        %649 = vmatprep.subr.mxu0 0.0
        %650 = vmatpush1.msra.mxu0 0.0
        %651 = vmatprep.subr.mxu0 0.0
        %652 = vmatpush1.msra.mxu0 0.0
        %653 = vmatprep.subr.mxu0 0.0
        %654 = vmatpush1.msra.mxu0 0.0
        %655 = vmatprep.subr.mxu0 0.0
        %656 = vmatpush1.msra.mxu0 0.0
        %657 = vmatprep.subr.mxu0 0.0
        %658 = vmatpush1.msra.mxu0 0.0
        %659 = vmatprep.subr.mxu0 0.0
        %660 = vmatpush1.msra.mxu0 0.0
        %661 = vmatprep.subr.mxu0 0.0
        %662 = vmatpush1.msra.mxu0 0.0
        %663 = vmatprep.subr.mxu0 0.0
        %664 = vmatpush1.msra.mxu0 0.0
        %665 = vmatprep.subr.mxu0 0.0
        %666 = vmatpush1.msra.mxu0 0.0
        %667 = vmatprep.subr.mxu0 0.0
        %668 = vmatpush1.msra.mxu0 0.0
        %669 = vmatprep.subr.mxu0 0.0
        %670 = vmatpush1.msra.mxu0 0.0
        %671 = vmatprep.subr.mxu0 0.0
        %672 = vmatpush1.msra.mxu0 0.0
        %673 = vmatprep.subr.mxu0 0.0
        %674 = vmatpush1.msra.mxu0 0.0
        %675 = vmatprep.subr.mxu0 0.0
        %676 = vmatpush1.msra.mxu0 0.0
        %677 = vmatprep.subr.mxu0 0.0
        %678 = vmatpush1.msra.mxu0 0.0
        %679 = vmatprep.subr.mxu0 0.0
        %680 = vmatpush1.msra.mxu0 0.0
        %681 = vmatprep.subr.mxu0 0.0
        %682 = vmatpush1.msra.mxu0 0.0
        %683 = vmatprep.subr.mxu0 0.0
        %684 = vmatpush1.msra.mxu0 0.0
        %685 = vmatprep.subr.mxu0 0.0
        %686 = vmatpush1.msra.mxu0 0.0
        %687 = vmatprep.subr.mxu0 0.0
        %688 = vmatpush1.msra.mxu0 0.0
        %689 = vmatprep.subr.mxu0 0.0
        %690 = vmatpush1.msra.mxu0 0.0
        %691 = vmatprep.subr.mxu0 0.0
        %692 = vmatpush1.msra.mxu0 0.0
        %693 = vmatprep.subr.mxu0 0.0
        %694 = vmatpush1.msra.mxu0 0.0
        %695 = vmatprep.subr.mxu0 0.0
        %696 = vmatpush1.msra.mxu0 0.0
        %697 = vmatprep.subr.mxu0 0.0
        %698 = vmatpush1.msra.mxu0 0.0
        %699 = vmatprep.subr.mxu0 0.0
        %700 = vmatpush1.msra.mxu0 0.0
        %701 = vmatprep.subr.mxu0 0.0
        %702 = vmatpush1.msra.mxu0 0.0
        %703 = vmatprep.subr.mxu0 0.0
        %704 = vmatpush1.msra.mxu0 0.0
        %705 = vmatprep.mubr.f32.mxu0 0.0
        %706 = vmatmul.mubr.f32.gmra.mrb[0].mxu0 %v629
        %v707 = vpop.f32.mrb[0].mxu0
        %v708 = vadd.f32 0.0, %v707
        %v709 = vpop.f32.mrb[0].mxu0
        %v710 = vadd.f32 0.0, %v709
        %711 = vmatprep.mubr.f32.mxu0 0.0
        %712 = vmatmul.mubr.f32.gmra.mrb[0].mxu0 %v632
        %v713 = vpop.f32.mrb[0].mxu0
        %v714 = vadd.f32 0.0, %v713
        %v715 = vpop.f32.mrb[0].mxu0
        %v716 = vadd.f32 0.0, %v715
        %717 = vmatprep.mubr.f32.mxu0 0.0
        %718 = vmatmul.mubr.f32.gmra.mrb[0].mxu0 %v635
        %v719 = vpop.f32.mrb[0].mxu0
        %v720 = vadd.f32 0.0, %v719
        %v721 = vpop.f32.mrb[0].mxu0
        %v722 = vadd.f32 0.0, %v721
        %723 = vdwg.mxu0
        %v724 = vadd.f32 %v609, %v708
        %v725 = vadd.f32 %v610, %v710
        %v726 = vadd.f32 %v611, %v714
        %v727 = vadd.f32 %v612, %v716
        %v728 = vadd.f32 %v613, %v720
        %v729 = vadd.f32 %v614, %v722
        %s730 = scalar_lea.vmem %s2, 96
        %v731 = vld [vmem:[%s730] sm:$0xff]
        %v732 = vld [vmem:[%s730 + $0x8] sm:$0xff]
        %v733 = vld [vmem:[%s730 + $0x10] sm:$0xff]
        %734 = vrot.lane.b32.xlu0 %v284, 124
        %v735 = vpop.permute.xlu0 %734
        %736 = vrot.lane.b32.xlu0 %v287, 124
        %v737 = vpop.permute.xlu0 %736
        %738 = vrot.lane.b32.xlu0 %v285, 124
        %v739 = vpop.permute.xlu0 %738
        %vm740 = vcmask 1014784
        %v741 = vsel %vm740, %v735, %v737
        %v742 = vsel %vm740, %v737, %v739
        %v744 = vsel %vm306, %v731, 0
        %v747 = vsel %vm306, %v732, 0
        %v750 = vsel %vm306, %v733, 0
        %v752 = vsel %vm316, %v741, 0
        %v754 = vsel %vm316, %v742, 0
        %756 = vmatprep.subr.mxu0 %v754
        %757 = vmatpush1.msra.mxu0 %v752
        %758 = vmatprep.subr.mxu0 0.0
        %759 = vmatpush1.msra.mxu0 0.0
        %760 = vmatprep.subr.mxu0 0.0
        %761 = vmatpush1.msra.mxu0 0.0
        %762 = vmatprep.subr.mxu0 0.0
        %763 = vmatpush1.msra.mxu0 0.0
        %764 = vmatprep.subr.mxu0 0.0
        %765 = vmatpush1.msra.mxu0 0.0
        %766 = vmatprep.subr.mxu0 0.0
        %767 = vmatpush1.msra.mxu0 0.0
        %768 = vmatprep.subr.mxu0 0.0
        %769 = vmatpush1.msra.mxu0 0.0
        %770 = vmatprep.subr.mxu0 0.0
        %771 = vmatpush1.msra.mxu0 0.0
        %772 = vmatprep.subr.mxu0 0.0
        %773 = vmatpush1.msra.mxu0 0.0
        %774 = vmatprep.subr.mxu0 0.0
        %775 = vmatpush1.msra.mxu0 0.0
        %776 = vmatprep.subr.mxu0 0.0
        %777 = vmatpush1.msra.mxu0 0.0
        %778 = vmatprep.subr.mxu0 0.0
        %779 = vmatpush1.msra.mxu0 0.0
        %780 = vmatprep.subr.mxu0 0.0
        %781 = vmatpush1.msra.mxu0 0.0
        %782 = vmatprep.subr.mxu0 0.0
        %783 = vmatpush1.msra.mxu0 0.0
        %784 = vmatprep.subr.mxu0 0.0
        %785 = vmatpush1.msra.mxu0 0.0
        %786 = vmatprep.subr.mxu0 0.0
        %787 = vmatpush1.msra.mxu0 0.0
        %788 = vmatprep.subr.mxu0 0.0
        %789 = vmatpush1.msra.mxu0 0.0
        %790 = vmatprep.subr.mxu0 0.0
        %791 = vmatpush1.msra.mxu0 0.0
        %792 = vmatprep.subr.mxu0 0.0
        %793 = vmatpush1.msra.mxu0 0.0
        %794 = vmatprep.subr.mxu0 0.0
        %795 = vmatpush1.msra.mxu0 0.0
        %796 = vmatprep.subr.mxu0 0.0
        %797 = vmatpush1.msra.mxu0 0.0
        %798 = vmatprep.subr.mxu0 0.0
        %799 = vmatpush1.msra.mxu0 0.0
        %800 = vmatprep.subr.mxu0 0.0
        %801 = vmatpush1.msra.mxu0 0.0
        %802 = vmatprep.subr.mxu0 0.0
        %803 = vmatpush1.msra.mxu0 0.0
        %804 = vmatprep.subr.mxu0 0.0
        %805 = vmatpush1.msra.mxu0 0.0
        %806 = vmatprep.subr.mxu0 0.0
        %807 = vmatpush1.msra.mxu0 0.0
        %808 = vmatprep.subr.mxu0 0.0
        %809 = vmatpush1.msra.mxu0 0.0
        %810 = vmatprep.subr.mxu0 0.0
        %811 = vmatpush1.msra.mxu0 0.0
        %812 = vmatprep.subr.mxu0 0.0
        %813 = vmatpush1.msra.mxu0 0.0
        %814 = vmatprep.subr.mxu0 0.0
        %815 = vmatpush1.msra.mxu0 0.0
        %816 = vmatprep.subr.mxu0 0.0
        %817 = vmatpush1.msra.mxu0 0.0
        %818 = vmatprep.subr.mxu0 0.0
        %819 = vmatpush1.msra.mxu0 0.0
        %820 = vmatprep.mubr.f32.mxu0 0.0
        %821 = vmatmul.mubr.f32.gmra.mrb[0].mxu0 %v744
        %v822 = vpop.f32.mrb[0].mxu0
        %v823 = vadd.f32 0.0, %v822
        %v824 = vpop.f32.mrb[0].mxu0
        %v825 = vadd.f32 0.0, %v824
        %826 = vmatprep.mubr.f32.mxu0 0.0
        %827 = vmatmul.mubr.f32.gmra.mrb[0].mxu0 %v747
        %v828 = vpop.f32.mrb[0].mxu0
        %v829 = vadd.f32 0.0, %v828
        %v830 = vpop.f32.mrb[0].mxu0
        %v831 = vadd.f32 0.0, %v830
        %832 = vmatprep.mubr.f32.mxu0 0.0
        %833 = vmatmul.mubr.f32.gmra.mrb[0].mxu0 %v750
        %v834 = vpop.f32.mrb[0].mxu0
        %v835 = vadd.f32 0.0, %v834
        %v836 = vpop.f32.mrb[0].mxu0
        %v837 = vadd.f32 0.0, %v836
        %838 = vdwg.mxu0
        %v839 = vadd.f32 %v724, %v823
        %v840 = vadd.f32 %v725, %v825
        %v841 = vadd.f32 %v726, %v829
        %v842 = vadd.f32 %v727, %v831
        %v843 = vadd.f32 %v728, %v835
        %v844 = vadd.f32 %v729, %v837
        %s845 = scalar_lea.vmem %s2, 120
        %v846 = vld [vmem:[%s845] sm:$0xff]
        %v847 = vld [vmem:[%s845 + $0x8] sm:$0xff]
        %v848 = vld [vmem:[%s845 + $0x10] sm:$0xff]
        %849 = vrot.lane.b32.xlu0 %v284, 123
        %v850 = vpop.permute.xlu0 %849
        %851 = vrot.lane.b32.xlu0 %v287, 123
        %v852 = vpop.permute.xlu0 %851
        %853 = vrot.lane.b32.xlu0 %v285, 123
        %v854 = vpop.permute.xlu0 %853
        %vm855 = vcmask 1006592
        %v856 = vsel %vm855, %v850, %v852
        %v857 = vsel %vm855, %v852, %v854
        %v859 = vsel %vm306, %v846, 0
        %v862 = vsel %vm306, %v847, 0
        %v865 = vsel %vm306, %v848, 0
        %v867 = vsel %vm316, %v856, 0
        %v869 = vsel %vm316, %v857, 0
        %871 = vmatprep.subr.mxu0 %v869
        %872 = vmatpush1.msra.mxu0 %v867
        %873 = vmatprep.subr.mxu0 0.0
        %874 = vmatpush1.msra.mxu0 0.0
        %875 = vmatprep.subr.mxu0 0.0
        %876 = vmatpush1.msra.mxu0 0.0
        %877 = vmatprep.subr.mxu0 0.0
        %878 = vmatpush1.msra.mxu0 0.0
        %879 = vmatprep.subr.mxu0 0.0
        %880 = vmatpush1.msra.mxu0 0.0
        %881 = vmatprep.subr.mxu0 0.0
        %882 = vmatpush1.msra.mxu0 0.0
        %883 = vmatprep.subr.mxu0 0.0
        %884 = vmatpush1.msra.mxu0 0.0
        %885 = vmatprep.subr.mxu0 0.0
        %886 = vmatpush1.msra.mxu0 0.0
        %887 = vmatprep.subr.mxu0 0.0
        %888 = vmatpush1.msra.mxu0 0.0
        %889 = vmatprep.subr.mxu0 0.0
        %890 = vmatpush1.msra.mxu0 0.0
        %891 = vmatprep.subr.mxu0 0.0
        %892 = vmatpush1.msra.mxu0 0.0
        %893 = vmatprep.subr.mxu0 0.0
        %894 = vmatpush1.msra.mxu0 0.0
        %895 = vmatprep.subr.mxu0 0.0
        %896 = vmatpush1.msra.mxu0 0.0
        %897 = vmatprep.subr.mxu0 0.0
        %898 = vmatpush1.msra.mxu0 0.0
        %899 = vmatprep.subr.mxu0 0.0
        %900 = vmatpush1.msra.mxu0 0.0
        %901 = vmatprep.subr.mxu0 0.0
        %902 = vmatpush1.msra.mxu0 0.0
        %903 = vmatprep.subr.mxu0 0.0
        %904 = vmatpush1.msra.mxu0 0.0
        %905 = vmatprep.subr.mxu0 0.0
        %906 = vmatpush1.msra.mxu0 0.0
        %907 = vmatprep.subr.mxu0 0.0
        %908 = vmatpush1.msra.mxu0 0.0
        %909 = vmatprep.subr.mxu0 0.0
        %910 = vmatpush1.msra.mxu0 0.0
        %911 = vmatprep.subr.mxu0 0.0
        %912 = vmatpush1.msra.mxu0 0.0
        %913 = vmatprep.subr.mxu0 0.0
        %914 = vmatpush1.msra.mxu0 0.0
        %915 = vmatprep.subr.mxu0 0.0
        %916 = vmatpush1.msra.mxu0 0.0
        %917 = vmatprep.subr.mxu0 0.0
        %918 = vmatpush1.msra.mxu0 0.0
        %919 = vmatprep.subr.mxu0 0.0
        %920 = vmatpush1.msra.mxu0 0.0
        %921 = vmatprep.subr.mxu0 0.0
        %922 = vmatpush1.msra.mxu0 0.0
        %923 = vmatprep.subr.mxu0 0.0
        %924 = vmatpush1.msra.mxu0 0.0
        %925 = vmatprep.subr.mxu0 0.0
        %926 = vmatpush1.msra.mxu0 0.0
        %927 = vmatprep.subr.mxu0 0.0
        %928 = vmatpush1.msra.mxu0 0.0
        %929 = vmatprep.subr.mxu0 0.0
        %930 = vmatpush1.msra.mxu0 0.0
        %931 = vmatprep.subr.mxu0 0.0
        %932 = vmatpush1.msra.mxu0 0.0
        %933 = vmatprep.subr.mxu0 0.0
        %934 = vmatpush1.msra.mxu0 0.0
        %935 = vmatprep.mubr.f32.mxu0 0.0
        %936 = vmatmul.mubr.f32.gmra.mrb[0].mxu0 %v859
        %v937 = vpop.f32.mrb[0].mxu0
        %v938 = vadd.f32 0.0, %v937
        %v939 = vpop.f32.mrb[0].mxu0
        %v940 = vadd.f32 0.0, %v939
        %941 = vmatprep.mubr.f32.mxu0 0.0
        %942 = vmatmul.mubr.f32.gmra.mrb[0].mxu0 %v862
        %v943 = vpop.f32.mrb[0].mxu0
        %v944 = vadd.f32 0.0, %v943
        %v945 = vpop.f32.mrb[0].mxu0
        %v946 = vadd.f32 0.0, %v945
        %947 = vmatprep.mubr.f32.mxu0 0.0
        %948 = vmatmul.mubr.f32.gmra.mrb[0].mxu0 %v865
        %v949 = vpop.f32.mrb[0].mxu0
        %v950 = vadd.f32 0.0, %v949
        %v951 = vpop.f32.mrb[0].mxu0
        %v952 = vadd.f32 0.0, %v951
        %953 = vdwg.mxu0
        %v954 = vadd.f32 %v839, %v938
        %v955 = vadd.f32 %v840, %v940
        %v956 = vadd.f32 %v841, %v944
        %v957 = vadd.f32 %v842, %v946
        %v958 = vadd.f32 %v843, %v950
        %v959 = vadd.f32 %v844, %v952
        %s960 = scalar_lea.vmem %s2, 144
        %v961 = vld [vmem:[%s960] sm:$0xff]
        %v962 = vld [vmem:[%s960 + $0x8] sm:$0xff]
        %v963 = vld [vmem:[%s960 + $0x10] sm:$0xff]
        %964 = vrot.lane.b32.xlu0 %v284, 122
        %v965 = vpop.permute.xlu0 %964
        %966 = vrot.lane.b32.xlu0 %v287, 122
        %v967 = vpop.permute.xlu0 %966
        %968 = vrot.lane.b32.xlu0 %v285, 122
        %v969 = vpop.permute.xlu0 %968
        %vm970 = vcmask 998400
        %v971 = vsel %vm970, %v965, %v967
        %v972 = vsel %vm970, %v967, %v969
        %v974 = vsel %vm306, %v961, 0
        %v977 = vsel %vm306, %v962, 0
        %v980 = vsel %vm306, %v963, 0
        %v982 = vsel %vm316, %v971, 0
        %v984 = vsel %vm316, %v972, 0
        %986 = vmatprep.subr.mxu0 %v984
        %987 = vmatpush1.msra.mxu0 %v982
        %988 = vmatprep.subr.mxu0 0.0
        %989 = vmatpush1.msra.mxu0 0.0
        %990 = vmatprep.subr.mxu0 0.0
        %991 = vmatpush1.msra.mxu0 0.0
        %992 = vmatprep.subr.mxu0 0.0
        %993 = vmatpush1.msra.mxu0 0.0
        %994 = vmatprep.subr.mxu0 0.0
        %995 = vmatpush1.msra.mxu0 0.0
        %996 = vmatprep.subr.mxu0 0.0
        %997 = vmatpush1.msra.mxu0 0.0
        %998 = vmatprep.subr.mxu0 0.0
        %999 = vmatpush1.msra.mxu0 0.0
        %1000 = vmatprep.subr.mxu0 0.0
        %1001 = vmatpush1.msra.mxu0 0.0
        %1002 = vmatprep.subr.mxu0 0.0
        %1003 = vmatpush1.msra.mxu0 0.0
        %1004 = vmatprep.subr.mxu0 0.0
        %1005 = vmatpush1.msra.mxu0 0.0
        %1006 = vmatprep.subr.mxu0 0.0
        %1007 = vmatpush1.msra.mxu0 0.0
        %1008 = vmatprep.subr.mxu0 0.0
        %1009 = vmatpush1.msra.mxu0 0.0
        %1010 = vmatprep.subr.mxu0 0.0
        %1011 = vmatpush1.msra.mxu0 0.0
        %1012 = vmatprep.subr.mxu0 0.0
        %1013 = vmatpush1.msra.mxu0 0.0
        %1014 = vmatprep.subr.mxu0 0.0
        %1015 = vmatpush1.msra.mxu0 0.0
        %1016 = vmatprep.subr.mxu0 0.0
        %1017 = vmatpush1.msra.mxu0 0.0
        %1018 = vmatprep.subr.mxu0 0.0
        %1019 = vmatpush1.msra.mxu0 0.0
        %1020 = vmatprep.subr.mxu0 0.0
        %1021 = vmatpush1.msra.mxu0 0.0
        %1022 = vmatprep.subr.mxu0 0.0
        %1023 = vmatpush1.msra.mxu0 0.0
        %1024 = vmatprep.subr.mxu0 0.0
        %1025 = vmatpush1.msra.mxu0 0.0
        %1026 = vmatprep.subr.mxu0 0.0
        %1027 = vmatpush1.msra.mxu0 0.0
        %1028 = vmatprep.subr.mxu0 0.0
        %1029 = vmatpush1.msra.mxu0 0.0
        %1030 = vmatprep.subr.mxu0 0.0
        %1031 = vmatpush1.msra.mxu0 0.0
        %1032 = vmatprep.subr.mxu0 0.0
        %1033 = vmatpush1.msra.mxu0 0.0
        %1034 = vmatprep.subr.mxu0 0.0
        %1035 = vmatpush1.msra.mxu0 0.0
        %1036 = vmatprep.subr.mxu0 0.0
        %1037 = vmatpush1.msra.mxu0 0.0
        %1038 = vmatprep.subr.mxu0 0.0
        %1039 = vmatpush1.msra.mxu0 0.0
        %1040 = vmatprep.subr.mxu0 0.0
        %1041 = vmatpush1.msra.mxu0 0.0
        %1042 = vmatprep.subr.mxu0 0.0
        %1043 = vmatpush1.msra.mxu0 0.0
        %1044 = vmatprep.subr.mxu0 0.0
        %1045 = vmatpush1.msra.mxu0 0.0
        %1046 = vmatprep.subr.mxu0 0.0
        %1047 = vmatpush1.msra.mxu0 0.0
        %1048 = vmatprep.subr.mxu0 0.0
        %1049 = vmatpush1.msra.mxu0 0.0
        %1050 = vmatprep.mubr.f32.mxu0 0.0
        %1051 = vmatmul.mubr.f32.gmra.mrb[0].mxu0 %v974
        %v1052 = vpop.f32.mrb[0].mxu0
        %v1053 = vadd.f32 0.0, %v1052
        %v1054 = vpop.f32.mrb[0].mxu0
        %v1055 = vadd.f32 0.0, %v1054
        %1056 = vmatprep.mubr.f32.mxu0 0.0
        %1057 = vmatmul.mubr.f32.gmra.mrb[0].mxu0 %v977
        %v1058 = vpop.f32.mrb[0].mxu0
        %v1059 = vadd.f32 0.0, %v1058
        %v1060 = vpop.f32.mrb[0].mxu0
        %v1061 = vadd.f32 0.0, %v1060
        %1062 = vmatprep.mubr.f32.mxu0 0.0
        %1063 = vmatmul.mubr.f32.gmra.mrb[0].mxu0 %v980
        %v1064 = vpop.f32.mrb[0].mxu0
        %v1065 = vadd.f32 0.0, %v1064
        %v1066 = vpop.f32.mrb[0].mxu0
        %v1067 = vadd.f32 0.0, %v1066
        %1068 = vdwg.mxu0
        %v1069 = vadd.f32 %v954, %v1053
        %v1070 = vadd.f32 %v955, %v1055
        %v1071 = vadd.f32 %v956, %v1059
        %v1072 = vadd.f32 %v957, %v1061
        %v1073 = vadd.f32 %v958, %v1065
        %v1074 = vadd.f32 %v959, %v1067
        %v1075 = vadd.f32 %v1069, 0.0
        %v1076 = vadd.f32 %v1070, 0.0
        %v1077 = vadd.f32 %v1071, 0.0
        %v1078 = vadd.f32 %v1072, 0.0
        %v1079 = vadd.f32 %v1073, 0.0
        %v1080 = vadd.f32 %v1074, 0.0
        %s1081 = scalar_lea.vmem %s2, 168
        %v1082 = vld [vmem:[%s1081] sm:$0xff]
        %v1083 = vld [vmem:[%s1081 + $0x8] sm:$0xff]
        %v1084 = vld [vmem:[%s1081 + $0x10] sm:$0xff]
        %s1085 = scalar_lea.vmem %s2, 192
        %v1086 = vld [vmem:[%s1085] sm:$0xff]
        %v1087 = vld [vmem:[%s1085 + $0x8] sm:$0xff]
        %v1088 = vld [vmem:[%s1085 + $0x10] sm:$0xff]
        %1089 = vrot.lane.b32.xlu0 %v284, 105
        %v1090 = vpop.permute.xlu0 %1089
        %1091 = vrot.lane.b32.xlu0 %v287, 105
        %v1092 = vpop.permute.xlu0 %1091
        %1093 = vrot.lane.b32.xlu0 %v285, 105
        %v1094 = vpop.permute.xlu0 %1093
        %vm1095 = vcmask 859136
        %v1096 = vsel %vm1095, %v1090, %v1092
        %v1097 = vsel %vm1095, %v1092, %v1094
        %v1099 = vsel %vm306, %v1086, 0
        %v1102 = vsel %vm306, %v1087, 0
        %v1105 = vsel %vm306, %v1088, 0
        %v1107 = vsel %vm316, %v1096, 0
        %v1109 = vsel %vm316, %v1097, 0
        %1111 = vmatprep.subr.mxu0 %v1109
        %1112 = vmatpush1.msra.mxu0 %v1107
        %1113 = vmatprep.subr.mxu0 0.0
        %1114 = vmatpush1.msra.mxu0 0.0
        %1115 = vmatprep.subr.mxu0 0.0
        %1116 = vmatpush1.msra.mxu0 0.0
        %1117 = vmatprep.subr.mxu0 0.0
        %1118 = vmatpush1.msra.mxu0 0.0
        %1119 = vmatprep.subr.mxu0 0.0
        %1120 = vmatpush1.msra.mxu0 0.0
        %1121 = vmatprep.subr.mxu0 0.0
        %1122 = vmatpush1.msra.mxu0 0.0
        %1123 = vmatprep.subr.mxu0 0.0
        %1124 = vmatpush1.msra.mxu0 0.0
        %1125 = vmatprep.subr.mxu0 0.0
        %1126 = vmatpush1.msra.mxu0 0.0
        %1127 = vmatprep.subr.mxu0 0.0
        %1128 = vmatpush1.msra.mxu0 0.0
        %1129 = vmatprep.subr.mxu0 0.0
        %1130 = vmatpush1.msra.mxu0 0.0
        %1131 = vmatprep.subr.mxu0 0.0
        %1132 = vmatpush1.msra.mxu0 0.0
        %1133 = vmatprep.subr.mxu0 0.0
        %1134 = vmatpush1.msra.mxu0 0.0
        %1135 = vmatprep.subr.mxu0 0.0
        %1136 = vmatpush1.msra.mxu0 0.0
        %1137 = vmatprep.subr.mxu0 0.0
        %1138 = vmatpush1.msra.mxu0 0.0
        %1139 = vmatprep.subr.mxu0 0.0
        %1140 = vmatpush1.msra.mxu0 0.0
        %1141 = vmatprep.subr.mxu0 0.0
        %1142 = vmatpush1.msra.mxu0 0.0
        %1143 = vmatprep.subr.mxu0 0.0
        %1144 = vmatpush1.msra.mxu0 0.0
        %1145 = vmatprep.subr.mxu0 0.0
        %1146 = vmatpush1.msra.mxu0 0.0
        %1147 = vmatprep.subr.mxu0 0.0
        %1148 = vmatpush1.msra.mxu0 0.0
        %1149 = vmatprep.subr.mxu0 0.0
        %1150 = vmatpush1.msra.mxu0 0.0
        %1151 = vmatprep.subr.mxu0 0.0
        %1152 = vmatpush1.msra.mxu0 0.0
        %1153 = vmatprep.subr.mxu0 0.0
        %1154 = vmatpush1.msra.mxu0 0.0
        %1155 = vmatprep.subr.mxu0 0.0
        %1156 = vmatpush1.msra.mxu0 0.0
        %1157 = vmatprep.subr.mxu0 0.0
        %1158 = vmatpush1.msra.mxu0 0.0
        %1159 = vmatprep.subr.mxu0 0.0
        %1160 = vmatpush1.msra.mxu0 0.0
        %1161 = vmatprep.subr.mxu0 0.0
        %1162 = vmatpush1.msra.mxu0 0.0
        %1163 = vmatprep.subr.mxu0 0.0
        %1164 = vmatpush1.msra.mxu0 0.0
        %1165 = vmatprep.subr.mxu0 0.0
        %1166 = vmatpush1.msra.mxu0 0.0
        %1167 = vmatprep.subr.mxu0 0.0
        %1168 = vmatpush1.msra.mxu0 0.0
        %1169 = vmatprep.subr.mxu0 0.0
        %1170 = vmatpush1.msra.mxu0 0.0
        %1171 = vmatprep.subr.mxu0 0.0
        %1172 = vmatpush1.msra.mxu0 0.0
        %1173 = vmatprep.subr.mxu0 0.0
        %1174 = vmatpush1.msra.mxu0 0.0
        %1175 = vmatprep.mubr.f32.mxu0 0.0
        %1176 = vmatmul.mubr.f32.gmra.mrb[0].mxu0 %v1099
        %v1177 = vpop.f32.mrb[0].mxu0
        %v1178 = vadd.f32 0.0, %v1177
        %v1179 = vpop.f32.mrb[0].mxu0
        %v1180 = vadd.f32 0.0, %v1179
        %1181 = vmatprep.mubr.f32.mxu0 0.0
        %1182 = vmatmul.mubr.f32.gmra.mrb[0].mxu0 %v1102
        %v1183 = vpop.f32.mrb[0].mxu0
        %v1184 = vadd.f32 0.0, %v1183
        %v1185 = vpop.f32.mrb[0].mxu0
        %v1186 = vadd.f32 0.0, %v1185
        %1187 = vmatprep.mubr.f32.mxu0 0.0
        %1188 = vmatmul.mubr.f32.gmra.mrb[0].mxu0 %v1105
        %v1189 = vpop.f32.mrb[0].mxu0
        %v1190 = vadd.f32 0.0, %v1189
        %v1191 = vpop.f32.mrb[0].mxu0
        %v1192 = vadd.f32 0.0, %v1191
        %1193 = vdwg.mxu0
        %1194 = vrot.lane.b32.xlu0 %v284, 106
        %v1195 = vpop.permute.xlu0 %1194
        %1196 = vrot.lane.b32.xlu0 %v287, 106
        %v1197 = vpop.permute.xlu0 %1196
        %1198 = vrot.lane.b32.xlu0 %v285, 106
        %v1199 = vpop.permute.xlu0 %1198
        %vm1200 = vcmask 867328
        %v1201 = vsel %vm1200, %v1195, %v1197
        %v1202 = vsel %vm1200, %v1197, %v1199
        %v1204 = vsel %vm306, %v1082, 0
        %v1207 = vsel %vm306, %v1083, 0
        %v1210 = vsel %vm306, %v1084, 0
        %v1212 = vsel %vm316, %v1201, 0
        %v1214 = vsel %vm316, %v1202, 0
        %1216 = vmatprep.subr.mxu0 %v1214
        %1217 = vmatpush1.msra.mxu0 %v1212
        %1218 = vmatprep.subr.mxu0 0.0
        %1219 = vmatpush1.msra.mxu0 0.0
        %1220 = vmatprep.subr.mxu0 0.0
        %1221 = vmatpush1.msra.mxu0 0.0
        %1222 = vmatprep.subr.mxu0 0.0
        %1223 = vmatpush1.msra.mxu0 0.0
        %1224 = vmatprep.subr.mxu0 0.0
        %1225 = vmatpush1.msra.mxu0 0.0
        %1226 = vmatprep.subr.mxu0 0.0
        %1227 = vmatpush1.msra.mxu0 0.0
        %1228 = vmatprep.subr.mxu0 0.0
        %1229 = vmatpush1.msra.mxu0 0.0
        %1230 = vmatprep.subr.mxu0 0.0
        %1231 = vmatpush1.msra.mxu0 0.0
        %1232 = vmatprep.subr.mxu0 0.0
        %1233 = vmatpush1.msra.mxu0 0.0
        %1234 = vmatprep.subr.mxu0 0.0
        %1235 = vmatpush1.msra.mxu0 0.0
        %1236 = vmatprep.subr.mxu0 0.0
        %1237 = vmatpush1.msra.mxu0 0.0
        %1238 = vmatprep.subr.mxu0 0.0
        %1239 = vmatpush1.msra.mxu0 0.0
        %1240 = vmatprep.subr.mxu0 0.0
        %1241 = vmatpush1.msra.mxu0 0.0
        %1242 = vmatprep.subr.mxu0 0.0
        %1243 = vmatpush1.msra.mxu0 0.0
        %1244 = vmatprep.subr.mxu0 0.0
        %1245 = vmatpush1.msra.mxu0 0.0
        %1246 = vmatprep.subr.mxu0 0.0
        %1247 = vmatpush1.msra.mxu0 0.0
        %1248 = vmatprep.subr.mxu0 0.0
        %1249 = vmatpush1.msra.mxu0 0.0
        %1250 = vmatprep.subr.mxu0 0.0
        %1251 = vmatpush1.msra.mxu0 0.0
        %1252 = vmatprep.subr.mxu0 0.0
        %1253 = vmatpush1.msra.mxu0 0.0
        %1254 = vmatprep.subr.mxu0 0.0
        %1255 = vmatpush1.msra.mxu0 0.0
        %1256 = vmatprep.subr.mxu0 0.0
        %1257 = vmatpush1.msra.mxu0 0.0
        %1258 = vmatprep.subr.mxu0 0.0
        %1259 = vmatpush1.msra.mxu0 0.0
        %1260 = vmatprep.subr.mxu0 0.0
        %1261 = vmatpush1.msra.mxu0 0.0
        %1262 = vmatprep.subr.mxu0 0.0
        %1263 = vmatpush1.msra.mxu0 0.0
        %1264 = vmatprep.subr.mxu0 0.0
        %1265 = vmatpush1.msra.mxu0 0.0
        %1266 = vmatprep.subr.mxu0 0.0
        %1267 = vmatpush1.msra.mxu0 0.0
        %1268 = vmatprep.subr.mxu0 0.0
        %1269 = vmatpush1.msra.mxu0 0.0
        %1270 = vmatprep.subr.mxu0 0.0
        %1271 = vmatpush1.msra.mxu0 0.0
        %1272 = vmatprep.subr.mxu0 0.0
        %1273 = vmatpush1.msra.mxu0 0.0
        %1274 = vmatprep.subr.mxu0 0.0
        %1275 = vmatpush1.msra.mxu0 0.0
        %1276 = vmatprep.subr.mxu0 0.0
        %1277 = vmatpush1.msra.mxu0 0.0
        %1278 = vmatprep.subr.mxu0 0.0
        %1279 = vmatpush1.msra.mxu0 0.0
        %1280 = vmatprep.mubr.f32.mxu0 0.0
        %1281 = vmatmul.mubr.f32.gmra.mrb[0].mxu0 %v1204
        %v1282 = vpop.f32.mrb[0].mxu0
        %v1283 = vadd.f32 %v1178, %v1282
        %v1284 = vpop.f32.mrb[0].mxu0
        %v1285 = vadd.f32 %v1180, %v1284
        %1286 = vmatprep.mubr.f32.mxu0 0.0
        %1287 = vmatmul.mubr.f32.gmra.mrb[0].mxu0 %v1207
        %v1288 = vpop.f32.mrb[0].mxu0
        %v1289 = vadd.f32 %v1184, %v1288
        %v1290 = vpop.f32.mrb[0].mxu0
        %v1291 = vadd.f32 %v1186, %v1290
        %1292 = vmatprep.mubr.f32.mxu0 0.0
        %1293 = vmatmul.mubr.f32.gmra.mrb[0].mxu0 %v1210
        %v1294 = vpop.f32.mrb[0].mxu0
        %v1295 = vadd.f32 %v1190, %v1294
        %v1296 = vpop.f32.mrb[0].mxu0
        %v1297 = vadd.f32 %v1192, %v1296
        %1298 = vdwg.mxu0
        %s1299 = scalar_lea.vmem %s2, 216
        %v1300 = vld [vmem:[%s1299] sm:$0xff]
        %v1301 = vld [vmem:[%s1299 + $0x8] sm:$0xff]
        %v1302 = vld [vmem:[%s1299 + $0x10] sm:$0xff]
        %1303 = vrot.lane.b32.xlu0 %v284, 104
        %v1304 = vpop.permute.xlu0 %1303
        %1305 = vrot.lane.b32.xlu0 %v287, 104
        %v1306 = vpop.permute.xlu0 %1305
        %1307 = vrot.lane.b32.xlu0 %v285, 104
        %v1308 = vpop.permute.xlu0 %1307
        %vm1309 = vcmask 850944
        %v1310 = vsel %vm1309, %v1304, %v1306
        %v1311 = vsel %vm1309, %v1306, %v1308
        %v1313 = vsel %vm306, %v1300, 0
        %v1316 = vsel %vm306, %v1301, 0
        %v1319 = vsel %vm306, %v1302, 0
        %v1321 = vsel %vm316, %v1310, 0
        %v1323 = vsel %vm316, %v1311, 0
        %1325 = vmatprep.subr.mxu0 %v1323
        %1326 = vmatpush1.msra.mxu0 %v1321
        %1327 = vmatprep.subr.mxu0 0.0
        %1328 = vmatpush1.msra.mxu0 0.0
        %1329 = vmatprep.subr.mxu0 0.0
        %1330 = vmatpush1.msra.mxu0 0.0
        %1331 = vmatprep.subr.mxu0 0.0
        %1332 = vmatpush1.msra.mxu0 0.0
        %1333 = vmatprep.subr.mxu0 0.0
        %1334 = vmatpush1.msra.mxu0 0.0
        %1335 = vmatprep.subr.mxu0 0.0
        %1336 = vmatpush1.msra.mxu0 0.0
        %1337 = vmatprep.subr.mxu0 0.0
        %1338 = vmatpush1.msra.mxu0 0.0
        %1339 = vmatprep.subr.mxu0 0.0
        %1340 = vmatpush1.msra.mxu0 0.0
        %1341 = vmatprep.subr.mxu0 0.0
        %1342 = vmatpush1.msra.mxu0 0.0
        %1343 = vmatprep.subr.mxu0 0.0
        %1344 = vmatpush1.msra.mxu0 0.0
        %1345 = vmatprep.subr.mxu0 0.0
        %1346 = vmatpush1.msra.mxu0 0.0
        %1347 = vmatprep.subr.mxu0 0.0
        %1348 = vmatpush1.msra.mxu0 0.0
        %1349 = vmatprep.subr.mxu0 0.0
        %1350 = vmatpush1.msra.mxu0 0.0
        %1351 = vmatprep.subr.mxu0 0.0
        %1352 = vmatpush1.msra.mxu0 0.0
        %1353 = vmatprep.subr.mxu0 0.0
        %1354 = vmatpush1.msra.mxu0 0.0
        %1355 = vmatprep.subr.mxu0 0.0
        %1356 = vmatpush1.msra.mxu0 0.0
        %1357 = vmatprep.subr.mxu0 0.0
        %1358 = vmatpush1.msra.mxu0 0.0
        %1359 = vmatprep.subr.mxu0 0.0
        %1360 = vmatpush1.msra.mxu0 0.0
        %1361 = vmatprep.subr.mxu0 0.0
        %1362 = vmatpush1.msra.mxu0 0.0
        %1363 = vmatprep.subr.mxu0 0.0
        %1364 = vmatpush1.msra.mxu0 0.0
        %1365 = vmatprep.subr.mxu0 0.0
        %1366 = vmatpush1.msra.mxu0 0.0
        %1367 = vmatprep.subr.mxu0 0.0
        %1368 = vmatpush1.msra.mxu0 0.0
        %1369 = vmatprep.subr.mxu0 0.0
        %1370 = vmatpush1.msra.mxu0 0.0
        %1371 = vmatprep.subr.mxu0 0.0
        %1372 = vmatpush1.msra.mxu0 0.0
        %1373 = vmatprep.subr.mxu0 0.0
        %1374 = vmatpush1.msra.mxu0 0.0
        %1375 = vmatprep.subr.mxu0 0.0
        %1376 = vmatpush1.msra.mxu0 0.0
        %1377 = vmatprep.subr.mxu0 0.0
        %1378 = vmatpush1.msra.mxu0 0.0
        %1379 = vmatprep.subr.mxu0 0.0
        %1380 = vmatpush1.msra.mxu0 0.0
        %1381 = vmatprep.subr.mxu0 0.0
        %1382 = vmatpush1.msra.mxu0 0.0
        %1383 = vmatprep.subr.mxu0 0.0
        %1384 = vmatpush1.msra.mxu0 0.0
        %1385 = vmatprep.subr.mxu0 0.0
        %1386 = vmatpush1.msra.mxu0 0.0
        %1387 = vmatprep.subr.mxu0 0.0
        %1388 = vmatpush1.msra.mxu0 0.0
        %1389 = vmatprep.mubr.f32.mxu0 0.0
        %1390 = vmatmul.mubr.f32.gmra.mrb[0].mxu0 %v1313
        %v1391 = vpop.f32.mrb[0].mxu0
        %v1392 = vadd.f32 0.0, %v1391
        %v1393 = vpop.f32.mrb[0].mxu0
        %v1394 = vadd.f32 0.0, %v1393
        %1395 = vmatprep.mubr.f32.mxu0 0.0
        %1396 = vmatmul.mubr.f32.gmra.mrb[0].mxu0 %v1316
        %v1397 = vpop.f32.mrb[0].mxu0
        %v1398 = vadd.f32 0.0, %v1397
        %v1399 = vpop.f32.mrb[0].mxu0
        %v1400 = vadd.f32 0.0, %v1399
        %1401 = vmatprep.mubr.f32.mxu0 0.0
        %1402 = vmatmul.mubr.f32.gmra.mrb[0].mxu0 %v1319
        %v1403 = vpop.f32.mrb[0].mxu0
        %v1404 = vadd.f32 0.0, %v1403
        %v1405 = vpop.f32.mrb[0].mxu0
        %v1406 = vadd.f32 0.0, %v1405
        %1407 = vdwg.mxu0
        %v1408 = vadd.f32 %v1283, %v1392
        %v1409 = vadd.f32 %v1285, %v1394
        %v1410 = vadd.f32 %v1289, %v1398
        %v1411 = vadd.f32 %v1291, %v1400
        %v1412 = vadd.f32 %v1295, %v1404
        %v1413 = vadd.f32 %v1297, %v1406
        %s1414 = scalar_lea.vmem %s2, 240
        %v1415 = vld [vmem:[%s1414] sm:$0xff]
        %v1416 = vld [vmem:[%s1414 + $0x8] sm:$0xff]
        %v1417 = vld [vmem:[%s1414 + $0x10] sm:$0xff]
        %1418 = vrot.lane.b32.xlu0 %v284, 103
        %v1419 = vpop.permute.xlu0 %1418
        %1420 = vrot.lane.b32.xlu0 %v287, 103
        %v1421 = vpop.permute.xlu0 %1420
        %1422 = vrot.lane.b32.xlu0 %v285, 103
        %v1423 = vpop.permute.xlu0 %1422
        %vm1424 = vcmask 842752
        %v1425 = vsel %vm1424, %v1419, %v1421
        %v1426 = vsel %vm1424, %v1421, %v1423
        %v1428 = vsel %vm306, %v1415, 0
        %v1431 = vsel %vm306, %v1416, 0
        %v1434 = vsel %vm306, %v1417, 0
        %v1436 = vsel %vm316, %v1425, 0
        %v1438 = vsel %vm316, %v1426, 0
        %1440 = vmatprep.subr.mxu0 %v1438
        %1441 = vmatpush1.msra.mxu0 %v1436
        %1442 = vmatprep.subr.mxu0 0.0
        %1443 = vmatpush1.msra.mxu0 0.0
        %1444 = vmatprep.subr.mxu0 0.0
        %1445 = vmatpush1.msra.mxu0 0.0
        %1446 = vmatprep.subr.mxu0 0.0
        %1447 = vmatpush1.msra.mxu0 0.0
        %1448 = vmatprep.subr.mxu0 0.0
        %1449 = vmatpush1.msra.mxu0 0.0
        %1450 = vmatprep.subr.mxu0 0.0
        %1451 = vmatpush1.msra.mxu0 0.0
        %1452 = vmatprep.subr.mxu0 0.0
        %1453 = vmatpush1.msra.mxu0 0.0
        %1454 = vmatprep.subr.mxu0 0.0
        %1455 = vmatpush1.msra.mxu0 0.0
        %1456 = vmatprep.subr.mxu0 0.0
        %1457 = vmatpush1.msra.mxu0 0.0
        %1458 = vmatprep.subr.mxu0 0.0
        %1459 = vmatpush1.msra.mxu0 0.0
        %1460 = vmatprep.subr.mxu0 0.0
        %1461 = vmatpush1.msra.mxu0 0.0
        %1462 = vmatprep.subr.mxu0 0.0
        %1463 = vmatpush1.msra.mxu0 0.0
        %1464 = vmatprep.subr.mxu0 0.0
        %1465 = vmatpush1.msra.mxu0 0.0
        %1466 = vmatprep.subr.mxu0 0.0
        %1467 = vmatpush1.msra.mxu0 0.0
        %1468 = vmatprep.subr.mxu0 0.0
        %1469 = vmatpush1.msra.mxu0 0.0
        %1470 = vmatprep.subr.mxu0 0.0
        %1471 = vmatpush1.msra.mxu0 0.0
        %1472 = vmatprep.subr.mxu0 0.0
        %1473 = vmatpush1.msra.mxu0 0.0
        %1474 = vmatprep.subr.mxu0 0.0
        %1475 = vmatpush1.msra.mxu0 0.0
        %1476 = vmatprep.subr.mxu0 0.0
        %1477 = vmatpush1.msra.mxu0 0.0
        %1478 = vmatprep.subr.mxu0 0.0
        %1479 = vmatpush1.msra.mxu0 0.0
        %1480 = vmatprep.subr.mxu0 0.0
        %1481 = vmatpush1.msra.mxu0 0.0
        %1482 = vmatprep.subr.mxu0 0.0
        %1483 = vmatpush1.msra.mxu0 0.0
        %1484 = vmatprep.subr.mxu0 0.0
        %1485 = vmatpush1.msra.mxu0 0.0
        %1486 = vmatprep.subr.mxu0 0.0
        %1487 = vmatpush1.msra.mxu0 0.0
        %1488 = vmatprep.subr.mxu0 0.0
        %1489 = vmatpush1.msra.mxu0 0.0
        %1490 = vmatprep.subr.mxu0 0.0
        %1491 = vmatpush1.msra.mxu0 0.0
        %1492 = vmatprep.subr.mxu0 0.0
        %1493 = vmatpush1.msra.mxu0 0.0
        %1494 = vmatprep.subr.mxu0 0.0
        %1495 = vmatpush1.msra.mxu0 0.0
        %1496 = vmatprep.subr.mxu0 0.0
        %1497 = vmatpush1.msra.mxu0 0.0
        %1498 = vmatprep.subr.mxu0 0.0
        %1499 = vmatpush1.msra.mxu0 0.0
        %1500 = vmatprep.subr.mxu0 0.0
        %1501 = vmatpush1.msra.mxu0 0.0
        %1502 = vmatprep.subr.mxu0 0.0
        %1503 = vmatpush1.msra.mxu0 0.0
        %1504 = vmatprep.mubr.f32.mxu0 0.0
        %1505 = vmatmul.mubr.f32.gmra.mrb[0].mxu0 %v1428
        %v1506 = vpop.f32.mrb[0].mxu0
        %v1507 = vadd.f32 0.0, %v1506
        %v1508 = vpop.f32.mrb[0].mxu0
        %v1509 = vadd.f32 0.0, %v1508
        %1510 = vmatprep.mubr.f32.mxu0 0.0
        %1511 = vmatmul.mubr.f32.gmra.mrb[0].mxu0 %v1431
        %v1512 = vpop.f32.mrb[0].mxu0
        %v1513 = vadd.f32 0.0, %v1512
        %v1514 = vpop.f32.mrb[0].mxu0
        %v1515 = vadd.f32 0.0, %v1514
        %1516 = vmatprep.mubr.f32.mxu0 0.0
        %1517 = vmatmul.mubr.f32.gmra.mrb[0].mxu0 %v1434
        %v1518 = vpop.f32.mrb[0].mxu0
        %v1519 = vadd.f32 0.0, %v1518
        %v1520 = vpop.f32.mrb[0].mxu0
        %v1521 = vadd.f32 0.0, %v1520
        %1522 = vdwg.mxu0
        %v1523 = vadd.f32 %v1408, %v1507
        %v1524 = vadd.f32 %v1409, %v1509
        %v1525 = vadd.f32 %v1410, %v1513
        %v1526 = vadd.f32 %v1411, %v1515
        %v1527 = vadd.f32 %v1412, %v1519
        %v1528 = vadd.f32 %v1413, %v1521
        %s1529 = scalar_lea.vmem %s2, 264
        %v1530 = vld [vmem:[%s1529] sm:$0xff]
        %v1531 = vld [vmem:[%s1529 + $0x8] sm:$0xff]
        %v1532 = vld [vmem:[%s1529 + $0x10] sm:$0xff]
        %1533 = vrot.lane.b32.xlu0 %v284, 102
        %v1534 = vpop.permute.xlu0 %1533
        %1535 = vrot.lane.b32.xlu0 %v287, 102
        %v1536 = vpop.permute.xlu0 %1535
        %1537 = vrot.lane.b32.xlu0 %v285, 102
        %v1538 = vpop.permute.xlu0 %1537
        %vm1539 = vcmask 834560
        %v1540 = vsel %vm1539, %v1534, %v1536
        %v1541 = vsel %vm1539, %v1536, %v1538
        %v1543 = vsel %vm306, %v1530, 0
        %v1546 = vsel %vm306, %v1531, 0
        %v1549 = vsel %vm306, %v1532, 0
        %v1551 = vsel %vm316, %v1540, 0
        %v1553 = vsel %vm316, %v1541, 0
        %1555 = vmatprep.subr.mxu0 %v1553
        %1556 = vmatpush1.msra.mxu0 %v1551
        %1557 = vmatprep.subr.mxu0 0.0
        %1558 = vmatpush1.msra.mxu0 0.0
        %1559 = vmatprep.subr.mxu0 0.0
        %1560 = vmatpush1.msra.mxu0 0.0
        %1561 = vmatprep.subr.mxu0 0.0
        %1562 = vmatpush1.msra.mxu0 0.0
        %1563 = vmatprep.subr.mxu0 0.0
        %1564 = vmatpush1.msra.mxu0 0.0
        %1565 = vmatprep.subr.mxu0 0.0
        %1566 = vmatpush1.msra.mxu0 0.0
        %1567 = vmatprep.subr.mxu0 0.0
        %1568 = vmatpush1.msra.mxu0 0.0
        %1569 = vmatprep.subr.mxu0 0.0
        %1570 = vmatpush1.msra.mxu0 0.0
        %1571 = vmatprep.subr.mxu0 0.0
        %1572 = vmatpush1.msra.mxu0 0.0
        %1573 = vmatprep.subr.mxu0 0.0
        %1574 = vmatpush1.msra.mxu0 0.0
        %1575 = vmatprep.subr.mxu0 0.0
        %1576 = vmatpush1.msra.mxu0 0.0
        %1577 = vmatprep.subr.mxu0 0.0
        %1578 = vmatpush1.msra.mxu0 0.0
        %1579 = vmatprep.subr.mxu0 0.0
        %1580 = vmatpush1.msra.mxu0 0.0
        %1581 = vmatprep.subr.mxu0 0.0
        %1582 = vmatpush1.msra.mxu0 0.0
        %1583 = vmatprep.subr.mxu0 0.0
        %1584 = vmatpush1.msra.mxu0 0.0
        %1585 = vmatprep.subr.mxu0 0.0
        %1586 = vmatpush1.msra.mxu0 0.0
        %1587 = vmatprep.subr.mxu0 0.0
        %1588 = vmatpush1.msra.mxu0 0.0
        %1589 = vmatprep.subr.mxu0 0.0
        %1590 = vmatpush1.msra.mxu0 0.0
        %1591 = vmatprep.subr.mxu0 0.0
        %1592 = vmatpush1.msra.mxu0 0.0
        %1593 = vmatprep.subr.mxu0 0.0
        %1594 = vmatpush1.msra.mxu0 0.0
        %1595 = vmatprep.subr.mxu0 0.0
        %1596 = vmatpush1.msra.mxu0 0.0
        %1597 = vmatprep.subr.mxu0 0.0
        %1598 = vmatpush1.msra.mxu0 0.0
        %1599 = vmatprep.subr.mxu0 0.0
        %1600 = vmatpush1.msra.mxu0 0.0
        %1601 = vmatprep.subr.mxu0 0.0
        %1602 = vmatpush1.msra.mxu0 0.0
        %1603 = vmatprep.subr.mxu0 0.0
        %1604 = vmatpush1.msra.mxu0 0.0
        %1605 = vmatprep.subr.mxu0 0.0
        %1606 = vmatpush1.msra.mxu0 0.0
        %1607 = vmatprep.subr.mxu0 0.0
        %1608 = vmatpush1.msra.mxu0 0.0
        %1609 = vmatprep.subr.mxu0 0.0
        %1610 = vmatpush1.msra.mxu0 0.0
        %1611 = vmatprep.subr.mxu0 0.0
        %1612 = vmatpush1.msra.mxu0 0.0
        %1613 = vmatprep.subr.mxu0 0.0
        %1614 = vmatpush1.msra.mxu0 0.0
        %1615 = vmatprep.subr.mxu0 0.0
        %1616 = vmatpush1.msra.mxu0 0.0
        %1617 = vmatprep.subr.mxu0 0.0
        %1618 = vmatpush1.msra.mxu0 0.0
        %1619 = vmatprep.mubr.f32.mxu0 0.0
        %1620 = vmatmul.mubr.f32.gmra.mrb[0].mxu0 %v1543
        %v1621 = vpop.f32.mrb[0].mxu0
        %v1622 = vadd.f32 0.0, %v1621
        %v1623 = vpop.f32.mrb[0].mxu0
        %v1624 = vadd.f32 0.0, %v1623
        %1625 = vmatprep.mubr.f32.mxu0 0.0
        %1626 = vmatmul.mubr.f32.gmra.mrb[0].mxu0 %v1546
        %v1627 = vpop.f32.mrb[0].mxu0
        %v1628 = vadd.f32 0.0, %v1627
        %v1629 = vpop.f32.mrb[0].mxu0
        %v1630 = vadd.f32 0.0, %v1629
        %1631 = vmatprep.mubr.f32.mxu0 0.0
        %1632 = vmatmul.mubr.f32.gmra.mrb[0].mxu0 %v1549
        %v1633 = vpop.f32.mrb[0].mxu0
        %v1634 = vadd.f32 0.0, %v1633
        %v1635 = vpop.f32.mrb[0].mxu0
        %v1636 = vadd.f32 0.0, %v1635
        %1637 = vdwg.mxu0
        %v1638 = vadd.f32 %v1523, %v1622
        %v1639 = vadd.f32 %v1524, %v1624
        %v1640 = vadd.f32 %v1525, %v1628
        %v1641 = vadd.f32 %v1526, %v1630
        %v1642 = vadd.f32 %v1527, %v1634
        %v1643 = vadd.f32 %v1528, %v1636
        %s1644 = scalar_lea.vmem %s2, 288
        %v1645 = vld [vmem:[%s1644] sm:$0xff]
        %v1646 = vld [vmem:[%s1644 + $0x8] sm:$0xff]
        %v1647 = vld [vmem:[%s1644 + $0x10] sm:$0xff]
        %1648 = vrot.lane.b32.xlu0 %v284, 101
        %v1649 = vpop.permute.xlu0 %1648
        %1650 = vrot.lane.b32.xlu0 %v287, 101
        %v1651 = vpop.permute.xlu0 %1650
        %1652 = vrot.lane.b32.xlu0 %v285, 101
        %v1653 = vpop.permute.xlu0 %1652
        %vm1654 = vcmask 826368
        %v1655 = vsel %vm1654, %v1649, %v1651
        %v1656 = vsel %vm1654, %v1651, %v1653
        %v1658 = vsel %vm306, %v1645, 0
        %v1661 = vsel %vm306, %v1646, 0
        %v1664 = vsel %vm306, %v1647, 0
        %v1666 = vsel %vm316, %v1655, 0
        %v1668 = vsel %vm316, %v1656, 0
        %1670 = vmatprep.subr.mxu0 %v1668
        %1671 = vmatpush1.msra.mxu0 %v1666
        %1672 = vmatprep.subr.mxu0 0.0
        %1673 = vmatpush1.msra.mxu0 0.0
        %1674 = vmatprep.subr.mxu0 0.0
        %1675 = vmatpush1.msra.mxu0 0.0
        %1676 = vmatprep.subr.mxu0 0.0
        %1677 = vmatpush1.msra.mxu0 0.0
        %1678 = vmatprep.subr.mxu0 0.0
        %1679 = vmatpush1.msra.mxu0 0.0
        %1680 = vmatprep.subr.mxu0 0.0
        %1681 = vmatpush1.msra.mxu0 0.0
        %1682 = vmatprep.subr.mxu0 0.0
        %1683 = vmatpush1.msra.mxu0 0.0
        %1684 = vmatprep.subr.mxu0 0.0
        %1685 = vmatpush1.msra.mxu0 0.0
        %1686 = vmatprep.subr.mxu0 0.0
        %1687 = vmatpush1.msra.mxu0 0.0
        %1688 = vmatprep.subr.mxu0 0.0
        %1689 = vmatpush1.msra.mxu0 0.0
        %1690 = vmatprep.subr.mxu0 0.0
        %1691 = vmatpush1.msra.mxu0 0.0
        %1692 = vmatprep.subr.mxu0 0.0
        %1693 = vmatpush1.msra.mxu0 0.0
        %1694 = vmatprep.subr.mxu0 0.0
        %1695 = vmatpush1.msra.mxu0 0.0
        %1696 = vmatprep.subr.mxu0 0.0
        %1697 = vmatpush1.msra.mxu0 0.0
        %1698 = vmatprep.subr.mxu0 0.0
        %1699 = vmatpush1.msra.mxu0 0.0
        %1700 = vmatprep.subr.mxu0 0.0
        %1701 = vmatpush1.msra.mxu0 0.0
        %1702 = vmatprep.subr.mxu0 0.0
        %1703 = vmatpush1.msra.mxu0 0.0
        %1704 = vmatprep.subr.mxu0 0.0
        %1705 = vmatpush1.msra.mxu0 0.0
        %1706 = vmatprep.subr.mxu0 0.0
        %1707 = vmatpush1.msra.mxu0 0.0
        %1708 = vmatprep.subr.mxu0 0.0
        %1709 = vmatpush1.msra.mxu0 0.0
        %1710 = vmatprep.subr.mxu0 0.0
        %1711 = vmatpush1.msra.mxu0 0.0
        %1712 = vmatprep.subr.mxu0 0.0
        %1713 = vmatpush1.msra.mxu0 0.0
        %1714 = vmatprep.subr.mxu0 0.0
        %1715 = vmatpush1.msra.mxu0 0.0
        %1716 = vmatprep.subr.mxu0 0.0
        %1717 = vmatpush1.msra.mxu0 0.0
        %1718 = vmatprep.subr.mxu0 0.0
        %1719 = vmatpush1.msra.mxu0 0.0
        %1720 = vmatprep.subr.mxu0 0.0
        %1721 = vmatpush1.msra.mxu0 0.0
        %1722 = vmatprep.subr.mxu0 0.0
        %1723 = vmatpush1.msra.mxu0 0.0
        %1724 = vmatprep.subr.mxu0 0.0
        %1725 = vmatpush1.msra.mxu0 0.0
        %1726 = vmatprep.subr.mxu0 0.0
        %1727 = vmatpush1.msra.mxu0 0.0
        %1728 = vmatprep.subr.mxu0 0.0
        %1729 = vmatpush1.msra.mxu0 0.0
        %1730 = vmatprep.subr.mxu0 0.0
        %1731 = vmatpush1.msra.mxu0 0.0
        %1732 = vmatprep.subr.mxu0 0.0
        %1733 = vmatpush1.msra.mxu0 0.0
        %1734 = vmatprep.mubr.f32.mxu0 0.0
        %1735 = vmatmul.mubr.f32.gmra.mrb[0].mxu0 %v1658
        %v1736 = vpop.f32.mrb[0].mxu0
        %v1737 = vadd.f32 0.0, %v1736
        %v1738 = vpop.f32.mrb[0].mxu0
        %v1739 = vadd.f32 0.0, %v1738
        %1740 = vmatprep.mubr.f32.mxu0 0.0
        %1741 = vmatmul.mubr.f32.gmra.mrb[0].mxu0 %v1661
        %v1742 = vpop.f32.mrb[0].mxu0
        %v1743 = vadd.f32 0.0, %v1742
        %v1744 = vpop.f32.mrb[0].mxu0
        %v1745 = vadd.f32 0.0, %v1744
        %1746 = vmatprep.mubr.f32.mxu0 0.0
        %1747 = vmatmul.mubr.f32.gmra.mrb[0].mxu0 %v1664
        %v1748 = vpop.f32.mrb[0].mxu0
        %v1749 = vadd.f32 0.0, %v1748
        %v1750 = vpop.f32.mrb[0].mxu0
        %v1751 = vadd.f32 0.0, %v1750
        %1752 = vdwg.mxu0
        %v1753 = vadd.f32 %v1638, %v1737
        %v1754 = vadd.f32 %v1639, %v1739
        %v1755 = vadd.f32 %v1640, %v1743
        %v1756 = vadd.f32 %v1641, %v1745
        %v1757 = vadd.f32 %v1642, %v1749
        %v1758 = vadd.f32 %v1643, %v1751
        %s1759 = scalar_lea.vmem %s2, 312
        %v1760 = vld [vmem:[%s1759] sm:$0xff]
        %v1761 = vld [vmem:[%s1759 + $0x8] sm:$0xff]
        %v1762 = vld [vmem:[%s1759 + $0x10] sm:$0xff]
        %1763 = vrot.lane.b32.xlu0 %v284, 100
        %v1764 = vpop.permute.xlu0 %1763
        %1765 = vrot.lane.b32.xlu0 %v287, 100
        %v1766 = vpop.permute.xlu0 %1765
        %1767 = vrot.lane.b32.xlu0 %v285, 100
        %v1768 = vpop.permute.xlu0 %1767
        %vm1769 = vcmask 818176
        %v1770 = vsel %vm1769, %v1764, %v1766
        %v1771 = vsel %vm1769, %v1766, %v1768
        %v1773 = vsel %vm306, %v1760, 0
        %v1776 = vsel %vm306, %v1761, 0
        %v1779 = vsel %vm306, %v1762, 0
        %v1781 = vsel %vm316, %v1770, 0
        %v1783 = vsel %vm316, %v1771, 0
        %1785 = vmatprep.subr.mxu0 %v1783
        %1786 = vmatpush1.msra.mxu0 %v1781
        %1787 = vmatprep.subr.mxu0 0.0
        %1788 = vmatpush1.msra.mxu0 0.0
        %1789 = vmatprep.subr.mxu0 0.0
        %1790 = vmatpush1.msra.mxu0 0.0
        %1791 = vmatprep.subr.mxu0 0.0
        %1792 = vmatpush1.msra.mxu0 0.0
        %1793 = vmatprep.subr.mxu0 0.0
        %1794 = vmatpush1.msra.mxu0 0.0
        %1795 = vmatprep.subr.mxu0 0.0
        %1796 = vmatpush1.msra.mxu0 0.0
        %1797 = vmatprep.subr.mxu0 0.0
        %1798 = vmatpush1.msra.mxu0 0.0
        %1799 = vmatprep.subr.mxu0 0.0
        %1800 = vmatpush1.msra.mxu0 0.0
        %1801 = vmatprep.subr.mxu0 0.0
        %1802 = vmatpush1.msra.mxu0 0.0
        %1803 = vmatprep.subr.mxu0 0.0
        %1804 = vmatpush1.msra.mxu0 0.0
        %1805 = vmatprep.subr.mxu0 0.0
        %1806 = vmatpush1.msra.mxu0 0.0
        %1807 = vmatprep.subr.mxu0 0.0
        %1808 = vmatpush1.msra.mxu0 0.0
        %1809 = vmatprep.subr.mxu0 0.0
        %1810 = vmatpush1.msra.mxu0 0.0
        %1811 = vmatprep.subr.mxu0 0.0
        %1812 = vmatpush1.msra.mxu0 0.0
        %1813 = vmatprep.subr.mxu0 0.0
        %1814 = vmatpush1.msra.mxu0 0.0
        %1815 = vmatprep.subr.mxu0 0.0
        %1816 = vmatpush1.msra.mxu0 0.0
        %1817 = vmatprep.subr.mxu0 0.0
        %1818 = vmatpush1.msra.mxu0 0.0
        %1819 = vmatprep.subr.mxu0 0.0
        %1820 = vmatpush1.msra.mxu0 0.0
        %1821 = vmatprep.subr.mxu0 0.0
        %1822 = vmatpush1.msra.mxu0 0.0
        %1823 = vmatprep.subr.mxu0 0.0
        %1824 = vmatpush1.msra.mxu0 0.0
        %1825 = vmatprep.subr.mxu0 0.0
        %1826 = vmatpush1.msra.mxu0 0.0
        %1827 = vmatprep.subr.mxu0 0.0
        %1828 = vmatpush1.msra.mxu0 0.0
        %1829 = vmatprep.subr.mxu0 0.0
        %1830 = vmatpush1.msra.mxu0 0.0
        %1831 = vmatprep.subr.mxu0 0.0
        %1832 = vmatpush1.msra.mxu0 0.0
        %1833 = vmatprep.subr.mxu0 0.0
        %1834 = vmatpush1.msra.mxu0 0.0
        %1835 = vmatprep.subr.mxu0 0.0
        %1836 = vmatpush1.msra.mxu0 0.0
        %1837 = vmatprep.subr.mxu0 0.0
        %1838 = vmatpush1.msra.mxu0 0.0
        %1839 = vmatprep.subr.mxu0 0.0
        %1840 = vmatpush1.msra.mxu0 0.0
        %1841 = vmatprep.subr.mxu0 0.0
        %1842 = vmatpush1.msra.mxu0 0.0
        %1843 = vmatprep.subr.mxu0 0.0
        %1844 = vmatpush1.msra.mxu0 0.0
        %1845 = vmatprep.subr.mxu0 0.0
        %1846 = vmatpush1.msra.mxu0 0.0
        %1847 = vmatprep.subr.mxu0 0.0
        %1848 = vmatpush1.msra.mxu0 0.0
        %1849 = vmatprep.mubr.f32.mxu0 0.0
        %1850 = vmatmul.mubr.f32.gmra.mrb[0].mxu0 %v1773
        %v1851 = vpop.f32.mrb[0].mxu0
        %v1852 = vadd.f32 0.0, %v1851
        %v1853 = vpop.f32.mrb[0].mxu0
        %v1854 = vadd.f32 0.0, %v1853
        %1855 = vmatprep.mubr.f32.mxu0 0.0
        %1856 = vmatmul.mubr.f32.gmra.mrb[0].mxu0 %v1776
        %v1857 = vpop.f32.mrb[0].mxu0
        %v1858 = vadd.f32 0.0, %v1857
        %v1859 = vpop.f32.mrb[0].mxu0
        %v1860 = vadd.f32 0.0, %v1859
        %1861 = vmatprep.mubr.f32.mxu0 0.0
        %1862 = vmatmul.mubr.f32.gmra.mrb[0].mxu0 %v1779
        %v1863 = vpop.f32.mrb[0].mxu0
        %v1864 = vadd.f32 0.0, %v1863
        %v1865 = vpop.f32.mrb[0].mxu0
        %v1866 = vadd.f32 0.0, %v1865
        %1867 = vdwg.mxu0
        %v1868 = vadd.f32 %v1753, %v1852
        %v1869 = vadd.f32 %v1754, %v1854
        %v1870 = vadd.f32 %v1755, %v1858
        %v1871 = vadd.f32 %v1756, %v1860
        %v1872 = vadd.f32 %v1757, %v1864
        %v1873 = vadd.f32 %v1758, %v1866
        %v1874 = vadd.f32 %v1075, %v1868
        %v1875 = vadd.f32 %v1076, %v1869
        %v1876 = vadd.f32 %v1077, %v1870
        %v1877 = vadd.f32 %v1078, %v1871
        %v1878 = vadd.f32 %v1079, %v1872
        %v1879 = vadd.f32 %v1080, %v1873
        %s1880 = scalar_lea.vmem %s2, 336
        %v1881 = vld [vmem:[%s1880] sm:$0xff]
        %v1882 = vld [vmem:[%s1880 + $0x8] sm:$0xff]
        %v1883 = vld [vmem:[%s1880 + $0x10] sm:$0xff]
        %s1884 = scalar_lea.vmem %s2, 360
        %v1885 = vld [vmem:[%s1884] sm:$0xff]
        %v1886 = vld [vmem:[%s1884 + $0x8] sm:$0xff]
        %v1887 = vld [vmem:[%s1884 + $0x10] sm:$0xff]
        %1888 = vrot.lane.b32.xlu0 %v284, 83
        %v1889 = vpop.permute.xlu0 %1888
        %1890 = vrot.lane.b32.xlu0 %v287, 83
        %v1891 = vpop.permute.xlu0 %1890
        %1892 = vrot.lane.b32.xlu0 %v285, 83
        %v1893 = vpop.permute.xlu0 %1892
        %vm1894 = vcmask 678912
        %v1895 = vsel %vm1894, %v1889, %v1891
        %v1896 = vsel %vm1894, %v1891, %v1893
        %v1898 = vsel %vm306, %v1885, 0
        %v1901 = vsel %vm306, %v1886, 0
        %v1904 = vsel %vm306, %v1887, 0
        %v1906 = vsel %vm316, %v1895, 0
        %v1908 = vsel %vm316, %v1896, 0
        %1910 = vmatprep.subr.mxu0 %v1908
        %1911 = vmatpush1.msra.mxu0 %v1906
        %1912 = vmatprep.subr.mxu0 0.0
        %1913 = vmatpush1.msra.mxu0 0.0
        %1914 = vmatprep.subr.mxu0 0.0
        %1915 = vmatpush1.msra.mxu0 0.0
        %1916 = vmatprep.subr.mxu0 0.0
        %1917 = vmatpush1.msra.mxu0 0.0
        %1918 = vmatprep.subr.mxu0 0.0
        %1919 = vmatpush1.msra.mxu0 0.0
        %1920 = vmatprep.subr.mxu0 0.0
        %1921 = vmatpush1.msra.mxu0 0.0
        %1922 = vmatprep.subr.mxu0 0.0
        %1923 = vmatpush1.msra.mxu0 0.0
        %1924 = vmatprep.subr.mxu0 0.0
        %1925 = vmatpush1.msra.mxu0 0.0
        %1926 = vmatprep.subr.mxu0 0.0
        %1927 = vmatpush1.msra.mxu0 0.0
        %1928 = vmatprep.subr.mxu0 0.0
        %1929 = vmatpush1.msra.mxu0 0.0
        %1930 = vmatprep.subr.mxu0 0.0
        %1931 = vmatpush1.msra.mxu0 0.0
        %1932 = vmatprep.subr.mxu0 0.0
        %1933 = vmatpush1.msra.mxu0 0.0
        %1934 = vmatprep.subr.mxu0 0.0
        %1935 = vmatpush1.msra.mxu0 0.0
        %1936 = vmatprep.subr.mxu0 0.0
        %1937 = vmatpush1.msra.mxu0 0.0
        %1938 = vmatprep.subr.mxu0 0.0
        %1939 = vmatpush1.msra.mxu0 0.0
        %1940 = vmatprep.subr.mxu0 0.0
        %1941 = vmatpush1.msra.mxu0 0.0
        %1942 = vmatprep.subr.mxu0 0.0
        %1943 = vmatpush1.msra.mxu0 0.0
        %1944 = vmatprep.subr.mxu0 0.0
        %1945 = vmatpush1.msra.mxu0 0.0
        %1946 = vmatprep.subr.mxu0 0.0
        %1947 = vmatpush1.msra.mxu0 0.0
        %1948 = vmatprep.subr.mxu0 0.0
        %1949 = vmatpush1.msra.mxu0 0.0
        %1950 = vmatprep.subr.mxu0 0.0
        %1951 = vmatpush1.msra.mxu0 0.0
        %1952 = vmatprep.subr.mxu0 0.0
        %1953 = vmatpush1.msra.mxu0 0.0
        %1954 = vmatprep.subr.mxu0 0.0
        %1955 = vmatpush1.msra.mxu0 0.0
        %1956 = vmatprep.subr.mxu0 0.0
        %1957 = vmatpush1.msra.mxu0 0.0
        %1958 = vmatprep.subr.mxu0 0.0
        %1959 = vmatpush1.msra.mxu0 0.0
        %1960 = vmatprep.subr.mxu0 0.0
        %1961 = vmatpush1.msra.mxu0 0.0
        %1962 = vmatprep.subr.mxu0 0.0
        %1963 = vmatpush1.msra.mxu0 0.0
        %1964 = vmatprep.subr.mxu0 0.0
        %1965 = vmatpush1.msra.mxu0 0.0
        %1966 = vmatprep.subr.mxu0 0.0
        %1967 = vmatpush1.msra.mxu0 0.0
        %1968 = vmatprep.subr.mxu0 0.0
        %1969 = vmatpush1.msra.mxu0 0.0
        %1970 = vmatprep.subr.mxu0 0.0
        %1971 = vmatpush1.msra.mxu0 0.0
        %1972 = vmatprep.subr.mxu0 0.0
        %1973 = vmatpush1.msra.mxu0 0.0
        %1974 = vmatprep.mubr.f32.mxu0 0.0
        %1975 = vmatmul.mubr.f32.gmra.mrb[0].mxu0 %v1898
        %v1976 = vpop.f32.mrb[0].mxu0
        %v1977 = vadd.f32 0.0, %v1976
        %v1978 = vpop.f32.mrb[0].mxu0
        %v1979 = vadd.f32 0.0, %v1978
        %1980 = vmatprep.mubr.f32.mxu0 0.0
        %1981 = vmatmul.mubr.f32.gmra.mrb[0].mxu0 %v1901
        %v1982 = vpop.f32.mrb[0].mxu0
        %v1983 = vadd.f32 0.0, %v1982
        %v1984 = vpop.f32.mrb[0].mxu0
        %v1985 = vadd.f32 0.0, %v1984
        %1986 = vmatprep.mubr.f32.mxu0 0.0
        %1987 = vmatmul.mubr.f32.gmra.mrb[0].mxu0 %v1904
        %v1988 = vpop.f32.mrb[0].mxu0
        %v1989 = vadd.f32 0.0, %v1988
        %v1990 = vpop.f32.mrb[0].mxu0
        %v1991 = vadd.f32 0.0, %v1990
        %1992 = vdwg.mxu0
        %1993 = vrot.lane.b32.xlu0 %v284, 84
        %v1994 = vpop.permute.xlu0 %1993
        %1995 = vrot.lane.b32.xlu0 %v287, 84
        %v1996 = vpop.permute.xlu0 %1995
        %1997 = vrot.lane.b32.xlu0 %v285, 84
        %v1998 = vpop.permute.xlu0 %1997
        %vm1999 = vcmask 687104
        %v2000 = vsel %vm1999, %v1994, %v1996
        %v2001 = vsel %vm1999, %v1996, %v1998
        %v2003 = vsel %vm306, %v1881, 0
        %v2006 = vsel %vm306, %v1882, 0
        %v2009 = vsel %vm306, %v1883, 0
        %v2011 = vsel %vm316, %v2000, 0
        %v2013 = vsel %vm316, %v2001, 0
        %2015 = vmatprep.subr.mxu0 %v2013
        %2016 = vmatpush1.msra.mxu0 %v2011
        %2017 = vmatprep.subr.mxu0 0.0
        %2018 = vmatpush1.msra.mxu0 0.0
        %2019 = vmatprep.subr.mxu0 0.0
        %2020 = vmatpush1.msra.mxu0 0.0
        %2021 = vmatprep.subr.mxu0 0.0
        %2022 = vmatpush1.msra.mxu0 0.0
        %2023 = vmatprep.subr.mxu0 0.0
        %2024 = vmatpush1.msra.mxu0 0.0
        %2025 = vmatprep.subr.mxu0 0.0
        %2026 = vmatpush1.msra.mxu0 0.0
        %2027 = vmatprep.subr.mxu0 0.0
        %2028 = vmatpush1.msra.mxu0 0.0
        %2029 = vmatprep.subr.mxu0 0.0
        %2030 = vmatpush1.msra.mxu0 0.0
        %2031 = vmatprep.subr.mxu0 0.0
        %2032 = vmatpush1.msra.mxu0 0.0
        %2033 = vmatprep.subr.mxu0 0.0
        %2034 = vmatpush1.msra.mxu0 0.0
        %2035 = vmatprep.subr.mxu0 0.0
        %2036 = vmatpush1.msra.mxu0 0.0
        %2037 = vmatprep.subr.mxu0 0.0
        %2038 = vmatpush1.msra.mxu0 0.0
        %2039 = vmatprep.subr.mxu0 0.0
        %2040 = vmatpush1.msra.mxu0 0.0
        %2041 = vmatprep.subr.mxu0 0.0
        %2042 = vmatpush1.msra.mxu0 0.0
        %2043 = vmatprep.subr.mxu0 0.0
        %2044 = vmatpush1.msra.mxu0 0.0
        %2045 = vmatprep.subr.mxu0 0.0
        %2046 = vmatpush1.msra.mxu0 0.0
        %2047 = vmatprep.subr.mxu0 0.0
        %2048 = vmatpush1.msra.mxu0 0.0
        %2049 = vmatprep.subr.mxu0 0.0
        %2050 = vmatpush1.msra.mxu0 0.0
        %2051 = vmatprep.subr.mxu0 0.0
        %2052 = vmatpush1.msra.mxu0 0.0
        %2053 = vmatprep.subr.mxu0 0.0
        %2054 = vmatpush1.msra.mxu0 0.0
        %2055 = vmatprep.subr.mxu0 0.0
        %2056 = vmatpush1.msra.mxu0 0.0
        %2057 = vmatprep.subr.mxu0 0.0
        %2058 = vmatpush1.msra.mxu0 0.0
        %2059 = vmatprep.subr.mxu0 0.0
        %2060 = vmatpush1.msra.mxu0 0.0
        %2061 = vmatprep.subr.mxu0 0.0
        %2062 = vmatpush1.msra.mxu0 0.0
        %2063 = vmatprep.subr.mxu0 0.0
        %2064 = vmatpush1.msra.mxu0 0.0
        %2065 = vmatprep.subr.mxu0 0.0
        %2066 = vmatpush1.msra.mxu0 0.0
        %2067 = vmatprep.subr.mxu0 0.0
        %2068 = vmatpush1.msra.mxu0 0.0
        %2069 = vmatprep.subr.mxu0 0.0
        %2070 = vmatpush1.msra.mxu0 0.0
        %2071 = vmatprep.subr.mxu0 0.0
        %2072 = vmatpush1.msra.mxu0 0.0
        %2073 = vmatprep.subr.mxu0 0.0
        %2074 = vmatpush1.msra.mxu0 0.0
        %2075 = vmatprep.subr.mxu0 0.0
        %2076 = vmatpush1.msra.mxu0 0.0
        %2077 = vmatprep.subr.mxu0 0.0
        %2078 = vmatpush1.msra.mxu0 0.0
        %2079 = vmatprep.mubr.f32.mxu0 0.0
        %2080 = vmatmul.mubr.f32.gmra.mrb[0].mxu0 %v2003
        %v2081 = vpop.f32.mrb[0].mxu0
        %v2082 = vadd.f32 %v1977, %v2081
        %v2083 = vpop.f32.mrb[0].mxu0
        %v2084 = vadd.f32 %v1979, %v2083
        %2085 = vmatprep.mubr.f32.mxu0 0.0
        %2086 = vmatmul.mubr.f32.gmra.mrb[0].mxu0 %v2006
        %v2087 = vpop.f32.mrb[0].mxu0
        %v2088 = vadd.f32 %v1983, %v2087
        %v2089 = vpop.f32.mrb[0].mxu0
        %v2090 = vadd.f32 %v1985, %v2089
        %2091 = vmatprep.mubr.f32.mxu0 0.0
        %2092 = vmatmul.mubr.f32.gmra.mrb[0].mxu0 %v2009
        %v2093 = vpop.f32.mrb[0].mxu0
        %v2094 = vadd.f32 %v1989, %v2093
        %v2095 = vpop.f32.mrb[0].mxu0
        %v2096 = vadd.f32 %v1991, %v2095
        %2097 = vdwg.mxu0
        %s2098 = scalar_lea.vmem %s2, 384
        %v2099 = vld [vmem:[%s2098] sm:$0xff]
        %v2100 = vld [vmem:[%s2098 + $0x8] sm:$0xff]
        %v2101 = vld [vmem:[%s2098 + $0x10] sm:$0xff]
        %2102 = vrot.lane.b32.xlu0 %v284, 82
        %v2103 = vpop.permute.xlu0 %2102
        %2104 = vrot.lane.b32.xlu0 %v287, 82
        %v2105 = vpop.permute.xlu0 %2104
        %2106 = vrot.lane.b32.xlu0 %v285, 82
        %v2107 = vpop.permute.xlu0 %2106
        %vm2108 = vcmask 670720
        %v2109 = vsel %vm2108, %v2103, %v2105
        %v2110 = vsel %vm2108, %v2105, %v2107
        %v2112 = vsel %vm306, %v2099, 0
        %v2115 = vsel %vm306, %v2100, 0
        %v2118 = vsel %vm306, %v2101, 0
        %v2120 = vsel %vm316, %v2109, 0
        %v2122 = vsel %vm316, %v2110, 0
        %2124 = vmatprep.subr.mxu0 %v2122
        %2125 = vmatpush1.msra.mxu0 %v2120
        %2126 = vmatprep.subr.mxu0 0.0
        %2127 = vmatpush1.msra.mxu0 0.0
        %2128 = vmatprep.subr.mxu0 0.0
        %2129 = vmatpush1.msra.mxu0 0.0
        %2130 = vmatprep.subr.mxu0 0.0
        %2131 = vmatpush1.msra.mxu0 0.0
        %2132 = vmatprep.subr.mxu0 0.0
        %2133 = vmatpush1.msra.mxu0 0.0
        %2134 = vmatprep.subr.mxu0 0.0
        %2135 = vmatpush1.msra.mxu0 0.0
        %2136 = vmatprep.subr.mxu0 0.0
        %2137 = vmatpush1.msra.mxu0 0.0
        %2138 = vmatprep.subr.mxu0 0.0
        %2139 = vmatpush1.msra.mxu0 0.0
        %2140 = vmatprep.subr.mxu0 0.0
        %2141 = vmatpush1.msra.mxu0 0.0
        %2142 = vmatprep.subr.mxu0 0.0
        %2143 = vmatpush1.msra.mxu0 0.0
        %2144 = vmatprep.subr.mxu0 0.0
        %2145 = vmatpush1.msra.mxu0 0.0
        %2146 = vmatprep.subr.mxu0 0.0
        %2147 = vmatpush1.msra.mxu0 0.0
        %2148 = vmatprep.subr.mxu0 0.0
        %2149 = vmatpush1.msra.mxu0 0.0
        %2150 = vmatprep.subr.mxu0 0.0
        %2151 = vmatpush1.msra.mxu0 0.0
        %2152 = vmatprep.subr.mxu0 0.0
        %2153 = vmatpush1.msra.mxu0 0.0
        %2154 = vmatprep.subr.mxu0 0.0
        %2155 = vmatpush1.msra.mxu0 0.0
        %2156 = vmatprep.subr.mxu0 0.0
        %2157 = vmatpush1.msra.mxu0 0.0
        %2158 = vmatprep.subr.mxu0 0.0
        %2159 = vmatpush1.msra.mxu0 0.0
        %2160 = vmatprep.subr.mxu0 0.0
        %2161 = vmatpush1.msra.mxu0 0.0
        %2162 = vmatprep.subr.mxu0 0.0
        %2163 = vmatpush1.msra.mxu0 0.0
        %2164 = vmatprep.subr.mxu0 0.0
        %2165 = vmatpush1.msra.mxu0 0.0
        %2166 = vmatprep.subr.mxu0 0.0
        %2167 = vmatpush1.msra.mxu0 0.0
        %2168 = vmatprep.subr.mxu0 0.0
        %2169 = vmatpush1.msra.mxu0 0.0
        %2170 = vmatprep.subr.mxu0 0.0
        %2171 = vmatpush1.msra.mxu0 0.0
        %2172 = vmatprep.subr.mxu0 0.0
        %2173 = vmatpush1.msra.mxu0 0.0
        %2174 = vmatprep.subr.mxu0 0.0
        %2175 = vmatpush1.msra.mxu0 0.0
        %2176 = vmatprep.subr.mxu0 0.0
        %2177 = vmatpush1.msra.mxu0 0.0
        %2178 = vmatprep.subr.mxu0 0.0
        %2179 = vmatpush1.msra.mxu0 0.0
        %2180 = vmatprep.subr.mxu0 0.0
        %2181 = vmatpush1.msra.mxu0 0.0
        %2182 = vmatprep.subr.mxu0 0.0
        %2183 = vmatpush1.msra.mxu0 0.0
        %2184 = vmatprep.subr.mxu0 0.0
        %2185 = vmatpush1.msra.mxu0 0.0
        %2186 = vmatprep.subr.mxu0 0.0
        %2187 = vmatpush1.msra.mxu0 0.0
        %2188 = vmatprep.mubr.f32.mxu0 0.0
        %2189 = vmatmul.mubr.f32.gmra.mrb[0].mxu0 %v2112
        %v2190 = vpop.f32.mrb[0].mxu0
        %v2191 = vadd.f32 0.0, %v2190
        %v2192 = vpop.f32.mrb[0].mxu0
        %v2193 = vadd.f32 0.0, %v2192
        %2194 = vmatprep.mubr.f32.mxu0 0.0
        %2195 = vmatmul.mubr.f32.gmra.mrb[0].mxu0 %v2115
        %v2196 = vpop.f32.mrb[0].mxu0
        %v2197 = vadd.f32 0.0, %v2196
        %v2198 = vpop.f32.mrb[0].mxu0
        %v2199 = vadd.f32 0.0, %v2198
        %2200 = vmatprep.mubr.f32.mxu0 0.0
        %2201 = vmatmul.mubr.f32.gmra.mrb[0].mxu0 %v2118
        %v2202 = vpop.f32.mrb[0].mxu0
        %v2203 = vadd.f32 0.0, %v2202
        %v2204 = vpop.f32.mrb[0].mxu0
        %v2205 = vadd.f32 0.0, %v2204
        %2206 = vdwg.mxu0
        %v2207 = vadd.f32 %v2082, %v2191
        %v2208 = vadd.f32 %v2084, %v2193
        %v2209 = vadd.f32 %v2088, %v2197
        %v2210 = vadd.f32 %v2090, %v2199
        %v2211 = vadd.f32 %v2094, %v2203
        %v2212 = vadd.f32 %v2096, %v2205
        %s2213 = scalar_lea.vmem %s2, 408
        %v2214 = vld [vmem:[%s2213] sm:$0xff]
        %v2215 = vld [vmem:[%s2213 + $0x8] sm:$0xff]
        %v2216 = vld [vmem:[%s2213 + $0x10] sm:$0xff]
        %2217 = vrot.lane.b32.xlu0 %v284, 81
        %v2218 = vpop.permute.xlu0 %2217
        %2219 = vrot.lane.b32.xlu0 %v287, 81
        %v2220 = vpop.permute.xlu0 %2219
        %2221 = vrot.lane.b32.xlu0 %v285, 81
        %v2222 = vpop.permute.xlu0 %2221
        %vm2223 = vcmask 662528
        %v2224 = vsel %vm2223, %v2218, %v2220
        %v2225 = vsel %vm2223, %v2220, %v2222
        %v2227 = vsel %vm306, %v2214, 0
        %v2230 = vsel %vm306, %v2215, 0
        %v2233 = vsel %vm306, %v2216, 0
        %v2235 = vsel %vm316, %v2224, 0
        %v2237 = vsel %vm316, %v2225, 0
        %2239 = vmatprep.subr.mxu0 %v2237
        %2240 = vmatpush1.msra.mxu0 %v2235
        %2241 = vmatprep.subr.mxu0 0.0
        %2242 = vmatpush1.msra.mxu0 0.0
        %2243 = vmatprep.subr.mxu0 0.0
        %2244 = vmatpush1.msra.mxu0 0.0
        %2245 = vmatprep.subr.mxu0 0.0
        %2246 = vmatpush1.msra.mxu0 0.0
        %2247 = vmatprep.subr.mxu0 0.0
        %2248 = vmatpush1.msra.mxu0 0.0
        %2249 = vmatprep.subr.mxu0 0.0
        %2250 = vmatpush1.msra.mxu0 0.0
        %2251 = vmatprep.subr.mxu0 0.0
        %2252 = vmatpush1.msra.mxu0 0.0
        %2253 = vmatprep.subr.mxu0 0.0
        %2254 = vmatpush1.msra.mxu0 0.0
        %2255 = vmatprep.subr.mxu0 0.0
        %2256 = vmatpush1.msra.mxu0 0.0
        %2257 = vmatprep.subr.mxu0 0.0
        %2258 = vmatpush1.msra.mxu0 0.0
        %2259 = vmatprep.subr.mxu0 0.0
        %2260 = vmatpush1.msra.mxu0 0.0
        %2261 = vmatprep.subr.mxu0 0.0
        %2262 = vmatpush1.msra.mxu0 0.0
        %2263 = vmatprep.subr.mxu0 0.0
        %2264 = vmatpush1.msra.mxu0 0.0
        %2265 = vmatprep.subr.mxu0 0.0
        %2266 = vmatpush1.msra.mxu0 0.0
        %2267 = vmatprep.subr.mxu0 0.0
        %2268 = vmatpush1.msra.mxu0 0.0
        %2269 = vmatprep.subr.mxu0 0.0
        %2270 = vmatpush1.msra.mxu0 0.0
        %2271 = vmatprep.subr.mxu0 0.0
        %2272 = vmatpush1.msra.mxu0 0.0
        %2273 = vmatprep.subr.mxu0 0.0
        %2274 = vmatpush1.msra.mxu0 0.0
        %2275 = vmatprep.subr.mxu0 0.0
        %2276 = vmatpush1.msra.mxu0 0.0
        %2277 = vmatprep.subr.mxu0 0.0
        %2278 = vmatpush1.msra.mxu0 0.0
        %2279 = vmatprep.subr.mxu0 0.0
        %2280 = vmatpush1.msra.mxu0 0.0
        %2281 = vmatprep.subr.mxu0 0.0
        %2282 = vmatpush1.msra.mxu0 0.0
        %2283 = vmatprep.subr.mxu0 0.0
        %2284 = vmatpush1.msra.mxu0 0.0
        %2285 = vmatprep.subr.mxu0 0.0
        %2286 = vmatpush1.msra.mxu0 0.0
        %2287 = vmatprep.subr.mxu0 0.0
        %2288 = vmatpush1.msra.mxu0 0.0
        %2289 = vmatprep.subr.mxu0 0.0
        %2290 = vmatpush1.msra.mxu0 0.0
        %2291 = vmatprep.subr.mxu0 0.0
        %2292 = vmatpush1.msra.mxu0 0.0
        %2293 = vmatprep.subr.mxu0 0.0
        %2294 = vmatpush1.msra.mxu0 0.0
        %2295 = vmatprep.subr.mxu0 0.0
        %2296 = vmatpush1.msra.mxu0 0.0
        %2297 = vmatprep.subr.mxu0 0.0
        %2298 = vmatpush1.msra.mxu0 0.0
        %2299 = vmatprep.subr.mxu0 0.0
        %2300 = vmatpush1.msra.mxu0 0.0
        %2301 = vmatprep.subr.mxu0 0.0
        %2302 = vmatpush1.msra.mxu0 0.0
        %2303 = vmatprep.mubr.f32.mxu0 0.0
        %2304 = vmatmul.mubr.f32.gmra.mrb[0].mxu0 %v2227
        %v2305 = vpop.f32.mrb[0].mxu0
        %v2306 = vadd.f32 0.0, %v2305
        %v2307 = vpop.f32.mrb[0].mxu0
        %v2308 = vadd.f32 0.0, %v2307
        %2309 = vmatprep.mubr.f32.mxu0 0.0
        %2310 = vmatmul.mubr.f32.gmra.mrb[0].mxu0 %v2230
        %v2311 = vpop.f32.mrb[0].mxu0
        %v2312 = vadd.f32 0.0, %v2311
        %v2313 = vpop.f32.mrb[0].mxu0
        %v2314 = vadd.f32 0.0, %v2313
        %2315 = vmatprep.mubr.f32.mxu0 0.0
        %2316 = vmatmul.mubr.f32.gmra.mrb[0].mxu0 %v2233
        %v2317 = vpop.f32.mrb[0].mxu0
        %v2318 = vadd.f32 0.0, %v2317
        %v2319 = vpop.f32.mrb[0].mxu0
        %v2320 = vadd.f32 0.0, %v2319
        %2321 = vdwg.mxu0
        %v2322 = vadd.f32 %v2207, %v2306
        %v2323 = vadd.f32 %v2208, %v2308
        %v2324 = vadd.f32 %v2209, %v2312
        %v2325 = vadd.f32 %v2210, %v2314
        %v2326 = vadd.f32 %v2211, %v2318
        %v2327 = vadd.f32 %v2212, %v2320
        %s2328 = scalar_lea.vmem %s2, 432
        %v2329 = vld [vmem:[%s2328] sm:$0xff]
        %v2330 = vld [vmem:[%s2328 + $0x8] sm:$0xff]
        %v2331 = vld [vmem:[%s2328 + $0x10] sm:$0xff]
        %2332 = vrot.lane.b32.xlu0 %v284, 80
        %v2333 = vpop.permute.xlu0 %2332
        %2334 = vrot.lane.b32.xlu0 %v287, 80
        %v2335 = vpop.permute.xlu0 %2334
        %2336 = vrot.lane.b32.xlu0 %v285, 80
        %v2337 = vpop.permute.xlu0 %2336
        %vm2338 = vcmask 654336
        %v2339 = vsel %vm2338, %v2333, %v2335
        %v2340 = vsel %vm2338, %v2335, %v2337
        %v2342 = vsel %vm306, %v2329, 0
        %v2345 = vsel %vm306, %v2330, 0
        %v2348 = vsel %vm306, %v2331, 0
        %v2350 = vsel %vm316, %v2339, 0
        %v2352 = vsel %vm316, %v2340, 0
        %2354 = vmatprep.subr.mxu0 %v2352
        %2355 = vmatpush1.msra.mxu0 %v2350
        %2356 = vmatprep.subr.mxu0 0.0
        %2357 = vmatpush1.msra.mxu0 0.0
        %2358 = vmatprep.subr.mxu0 0.0
        %2359 = vmatpush1.msra.mxu0 0.0
        %2360 = vmatprep.subr.mxu0 0.0
        %2361 = vmatpush1.msra.mxu0 0.0
        %2362 = vmatprep.subr.mxu0 0.0
        %2363 = vmatpush1.msra.mxu0 0.0
        %2364 = vmatprep.subr.mxu0 0.0
        %2365 = vmatpush1.msra.mxu0 0.0
        %2366 = vmatprep.subr.mxu0 0.0
        %2367 = vmatpush1.msra.mxu0 0.0
        %2368 = vmatprep.subr.mxu0 0.0
        %2369 = vmatpush1.msra.mxu0 0.0
        %2370 = vmatprep.subr.mxu0 0.0
        %2371 = vmatpush1.msra.mxu0 0.0
        %2372 = vmatprep.subr.mxu0 0.0
        %2373 = vmatpush1.msra.mxu0 0.0
        %2374 = vmatprep.subr.mxu0 0.0
        %2375 = vmatpush1.msra.mxu0 0.0
        %2376 = vmatprep.subr.mxu0 0.0
        %2377 = vmatpush1.msra.mxu0 0.0
        %2378 = vmatprep.subr.mxu0 0.0
        %2379 = vmatpush1.msra.mxu0 0.0
        %2380 = vmatprep.subr.mxu0 0.0
        %2381 = vmatpush1.msra.mxu0 0.0
        %2382 = vmatprep.subr.mxu0 0.0
        %2383 = vmatpush1.msra.mxu0 0.0
        %2384 = vmatprep.subr.mxu0 0.0
        %2385 = vmatpush1.msra.mxu0 0.0
        %2386 = vmatprep.subr.mxu0 0.0
        %2387 = vmatpush1.msra.mxu0 0.0
        %2388 = vmatprep.subr.mxu0 0.0
        %2389 = vmatpush1.msra.mxu0 0.0
        %2390 = vmatprep.subr.mxu0 0.0
        %2391 = vmatpush1.msra.mxu0 0.0
        %2392 = vmatprep.subr.mxu0 0.0
        %2393 = vmatpush1.msra.mxu0 0.0
        %2394 = vmatprep.subr.mxu0 0.0
        %2395 = vmatpush1.msra.mxu0 0.0
        %2396 = vmatprep.subr.mxu0 0.0
        %2397 = vmatpush1.msra.mxu0 0.0
        %2398 = vmatprep.subr.mxu0 0.0
        %2399 = vmatpush1.msra.mxu0 0.0
        %2400 = vmatprep.subr.mxu0 0.0
        %2401 = vmatpush1.msra.mxu0 0.0
        %2402 = vmatprep.subr.mxu0 0.0
        %2403 = vmatpush1.msra.mxu0 0.0
        %2404 = vmatprep.subr.mxu0 0.0
        %2405 = vmatpush1.msra.mxu0 0.0
        %2406 = vmatprep.subr.mxu0 0.0
        %2407 = vmatpush1.msra.mxu0 0.0
        %2408 = vmatprep.subr.mxu0 0.0
        %2409 = vmatpush1.msra.mxu0 0.0
        %2410 = vmatprep.subr.mxu0 0.0
        %2411 = vmatpush1.msra.mxu0 0.0
        %2412 = vmatprep.subr.mxu0 0.0
        %2413 = vmatpush1.msra.mxu0 0.0
        %2414 = vmatprep.subr.mxu0 0.0
        %2415 = vmatpush1.msra.mxu0 0.0
        %2416 = vmatprep.subr.mxu0 0.0
        %2417 = vmatpush1.msra.mxu0 0.0
        %2418 = vmatprep.mubr.f32.mxu0 0.0
        %2419 = vmatmul.mubr.f32.gmra.mrb[0].mxu0 %v2342
        %v2420 = vpop.f32.mrb[0].mxu0
        %v2421 = vadd.f32 0.0, %v2420
        %v2422 = vpop.f32.mrb[0].mxu0
        %v2423 = vadd.f32 0.0, %v2422
        %2424 = vmatprep.mubr.f32.mxu0 0.0
        %2425 = vmatmul.mubr.f32.gmra.mrb[0].mxu0 %v2345
        %v2426 = vpop.f32.mrb[0].mxu0
        %v2427 = vadd.f32 0.0, %v2426
        %v2428 = vpop.f32.mrb[0].mxu0
        %v2429 = vadd.f32 0.0, %v2428
        %2430 = vmatprep.mubr.f32.mxu0 0.0
        %2431 = vmatmul.mubr.f32.gmra.mrb[0].mxu0 %v2348
        %v2432 = vpop.f32.mrb[0].mxu0
        %v2433 = vadd.f32 0.0, %v2432
        %v2434 = vpop.f32.mrb[0].mxu0
        %v2435 = vadd.f32 0.0, %v2434
        %2436 = vdwg.mxu0
        %v2437 = vadd.f32 %v2322, %v2421
        %v2438 = vadd.f32 %v2323, %v2423
        %v2439 = vadd.f32 %v2324, %v2427
        %v2440 = vadd.f32 %v2325, %v2429
        %v2441 = vadd.f32 %v2326, %v2433
        %v2442 = vadd.f32 %v2327, %v2435
        %s2443 = scalar_lea.vmem %s2, 456
        %v2444 = vld [vmem:[%s2443] sm:$0xff]
        %v2445 = vld [vmem:[%s2443 + $0x8] sm:$0xff]
        %v2446 = vld [vmem:[%s2443 + $0x10] sm:$0xff]
        %2447 = vrot.lane.b32.xlu0 %v284, 79
        %v2448 = vpop.permute.xlu0 %2447
        %2449 = vrot.lane.b32.xlu0 %v287, 79
        %v2450 = vpop.permute.xlu0 %2449
        %2451 = vrot.lane.b32.xlu0 %v285, 79
        %v2452 = vpop.permute.xlu0 %2451
        %vm2453 = vcmask 646144
        %v2454 = vsel %vm2453, %v2448, %v2450
        %v2455 = vsel %vm2453, %v2450, %v2452
        %v2457 = vsel %vm306, %v2444, 0
        %v2460 = vsel %vm306, %v2445, 0
        %v2463 = vsel %vm306, %v2446, 0
        %v2465 = vsel %vm316, %v2454, 0
        %v2467 = vsel %vm316, %v2455, 0
        %2469 = vmatprep.subr.mxu0 %v2467
        %2470 = vmatpush1.msra.mxu0 %v2465
        %2471 = vmatprep.subr.mxu0 0.0
        %2472 = vmatpush1.msra.mxu0 0.0
        %2473 = vmatprep.subr.mxu0 0.0
        %2474 = vmatpush1.msra.mxu0 0.0
        %2475 = vmatprep.subr.mxu0 0.0
        %2476 = vmatpush1.msra.mxu0 0.0
        %2477 = vmatprep.subr.mxu0 0.0
        %2478 = vmatpush1.msra.mxu0 0.0
        %2479 = vmatprep.subr.mxu0 0.0
        %2480 = vmatpush1.msra.mxu0 0.0
        %2481 = vmatprep.subr.mxu0 0.0
        %2482 = vmatpush1.msra.mxu0 0.0
        %2483 = vmatprep.subr.mxu0 0.0
        %2484 = vmatpush1.msra.mxu0 0.0
        %2485 = vmatprep.subr.mxu0 0.0
        %2486 = vmatpush1.msra.mxu0 0.0
        %2487 = vmatprep.subr.mxu0 0.0
        %2488 = vmatpush1.msra.mxu0 0.0
        %2489 = vmatprep.subr.mxu0 0.0
        %2490 = vmatpush1.msra.mxu0 0.0
        %2491 = vmatprep.subr.mxu0 0.0
        %2492 = vmatpush1.msra.mxu0 0.0
        %2493 = vmatprep.subr.mxu0 0.0
        %2494 = vmatpush1.msra.mxu0 0.0
        %2495 = vmatprep.subr.mxu0 0.0
        %2496 = vmatpush1.msra.mxu0 0.0
        %2497 = vmatprep.subr.mxu0 0.0
        %2498 = vmatpush1.msra.mxu0 0.0
        %2499 = vmatprep.subr.mxu0 0.0
        %2500 = vmatpush1.msra.mxu0 0.0
        %2501 = vmatprep.subr.mxu0 0.0
        %2502 = vmatpush1.msra.mxu0 0.0
        %2503 = vmatprep.subr.mxu0 0.0
        %2504 = vmatpush1.msra.mxu0 0.0
        %2505 = vmatprep.subr.mxu0 0.0
        %2506 = vmatpush1.msra.mxu0 0.0
        %2507 = vmatprep.subr.mxu0 0.0
        %2508 = vmatpush1.msra.mxu0 0.0
        %2509 = vmatprep.subr.mxu0 0.0
        %2510 = vmatpush1.msra.mxu0 0.0
        %2511 = vmatprep.subr.mxu0 0.0
        %2512 = vmatpush1.msra.mxu0 0.0
        %2513 = vmatprep.subr.mxu0 0.0
        %2514 = vmatpush1.msra.mxu0 0.0
        %2515 = vmatprep.subr.mxu0 0.0
        %2516 = vmatpush1.msra.mxu0 0.0
        %2517 = vmatprep.subr.mxu0 0.0
        %2518 = vmatpush1.msra.mxu0 0.0
        %2519 = vmatprep.subr.mxu0 0.0
        %2520 = vmatpush1.msra.mxu0 0.0
        %2521 = vmatprep.subr.mxu0 0.0
        %2522 = vmatpush1.msra.mxu0 0.0
        %2523 = vmatprep.subr.mxu0 0.0
        %2524 = vmatpush1.msra.mxu0 0.0
        %2525 = vmatprep.subr.mxu0 0.0
        %2526 = vmatpush1.msra.mxu0 0.0
        %2527 = vmatprep.subr.mxu0 0.0
        %2528 = vmatpush1.msra.mxu0 0.0
        %2529 = vmatprep.subr.mxu0 0.0
        %2530 = vmatpush1.msra.mxu0 0.0
        %2531 = vmatprep.subr.mxu0 0.0
        %2532 = vmatpush1.msra.mxu0 0.0
        %2533 = vmatprep.mubr.f32.mxu0 0.0
        %2534 = vmatmul.mubr.f32.gmra.mrb[0].mxu0 %v2457
        %v2535 = vpop.f32.mrb[0].mxu0
        %v2536 = vadd.f32 0.0, %v2535
        %v2537 = vpop.f32.mrb[0].mxu0
        %v2538 = vadd.f32 0.0, %v2537
        %2539 = vmatprep.mubr.f32.mxu0 0.0
        %2540 = vmatmul.mubr.f32.gmra.mrb[0].mxu0 %v2460
        %v2541 = vpop.f32.mrb[0].mxu0
        %v2542 = vadd.f32 0.0, %v2541
        %v2543 = vpop.f32.mrb[0].mxu0
        %v2544 = vadd.f32 0.0, %v2543
        %2545 = vmatprep.mubr.f32.mxu0 0.0
        %2546 = vmatmul.mubr.f32.gmra.mrb[0].mxu0 %v2463
        %v2547 = vpop.f32.mrb[0].mxu0
        %v2548 = vadd.f32 0.0, %v2547
        %v2549 = vpop.f32.mrb[0].mxu0
        %v2550 = vadd.f32 0.0, %v2549
        %2551 = vdwg.mxu0
        %v2552 = vadd.f32 %v2437, %v2536
        %v2553 = vadd.f32 %v2438, %v2538
        %v2554 = vadd.f32 %v2439, %v2542
        %v2555 = vadd.f32 %v2440, %v2544
        %v2556 = vadd.f32 %v2441, %v2548
        %v2557 = vadd.f32 %v2442, %v2550
        %s2558 = scalar_lea.vmem %s2, 480
        %v2559 = vld [vmem:[%s2558] sm:$0xff]
        %v2560 = vld [vmem:[%s2558 + $0x8] sm:$0xff]
        %v2561 = vld [vmem:[%s2558 + $0x10] sm:$0xff]
        %2562 = vrot.lane.b32.xlu0 %v284, 78
        %v2563 = vpop.permute.xlu0 %2562
        %2564 = vrot.lane.b32.xlu0 %v287, 78
        %v2565 = vpop.permute.xlu0 %2564
        %2566 = vrot.lane.b32.xlu0 %v285, 78
        %v2567 = vpop.permute.xlu0 %2566
        %vm2568 = vcmask 637952
        %v2569 = vsel %vm2568, %v2563, %v2565
        %v2570 = vsel %vm2568, %v2565, %v2567
        %v2572 = vsel %vm306, %v2559, 0
        %v2575 = vsel %vm306, %v2560, 0
        %v2578 = vsel %vm306, %v2561, 0
        %v2580 = vsel %vm316, %v2569, 0
        %v2582 = vsel %vm316, %v2570, 0
        %2584 = vmatprep.subr.mxu0 %v2582
        %2585 = vmatpush1.msra.mxu0 %v2580
        %2586 = vmatprep.subr.mxu0 0.0
        %2587 = vmatpush1.msra.mxu0 0.0
        %2588 = vmatprep.subr.mxu0 0.0
        %2589 = vmatpush1.msra.mxu0 0.0
        %2590 = vmatprep.subr.mxu0 0.0
        %2591 = vmatpush1.msra.mxu0 0.0
        %2592 = vmatprep.subr.mxu0 0.0
        %2593 = vmatpush1.msra.mxu0 0.0
        %2594 = vmatprep.subr.mxu0 0.0
        %2595 = vmatpush1.msra.mxu0 0.0
        %2596 = vmatprep.subr.mxu0 0.0
        %2597 = vmatpush1.msra.mxu0 0.0
        %2598 = vmatprep.subr.mxu0 0.0
        %2599 = vmatpush1.msra.mxu0 0.0
        %2600 = vmatprep.subr.mxu0 0.0
        %2601 = vmatpush1.msra.mxu0 0.0
        %2602 = vmatprep.subr.mxu0 0.0
        %2603 = vmatpush1.msra.mxu0 0.0
        %2604 = vmatprep.subr.mxu0 0.0
        %2605 = vmatpush1.msra.mxu0 0.0
        %2606 = vmatprep.subr.mxu0 0.0
        %2607 = vmatpush1.msra.mxu0 0.0
        %2608 = vmatprep.subr.mxu0 0.0
        %2609 = vmatpush1.msra.mxu0 0.0
        %2610 = vmatprep.subr.mxu0 0.0
        %2611 = vmatpush1.msra.mxu0 0.0
        %2612 = vmatprep.subr.mxu0 0.0
        %2613 = vmatpush1.msra.mxu0 0.0
        %2614 = vmatprep.subr.mxu0 0.0
        %2615 = vmatpush1.msra.mxu0 0.0
        %2616 = vmatprep.subr.mxu0 0.0
        %2617 = vmatpush1.msra.mxu0 0.0
        %2618 = vmatprep.subr.mxu0 0.0
        %2619 = vmatpush1.msra.mxu0 0.0
        %2620 = vmatprep.subr.mxu0 0.0
        %2621 = vmatpush1.msra.mxu0 0.0
        %2622 = vmatprep.subr.mxu0 0.0
        %2623 = vmatpush1.msra.mxu0 0.0
        %2624 = vmatprep.subr.mxu0 0.0
        %2625 = vmatpush1.msra.mxu0 0.0
        %2626 = vmatprep.subr.mxu0 0.0
        %2627 = vmatpush1.msra.mxu0 0.0
        %2628 = vmatprep.subr.mxu0 0.0
        %2629 = vmatpush1.msra.mxu0 0.0
        %2630 = vmatprep.subr.mxu0 0.0
        %2631 = vmatpush1.msra.mxu0 0.0
        %2632 = vmatprep.subr.mxu0 0.0
        %2633 = vmatpush1.msra.mxu0 0.0
        %2634 = vmatprep.subr.mxu0 0.0
        %2635 = vmatpush1.msra.mxu0 0.0
        %2636 = vmatprep.subr.mxu0 0.0
        %2637 = vmatpush1.msra.mxu0 0.0
        %2638 = vmatprep.subr.mxu0 0.0
        %2639 = vmatpush1.msra.mxu0 0.0
        %2640 = vmatprep.subr.mxu0 0.0
        %2641 = vmatpush1.msra.mxu0 0.0
        %2642 = vmatprep.subr.mxu0 0.0
        %2643 = vmatpush1.msra.mxu0 0.0
        %2644 = vmatprep.subr.mxu0 0.0
        %2645 = vmatpush1.msra.mxu0 0.0
        %2646 = vmatprep.subr.mxu0 0.0
        %2647 = vmatpush1.msra.mxu0 0.0
        %2648 = vmatprep.mubr.f32.mxu0 0.0
        %2649 = vmatmul.mubr.f32.gmra.mrb[0].mxu0 %v2572
        %v2650 = vpop.f32.mrb[0].mxu0
        %v2651 = vadd.f32 0.0, %v2650
        %v2652 = vpop.f32.mrb[0].mxu0
        %v2653 = vadd.f32 0.0, %v2652
        %2654 = vmatprep.mubr.f32.mxu0 0.0
        %2655 = vmatmul.mubr.f32.gmra.mrb[0].mxu0 %v2575
        %v2656 = vpop.f32.mrb[0].mxu0
        %v2657 = vadd.f32 0.0, %v2656
        %v2658 = vpop.f32.mrb[0].mxu0
        %v2659 = vadd.f32 0.0, %v2658
        %2660 = vmatprep.mubr.f32.mxu0 0.0
        %2661 = vmatmul.mubr.f32.gmra.mrb[0].mxu0 %v2578
        %v2662 = vpop.f32.mrb[0].mxu0
        %v2663 = vadd.f32 0.0, %v2662
        %v2664 = vpop.f32.mrb[0].mxu0
        %v2665 = vadd.f32 0.0, %v2664
        %2666 = vdwg.mxu0
        %v2667 = vadd.f32 %v2552, %v2651
        %v2668 = vadd.f32 %v2553, %v2653
        %v2669 = vadd.f32 %v2554, %v2657
        %v2670 = vadd.f32 %v2555, %v2659
        %v2671 = vadd.f32 %v2556, %v2663
        %v2672 = vadd.f32 %v2557, %v2665
        %v2673 = vadd.f32 %v1874, %v2667
        %v2674 = vadd.f32 %v1875, %v2668
        %v2675 = vadd.f32 %v1876, %v2669
        %v2676 = vadd.f32 %v1877, %v2670
        %v2677 = vadd.f32 %v1878, %v2671
        %v2678 = vadd.f32 %v1879, %v2672
        %s2679 = scalar_lea.vmem %s2, 504
        %v2680 = vld [vmem:[%s2679] sm:$0xff]
        %v2681 = vld [vmem:[%s2679 + $0x8] sm:$0xff]
        %v2682 = vld [vmem:[%s2679 + $0x10] sm:$0xff]
        %s2683 = scalar_lea.vmem %s2, 528
        %v2684 = vld [vmem:[%s2683] sm:$0xff]
        %v2685 = vld [vmem:[%s2683 + $0x8] sm:$0xff]
        %v2686 = vld [vmem:[%s2683 + $0x10] sm:$0xff]
        %2687 = vrot.lane.b32.xlu0 %v284, 61
        %v2688 = vpop.permute.xlu0 %2687
        %2689 = vrot.lane.b32.xlu0 %v287, 61
        %v2690 = vpop.permute.xlu0 %2689
        %2691 = vrot.lane.b32.xlu0 %v285, 61
        %v2692 = vpop.permute.xlu0 %2691
        %vm2693 = vcmask 498688
        %v2694 = vsel %vm2693, %v2688, %v2690
        %v2695 = vsel %vm2693, %v2690, %v2692
        %v2697 = vsel %vm306, %v2684, 0
        %v2700 = vsel %vm306, %v2685, 0
        %v2703 = vsel %vm306, %v2686, 0
        %v2705 = vsel %vm316, %v2694, 0
        %v2707 = vsel %vm316, %v2695, 0
        %2709 = vmatprep.subr.mxu0 %v2707
        %2710 = vmatpush1.msra.mxu0 %v2705
        %2711 = vmatprep.subr.mxu0 0.0
        %2712 = vmatpush1.msra.mxu0 0.0
        %2713 = vmatprep.subr.mxu0 0.0
        %2714 = vmatpush1.msra.mxu0 0.0
        %2715 = vmatprep.subr.mxu0 0.0
        %2716 = vmatpush1.msra.mxu0 0.0
        %2717 = vmatprep.subr.mxu0 0.0
        %2718 = vmatpush1.msra.mxu0 0.0
        %2719 = vmatprep.subr.mxu0 0.0
        %2720 = vmatpush1.msra.mxu0 0.0
        %2721 = vmatprep.subr.mxu0 0.0
        %2722 = vmatpush1.msra.mxu0 0.0
        %2723 = vmatprep.subr.mxu0 0.0
        %2724 = vmatpush1.msra.mxu0 0.0
        %2725 = vmatprep.subr.mxu0 0.0
        %2726 = vmatpush1.msra.mxu0 0.0
        %2727 = vmatprep.subr.mxu0 0.0
        %2728 = vmatpush1.msra.mxu0 0.0
        %2729 = vmatprep.subr.mxu0 0.0
        %2730 = vmatpush1.msra.mxu0 0.0
        %2731 = vmatprep.subr.mxu0 0.0
        %2732 = vmatpush1.msra.mxu0 0.0
        %2733 = vmatprep.subr.mxu0 0.0
        %2734 = vmatpush1.msra.mxu0 0.0
        %2735 = vmatprep.subr.mxu0 0.0
        %2736 = vmatpush1.msra.mxu0 0.0
        %2737 = vmatprep.subr.mxu0 0.0
        %2738 = vmatpush1.msra.mxu0 0.0
        %2739 = vmatprep.subr.mxu0 0.0
        %2740 = vmatpush1.msra.mxu0 0.0
        %2741 = vmatprep.subr.mxu0 0.0
        %2742 = vmatpush1.msra.mxu0 0.0
        %2743 = vmatprep.subr.mxu0 0.0
        %2744 = vmatpush1.msra.mxu0 0.0
        %2745 = vmatprep.subr.mxu0 0.0
        %2746 = vmatpush1.msra.mxu0 0.0
        %2747 = vmatprep.subr.mxu0 0.0
        %2748 = vmatpush1.msra.mxu0 0.0
        %2749 = vmatprep.subr.mxu0 0.0
        %2750 = vmatpush1.msra.mxu0 0.0
        %2751 = vmatprep.subr.mxu0 0.0
        %2752 = vmatpush1.msra.mxu0 0.0
        %2753 = vmatprep.subr.mxu0 0.0
        %2754 = vmatpush1.msra.mxu0 0.0
        %2755 = vmatprep.subr.mxu0 0.0
        %2756 = vmatpush1.msra.mxu0 0.0
        %2757 = vmatprep.subr.mxu0 0.0
        %2758 = vmatpush1.msra.mxu0 0.0
        %2759 = vmatprep.subr.mxu0 0.0
        %2760 = vmatpush1.msra.mxu0 0.0
        %2761 = vmatprep.subr.mxu0 0.0
        %2762 = vmatpush1.msra.mxu0 0.0
        %2763 = vmatprep.subr.mxu0 0.0
        %2764 = vmatpush1.msra.mxu0 0.0
        %2765 = vmatprep.subr.mxu0 0.0
        %2766 = vmatpush1.msra.mxu0 0.0
        %2767 = vmatprep.subr.mxu0 0.0
        %2768 = vmatpush1.msra.mxu0 0.0
        %2769 = vmatprep.subr.mxu0 0.0
        %2770 = vmatpush1.msra.mxu0 0.0
        %2771 = vmatprep.subr.mxu0 0.0
        %2772 = vmatpush1.msra.mxu0 0.0
        %2773 = vmatprep.mubr.f32.mxu0 0.0
        %2774 = vmatmul.mubr.f32.gmra.mrb[0].mxu0 %v2697
        %v2775 = vpop.f32.mrb[0].mxu0
        %v2776 = vadd.f32 0.0, %v2775
        %v2777 = vpop.f32.mrb[0].mxu0
        %v2778 = vadd.f32 0.0, %v2777
        %2779 = vmatprep.mubr.f32.mxu0 0.0
        %2780 = vmatmul.mubr.f32.gmra.mrb[0].mxu0 %v2700
        %v2781 = vpop.f32.mrb[0].mxu0
        %v2782 = vadd.f32 0.0, %v2781
        %v2783 = vpop.f32.mrb[0].mxu0
        %v2784 = vadd.f32 0.0, %v2783
        %2785 = vmatprep.mubr.f32.mxu0 0.0
        %2786 = vmatmul.mubr.f32.gmra.mrb[0].mxu0 %v2703
        %v2787 = vpop.f32.mrb[0].mxu0
        %v2788 = vadd.f32 0.0, %v2787
        %v2789 = vpop.f32.mrb[0].mxu0
        %v2790 = vadd.f32 0.0, %v2789
        %2791 = vdwg.mxu0
        %2792 = vrot.lane.b32.xlu0 %v284, 62
        %v2793 = vpop.permute.xlu0 %2792
        %2794 = vrot.lane.b32.xlu0 %v287, 62
        %v2795 = vpop.permute.xlu0 %2794
        %2796 = vrot.lane.b32.xlu0 %v285, 62
        %v2797 = vpop.permute.xlu0 %2796
        %vm2798 = vcmask 506880
        %v2799 = vsel %vm2798, %v2793, %v2795
        %v2800 = vsel %vm2798, %v2795, %v2797
        %v2802 = vsel %vm306, %v2680, 0
        %v2805 = vsel %vm306, %v2681, 0
        %v2808 = vsel %vm306, %v2682, 0
        %v2810 = vsel %vm316, %v2799, 0
        %v2812 = vsel %vm316, %v2800, 0
        %2814 = vmatprep.subr.mxu0 %v2812
        %2815 = vmatpush1.msra.mxu0 %v2810
        %2816 = vmatprep.subr.mxu0 0.0
        %2817 = vmatpush1.msra.mxu0 0.0
        %2818 = vmatprep.subr.mxu0 0.0
        %2819 = vmatpush1.msra.mxu0 0.0
        %2820 = vmatprep.subr.mxu0 0.0
        %2821 = vmatpush1.msra.mxu0 0.0
        %2822 = vmatprep.subr.mxu0 0.0
        %2823 = vmatpush1.msra.mxu0 0.0
        %2824 = vmatprep.subr.mxu0 0.0
        %2825 = vmatpush1.msra.mxu0 0.0
        %2826 = vmatprep.subr.mxu0 0.0
        %2827 = vmatpush1.msra.mxu0 0.0
        %2828 = vmatprep.subr.mxu0 0.0
        %2829 = vmatpush1.msra.mxu0 0.0
        %2830 = vmatprep.subr.mxu0 0.0
        %2831 = vmatpush1.msra.mxu0 0.0
        %2832 = vmatprep.subr.mxu0 0.0
        %2833 = vmatpush1.msra.mxu0 0.0
        %2834 = vmatprep.subr.mxu0 0.0
        %2835 = vmatpush1.msra.mxu0 0.0
        %2836 = vmatprep.subr.mxu0 0.0
        %2837 = vmatpush1.msra.mxu0 0.0
        %2838 = vmatprep.subr.mxu0 0.0
        %2839 = vmatpush1.msra.mxu0 0.0
        %2840 = vmatprep.subr.mxu0 0.0
        %2841 = vmatpush1.msra.mxu0 0.0
        %2842 = vmatprep.subr.mxu0 0.0
        %2843 = vmatpush1.msra.mxu0 0.0
        %2844 = vmatprep.subr.mxu0 0.0
        %2845 = vmatpush1.msra.mxu0 0.0
        %2846 = vmatprep.subr.mxu0 0.0
        %2847 = vmatpush1.msra.mxu0 0.0
        %2848 = vmatprep.subr.mxu0 0.0
        %2849 = vmatpush1.msra.mxu0 0.0
        %2850 = vmatprep.subr.mxu0 0.0
        %2851 = vmatpush1.msra.mxu0 0.0
        %2852 = vmatprep.subr.mxu0 0.0
        %2853 = vmatpush1.msra.mxu0 0.0
        %2854 = vmatprep.subr.mxu0 0.0
        %2855 = vmatpush1.msra.mxu0 0.0
        %2856 = vmatprep.subr.mxu0 0.0
        %2857 = vmatpush1.msra.mxu0 0.0
        %2858 = vmatprep.subr.mxu0 0.0
        %2859 = vmatpush1.msra.mxu0 0.0
        %2860 = vmatprep.subr.mxu0 0.0
        %2861 = vmatpush1.msra.mxu0 0.0
        %2862 = vmatprep.subr.mxu0 0.0
        %2863 = vmatpush1.msra.mxu0 0.0
        %2864 = vmatprep.subr.mxu0 0.0
        %2865 = vmatpush1.msra.mxu0 0.0
        %2866 = vmatprep.subr.mxu0 0.0
        %2867 = vmatpush1.msra.mxu0 0.0
        %2868 = vmatprep.subr.mxu0 0.0
        %2869 = vmatpush1.msra.mxu0 0.0
        %2870 = vmatprep.subr.mxu0 0.0
        %2871 = vmatpush1.msra.mxu0 0.0
        %2872 = vmatprep.subr.mxu0 0.0
        %2873 = vmatpush1.msra.mxu0 0.0
        %2874 = vmatprep.subr.mxu0 0.0
        %2875 = vmatpush1.msra.mxu0 0.0
        %2876 = vmatprep.subr.mxu0 0.0
        %2877 = vmatpush1.msra.mxu0 0.0
        %2878 = vmatprep.mubr.f32.mxu0 0.0
        %2879 = vmatmul.mubr.f32.gmra.mrb[0].mxu0 %v2802
        %v2880 = vpop.f32.mrb[0].mxu0
        %v2881 = vadd.f32 %v2776, %v2880
        %v2882 = vpop.f32.mrb[0].mxu0
        %v2883 = vadd.f32 %v2778, %v2882
        %2884 = vmatprep.mubr.f32.mxu0 0.0
        %2885 = vmatmul.mubr.f32.gmra.mrb[0].mxu0 %v2805
        %v2886 = vpop.f32.mrb[0].mxu0
        %v2887 = vadd.f32 %v2782, %v2886
        %v2888 = vpop.f32.mrb[0].mxu0
        %v2889 = vadd.f32 %v2784, %v2888
        %2890 = vmatprep.mubr.f32.mxu0 0.0
        %2891 = vmatmul.mubr.f32.gmra.mrb[0].mxu0 %v2808
        %v2892 = vpop.f32.mrb[0].mxu0
        %v2893 = vadd.f32 %v2788, %v2892
        %v2894 = vpop.f32.mrb[0].mxu0
        %v2895 = vadd.f32 %v2790, %v2894
        %2896 = vdwg.mxu0
        %s2897 = scalar_lea.vmem %s2, 552
        %v2898 = vld [vmem:[%s2897] sm:$0xff]
        %v2899 = vld [vmem:[%s2897 + $0x8] sm:$0xff]
        %v2900 = vld [vmem:[%s2897 + $0x10] sm:$0xff]
        %2901 = vrot.lane.b32.xlu0 %v284, 60
        %v2902 = vpop.permute.xlu0 %2901
        %2903 = vrot.lane.b32.xlu0 %v287, 60
        %v2904 = vpop.permute.xlu0 %2903
        %2905 = vrot.lane.b32.xlu0 %v285, 60
        %v2906 = vpop.permute.xlu0 %2905
        %vm2907 = vcmask 490496
        %v2908 = vsel %vm2907, %v2902, %v2904
        %v2909 = vsel %vm2907, %v2904, %v2906
        %v2911 = vsel %vm306, %v2898, 0
        %v2914 = vsel %vm306, %v2899, 0
        %v2917 = vsel %vm306, %v2900, 0
        %v2919 = vsel %vm316, %v2908, 0
        %v2921 = vsel %vm316, %v2909, 0
        %2923 = vmatprep.subr.mxu0 %v2921
        %2924 = vmatpush1.msra.mxu0 %v2919
        %2925 = vmatprep.subr.mxu0 0.0
        %2926 = vmatpush1.msra.mxu0 0.0
        %2927 = vmatprep.subr.mxu0 0.0
        %2928 = vmatpush1.msra.mxu0 0.0
        %2929 = vmatprep.subr.mxu0 0.0
        %2930 = vmatpush1.msra.mxu0 0.0
        %2931 = vmatprep.subr.mxu0 0.0
        %2932 = vmatpush1.msra.mxu0 0.0
        %2933 = vmatprep.subr.mxu0 0.0
        %2934 = vmatpush1.msra.mxu0 0.0
        %2935 = vmatprep.subr.mxu0 0.0
        %2936 = vmatpush1.msra.mxu0 0.0
        %2937 = vmatprep.subr.mxu0 0.0
        %2938 = vmatpush1.msra.mxu0 0.0
        %2939 = vmatprep.subr.mxu0 0.0
        %2940 = vmatpush1.msra.mxu0 0.0
        %2941 = vmatprep.subr.mxu0 0.0
        %2942 = vmatpush1.msra.mxu0 0.0
        %2943 = vmatprep.subr.mxu0 0.0
        %2944 = vmatpush1.msra.mxu0 0.0
        %2945 = vmatprep.subr.mxu0 0.0
        %2946 = vmatpush1.msra.mxu0 0.0
        %2947 = vmatprep.subr.mxu0 0.0
        %2948 = vmatpush1.msra.mxu0 0.0
        %2949 = vmatprep.subr.mxu0 0.0
        %2950 = vmatpush1.msra.mxu0 0.0
        %2951 = vmatprep.subr.mxu0 0.0
        %2952 = vmatpush1.msra.mxu0 0.0
        %2953 = vmatprep.subr.mxu0 0.0
        %2954 = vmatpush1.msra.mxu0 0.0
        %2955 = vmatprep.subr.mxu0 0.0
        %2956 = vmatpush1.msra.mxu0 0.0
        %2957 = vmatprep.subr.mxu0 0.0
        %2958 = vmatpush1.msra.mxu0 0.0
        %2959 = vmatprep.subr.mxu0 0.0
        %2960 = vmatpush1.msra.mxu0 0.0
        %2961 = vmatprep.subr.mxu0 0.0
        %2962 = vmatpush1.msra.mxu0 0.0
        %2963 = vmatprep.subr.mxu0 0.0
        %2964 = vmatpush1.msra.mxu0 0.0
        %2965 = vmatprep.subr.mxu0 0.0
        %2966 = vmatpush1.msra.mxu0 0.0
        %2967 = vmatprep.subr.mxu0 0.0
        %2968 = vmatpush1.msra.mxu0 0.0
        %2969 = vmatprep.subr.mxu0 0.0
        %2970 = vmatpush1.msra.mxu0 0.0
        %2971 = vmatprep.subr.mxu0 0.0
        %2972 = vmatpush1.msra.mxu0 0.0
        %2973 = vmatprep.subr.mxu0 0.0
        %2974 = vmatpush1.msra.mxu0 0.0
        %2975 = vmatprep.subr.mxu0 0.0
        %2976 = vmatpush1.msra.mxu0 0.0
        %2977 = vmatprep.subr.mxu0 0.0
        %2978 = vmatpush1.msra.mxu0 0.0
        %2979 = vmatprep.subr.mxu0 0.0
        %2980 = vmatpush1.msra.mxu0 0.0
        %2981 = vmatprep.subr.mxu0 0.0
        %2982 = vmatpush1.msra.mxu0 0.0
        %2983 = vmatprep.subr.mxu0 0.0
        %2984 = vmatpush1.msra.mxu0 0.0
        %2985 = vmatprep.subr.mxu0 0.0
        %2986 = vmatpush1.msra.mxu0 0.0
        %2987 = vmatprep.mubr.f32.mxu0 0.0
        %2988 = vmatmul.mubr.f32.gmra.mrb[0].mxu0 %v2911
        %v2989 = vpop.f32.mrb[0].mxu0
        %v2990 = vadd.f32 0.0, %v2989
        %v2991 = vpop.f32.mrb[0].mxu0
        %v2992 = vadd.f32 0.0, %v2991
        %2993 = vmatprep.mubr.f32.mxu0 0.0
        %2994 = vmatmul.mubr.f32.gmra.mrb[0].mxu0 %v2914
        %v2995 = vpop.f32.mrb[0].mxu0
        %v2996 = vadd.f32 0.0, %v2995
        %v2997 = vpop.f32.mrb[0].mxu0
        %v2998 = vadd.f32 0.0, %v2997
        %2999 = vmatprep.mubr.f32.mxu0 0.0
        %3000 = vmatmul.mubr.f32.gmra.mrb[0].mxu0 %v2917
        %v3001 = vpop.f32.mrb[0].mxu0
        %v3002 = vadd.f32 0.0, %v3001
        %v3003 = vpop.f32.mrb[0].mxu0
        %v3004 = vadd.f32 0.0, %v3003
        %3005 = vdwg.mxu0
        %v3006 = vadd.f32 %v2881, %v2990
        %v3007 = vadd.f32 %v2883, %v2992
        %v3008 = vadd.f32 %v2887, %v2996
        %v3009 = vadd.f32 %v2889, %v2998
        %v3010 = vadd.f32 %v2893, %v3002
        %v3011 = vadd.f32 %v2895, %v3004
        %s3012 = scalar_lea.vmem %s2, 576
        %v3013 = vld [vmem:[%s3012] sm:$0xff]
        %v3014 = vld [vmem:[%s3012 + $0x8] sm:$0xff]
        %v3015 = vld [vmem:[%s3012 + $0x10] sm:$0xff]
        %3016 = vrot.lane.b32.xlu0 %v284, 59
        %v3017 = vpop.permute.xlu0 %3016
        %3018 = vrot.lane.b32.xlu0 %v287, 59
        %v3019 = vpop.permute.xlu0 %3018
        %3020 = vrot.lane.b32.xlu0 %v285, 59
        %v3021 = vpop.permute.xlu0 %3020
        %vm3022 = vcmask 482304
        %v3023 = vsel %vm3022, %v3017, %v3019
        %v3024 = vsel %vm3022, %v3019, %v3021
        %v3026 = vsel %vm306, %v3013, 0
        %v3029 = vsel %vm306, %v3014, 0
        %v3032 = vsel %vm306, %v3015, 0
        %v3034 = vsel %vm316, %v3023, 0
        %v3036 = vsel %vm316, %v3024, 0
        %3038 = vmatprep.subr.mxu0 %v3036
        %3039 = vmatpush1.msra.mxu0 %v3034
        %3040 = vmatprep.subr.mxu0 0.0
        %3041 = vmatpush1.msra.mxu0 0.0
        %3042 = vmatprep.subr.mxu0 0.0
        %3043 = vmatpush1.msra.mxu0 0.0
        %3044 = vmatprep.subr.mxu0 0.0
        %3045 = vmatpush1.msra.mxu0 0.0
        %3046 = vmatprep.subr.mxu0 0.0
        %3047 = vmatpush1.msra.mxu0 0.0
        %3048 = vmatprep.subr.mxu0 0.0
        %3049 = vmatpush1.msra.mxu0 0.0
        %3050 = vmatprep.subr.mxu0 0.0
        %3051 = vmatpush1.msra.mxu0 0.0
        %3052 = vmatprep.subr.mxu0 0.0
        %3053 = vmatpush1.msra.mxu0 0.0
        %3054 = vmatprep.subr.mxu0 0.0
        %3055 = vmatpush1.msra.mxu0 0.0
        %3056 = vmatprep.subr.mxu0 0.0
        %3057 = vmatpush1.msra.mxu0 0.0
        %3058 = vmatprep.subr.mxu0 0.0
        %3059 = vmatpush1.msra.mxu0 0.0
        %3060 = vmatprep.subr.mxu0 0.0
        %3061 = vmatpush1.msra.mxu0 0.0
        %3062 = vmatprep.subr.mxu0 0.0
        %3063 = vmatpush1.msra.mxu0 0.0
        %3064 = vmatprep.subr.mxu0 0.0
        %3065 = vmatpush1.msra.mxu0 0.0
        %3066 = vmatprep.subr.mxu0 0.0
        %3067 = vmatpush1.msra.mxu0 0.0
        %3068 = vmatprep.subr.mxu0 0.0
        %3069 = vmatpush1.msra.mxu0 0.0
        %3070 = vmatprep.subr.mxu0 0.0
        %3071 = vmatpush1.msra.mxu0 0.0
        %3072 = vmatprep.subr.mxu0 0.0
        %3073 = vmatpush1.msra.mxu0 0.0
        %3074 = vmatprep.subr.mxu0 0.0
        %3075 = vmatpush1.msra.mxu0 0.0
        %3076 = vmatprep.subr.mxu0 0.0
        %3077 = vmatpush1.msra.mxu0 0.0
        %3078 = vmatprep.subr.mxu0 0.0
        %3079 = vmatpush1.msra.mxu0 0.0
        %3080 = vmatprep.subr.mxu0 0.0
        %3081 = vmatpush1.msra.mxu0 0.0
        %3082 = vmatprep.subr.mxu0 0.0
        %3083 = vmatpush1.msra.mxu0 0.0
        %3084 = vmatprep.subr.mxu0 0.0
        %3085 = vmatpush1.msra.mxu0 0.0
        %3086 = vmatprep.subr.mxu0 0.0
        %3087 = vmatpush1.msra.mxu0 0.0
        %3088 = vmatprep.subr.mxu0 0.0
        %3089 = vmatpush1.msra.mxu0 0.0
        %3090 = vmatprep.subr.mxu0 0.0
        %3091 = vmatpush1.msra.mxu0 0.0
        %3092 = vmatprep.subr.mxu0 0.0
        %3093 = vmatpush1.msra.mxu0 0.0
        %3094 = vmatprep.subr.mxu0 0.0
        %3095 = vmatpush1.msra.mxu0 0.0
        %3096 = vmatprep.subr.mxu0 0.0
        %3097 = vmatpush1.msra.mxu0 0.0
        %3098 = vmatprep.subr.mxu0 0.0
        %3099 = vmatpush1.msra.mxu0 0.0
        %3100 = vmatprep.subr.mxu0 0.0
        %3101 = vmatpush1.msra.mxu0 0.0
        %3102 = vmatprep.mubr.f32.mxu0 0.0
        %3103 = vmatmul.mubr.f32.gmra.mrb[0].mxu0 %v3026
        %v3104 = vpop.f32.mrb[0].mxu0
        %v3105 = vadd.f32 0.0, %v3104
        %v3106 = vpop.f32.mrb[0].mxu0
        %v3107 = vadd.f32 0.0, %v3106
        %3108 = vmatprep.mubr.f32.mxu0 0.0
        %3109 = vmatmul.mubr.f32.gmra.mrb[0].mxu0 %v3029
        %v3110 = vpop.f32.mrb[0].mxu0
        %v3111 = vadd.f32 0.0, %v3110
        %v3112 = vpop.f32.mrb[0].mxu0
        %v3113 = vadd.f32 0.0, %v3112
        %3114 = vmatprep.mubr.f32.mxu0 0.0
        %3115 = vmatmul.mubr.f32.gmra.mrb[0].mxu0 %v3032
        %v3116 = vpop.f32.mrb[0].mxu0
        %v3117 = vadd.f32 0.0, %v3116
        %v3118 = vpop.f32.mrb[0].mxu0
        %v3119 = vadd.f32 0.0, %v3118
        %3120 = vdwg.mxu0
        %v3121 = vadd.f32 %v3006, %v3105
        %v3122 = vadd.f32 %v3007, %v3107
        %v3123 = vadd.f32 %v3008, %v3111
        %v3124 = vadd.f32 %v3009, %v3113
        %v3125 = vadd.f32 %v3010, %v3117
        %v3126 = vadd.f32 %v3011, %v3119
        %s3127 = scalar_lea.vmem %s2, 600
        %v3128 = vld [vmem:[%s3127] sm:$0xff]
        %v3129 = vld [vmem:[%s3127 + $0x8] sm:$0xff]
        %v3130 = vld [vmem:[%s3127 + $0x10] sm:$0xff]
        %3131 = vrot.lane.b32.xlu0 %v284, 58
        %v3132 = vpop.permute.xlu0 %3131
        %3133 = vrot.lane.b32.xlu0 %v287, 58
        %v3134 = vpop.permute.xlu0 %3133
        %3135 = vrot.lane.b32.xlu0 %v285, 58
        %v3136 = vpop.permute.xlu0 %3135
        %vm3137 = vcmask 474112
        %v3138 = vsel %vm3137, %v3132, %v3134
        %v3139 = vsel %vm3137, %v3134, %v3136
        %v3141 = vsel %vm306, %v3128, 0
        %v3144 = vsel %vm306, %v3129, 0
        %v3147 = vsel %vm306, %v3130, 0
        %v3149 = vsel %vm316, %v3138, 0
        %v3151 = vsel %vm316, %v3139, 0
        %3153 = vmatprep.subr.mxu0 %v3151
        %3154 = vmatpush1.msra.mxu0 %v3149
        %3155 = vmatprep.subr.mxu0 0.0
        %3156 = vmatpush1.msra.mxu0 0.0
        %3157 = vmatprep.subr.mxu0 0.0
        %3158 = vmatpush1.msra.mxu0 0.0
        %3159 = vmatprep.subr.mxu0 0.0
        %3160 = vmatpush1.msra.mxu0 0.0
        %3161 = vmatprep.subr.mxu0 0.0
        %3162 = vmatpush1.msra.mxu0 0.0
        %3163 = vmatprep.subr.mxu0 0.0
        %3164 = vmatpush1.msra.mxu0 0.0
        %3165 = vmatprep.subr.mxu0 0.0
        %3166 = vmatpush1.msra.mxu0 0.0
        %3167 = vmatprep.subr.mxu0 0.0
        %3168 = vmatpush1.msra.mxu0 0.0
        %3169 = vmatprep.subr.mxu0 0.0
        %3170 = vmatpush1.msra.mxu0 0.0
        %3171 = vmatprep.subr.mxu0 0.0
        %3172 = vmatpush1.msra.mxu0 0.0
        %3173 = vmatprep.subr.mxu0 0.0
        %3174 = vmatpush1.msra.mxu0 0.0
        %3175 = vmatprep.subr.mxu0 0.0
        %3176 = vmatpush1.msra.mxu0 0.0
        %3177 = vmatprep.subr.mxu0 0.0
        %3178 = vmatpush1.msra.mxu0 0.0
        %3179 = vmatprep.subr.mxu0 0.0
        %3180 = vmatpush1.msra.mxu0 0.0
        %3181 = vmatprep.subr.mxu0 0.0
        %3182 = vmatpush1.msra.mxu0 0.0
        %3183 = vmatprep.subr.mxu0 0.0
        %3184 = vmatpush1.msra.mxu0 0.0
        %3185 = vmatprep.subr.mxu0 0.0
        %3186 = vmatpush1.msra.mxu0 0.0
        %3187 = vmatprep.subr.mxu0 0.0
        %3188 = vmatpush1.msra.mxu0 0.0
        %3189 = vmatprep.subr.mxu0 0.0
        %3190 = vmatpush1.msra.mxu0 0.0
        %3191 = vmatprep.subr.mxu0 0.0
        %3192 = vmatpush1.msra.mxu0 0.0
        %3193 = vmatprep.subr.mxu0 0.0
        %3194 = vmatpush1.msra.mxu0 0.0
        %3195 = vmatprep.subr.mxu0 0.0
        %3196 = vmatpush1.msra.mxu0 0.0
        %3197 = vmatprep.subr.mxu0 0.0
        %3198 = vmatpush1.msra.mxu0 0.0
        %3199 = vmatprep.subr.mxu0 0.0
        %3200 = vmatpush1.msra.mxu0 0.0
        %3201 = vmatprep.subr.mxu0 0.0
        %3202 = vmatpush1.msra.mxu0 0.0
        %3203 = vmatprep.subr.mxu0 0.0
        %3204 = vmatpush1.msra.mxu0 0.0
        %3205 = vmatprep.subr.mxu0 0.0
        %3206 = vmatpush1.msra.mxu0 0.0
        %3207 = vmatprep.subr.mxu0 0.0
        %3208 = vmatpush1.msra.mxu0 0.0
        %3209 = vmatprep.subr.mxu0 0.0
        %3210 = vmatpush1.msra.mxu0 0.0
        %3211 = vmatprep.subr.mxu0 0.0
        %3212 = vmatpush1.msra.mxu0 0.0
        %3213 = vmatprep.subr.mxu0 0.0
        %3214 = vmatpush1.msra.mxu0 0.0
        %3215 = vmatprep.subr.mxu0 0.0
        %3216 = vmatpush1.msra.mxu0 0.0
        %3217 = vmatprep.mubr.f32.mxu0 0.0
        %3218 = vmatmul.mubr.f32.gmra.mrb[0].mxu0 %v3141
        %v3219 = vpop.f32.mrb[0].mxu0
        %v3220 = vadd.f32 0.0, %v3219
        %v3221 = vpop.f32.mrb[0].mxu0
        %v3222 = vadd.f32 0.0, %v3221
        %3223 = vmatprep.mubr.f32.mxu0 0.0
        %3224 = vmatmul.mubr.f32.gmra.mrb[0].mxu0 %v3144
        %v3225 = vpop.f32.mrb[0].mxu0
        %v3226 = vadd.f32 0.0, %v3225
        %v3227 = vpop.f32.mrb[0].mxu0
        %v3228 = vadd.f32 0.0, %v3227
        %3229 = vmatprep.mubr.f32.mxu0 0.0
        %3230 = vmatmul.mubr.f32.gmra.mrb[0].mxu0 %v3147
        %v3231 = vpop.f32.mrb[0].mxu0
        %v3232 = vadd.f32 0.0, %v3231
        %v3233 = vpop.f32.mrb[0].mxu0
        %v3234 = vadd.f32 0.0, %v3233
        %3235 = vdwg.mxu0
        %v3236 = vadd.f32 %v3121, %v3220
        %v3237 = vadd.f32 %v3122, %v3222
        %v3238 = vadd.f32 %v3123, %v3226
        %v3239 = vadd.f32 %v3124, %v3228
        %v3240 = vadd.f32 %v3125, %v3232
        %v3241 = vadd.f32 %v3126, %v3234
        %s3242 = scalar_lea.vmem %s2, 624
        %v3243 = vld [vmem:[%s3242] sm:$0xff]
        %v3244 = vld [vmem:[%s3242 + $0x8] sm:$0xff]
        %v3245 = vld [vmem:[%s3242 + $0x10] sm:$0xff]
        %3246 = vrot.lane.b32.xlu0 %v284, 57
        %v3247 = vpop.permute.xlu0 %3246
        %3248 = vrot.lane.b32.xlu0 %v287, 57
        %v3249 = vpop.permute.xlu0 %3248
        %3250 = vrot.lane.b32.xlu0 %v285, 57
        %v3251 = vpop.permute.xlu0 %3250
        %vm3252 = vcmask 465920
        %v3253 = vsel %vm3252, %v3247, %v3249
        %v3254 = vsel %vm3252, %v3249, %v3251
        %v3256 = vsel %vm306, %v3243, 0
        %v3259 = vsel %vm306, %v3244, 0
        %v3262 = vsel %vm306, %v3245, 0
        %v3264 = vsel %vm316, %v3253, 0
        %v3266 = vsel %vm316, %v3254, 0
        %3268 = vmatprep.subr.mxu0 %v3266
        %3269 = vmatpush1.msra.mxu0 %v3264
        %3270 = vmatprep.subr.mxu0 0.0
        %3271 = vmatpush1.msra.mxu0 0.0
        %3272 = vmatprep.subr.mxu0 0.0
        %3273 = vmatpush1.msra.mxu0 0.0
        %3274 = vmatprep.subr.mxu0 0.0
        %3275 = vmatpush1.msra.mxu0 0.0
        %3276 = vmatprep.subr.mxu0 0.0
        %3277 = vmatpush1.msra.mxu0 0.0
        %3278 = vmatprep.subr.mxu0 0.0
        %3279 = vmatpush1.msra.mxu0 0.0
        %3280 = vmatprep.subr.mxu0 0.0
        %3281 = vmatpush1.msra.mxu0 0.0
        %3282 = vmatprep.subr.mxu0 0.0
        %3283 = vmatpush1.msra.mxu0 0.0
        %3284 = vmatprep.subr.mxu0 0.0
        %3285 = vmatpush1.msra.mxu0 0.0
        %3286 = vmatprep.subr.mxu0 0.0
        %3287 = vmatpush1.msra.mxu0 0.0
        %3288 = vmatprep.subr.mxu0 0.0
        %3289 = vmatpush1.msra.mxu0 0.0
        %3290 = vmatprep.subr.mxu0 0.0
        %3291 = vmatpush1.msra.mxu0 0.0
        %3292 = vmatprep.subr.mxu0 0.0
        %3293 = vmatpush1.msra.mxu0 0.0
        %3294 = vmatprep.subr.mxu0 0.0
        %3295 = vmatpush1.msra.mxu0 0.0
        %3296 = vmatprep.subr.mxu0 0.0
        %3297 = vmatpush1.msra.mxu0 0.0
        %3298 = vmatprep.subr.mxu0 0.0
        %3299 = vmatpush1.msra.mxu0 0.0
        %3300 = vmatprep.subr.mxu0 0.0
        %3301 = vmatpush1.msra.mxu0 0.0
        %3302 = vmatprep.subr.mxu0 0.0
        %3303 = vmatpush1.msra.mxu0 0.0
        %3304 = vmatprep.subr.mxu0 0.0
        %3305 = vmatpush1.msra.mxu0 0.0
        %3306 = vmatprep.subr.mxu0 0.0
        %3307 = vmatpush1.msra.mxu0 0.0
        %3308 = vmatprep.subr.mxu0 0.0
        %3309 = vmatpush1.msra.mxu0 0.0
        %3310 = vmatprep.subr.mxu0 0.0
        %3311 = vmatpush1.msra.mxu0 0.0
        %3312 = vmatprep.subr.mxu0 0.0
        %3313 = vmatpush1.msra.mxu0 0.0
        %3314 = vmatprep.subr.mxu0 0.0
        %3315 = vmatpush1.msra.mxu0 0.0
        %3316 = vmatprep.subr.mxu0 0.0
        %3317 = vmatpush1.msra.mxu0 0.0
        %3318 = vmatprep.subr.mxu0 0.0
        %3319 = vmatpush1.msra.mxu0 0.0
        %3320 = vmatprep.subr.mxu0 0.0
        %3321 = vmatpush1.msra.mxu0 0.0
        %3322 = vmatprep.subr.mxu0 0.0
        %3323 = vmatpush1.msra.mxu0 0.0
        %3324 = vmatprep.subr.mxu0 0.0
        %3325 = vmatpush1.msra.mxu0 0.0
        %3326 = vmatprep.subr.mxu0 0.0
        %3327 = vmatpush1.msra.mxu0 0.0
        %3328 = vmatprep.subr.mxu0 0.0
        %3329 = vmatpush1.msra.mxu0 0.0
        %3330 = vmatprep.subr.mxu0 0.0
        %3331 = vmatpush1.msra.mxu0 0.0
        %3332 = vmatprep.mubr.f32.mxu0 0.0
        %3333 = vmatmul.mubr.f32.gmra.mrb[0].mxu0 %v3256
        %v3334 = vpop.f32.mrb[0].mxu0
        %v3335 = vadd.f32 0.0, %v3334
        %v3336 = vpop.f32.mrb[0].mxu0
        %v3337 = vadd.f32 0.0, %v3336
        %3338 = vmatprep.mubr.f32.mxu0 0.0
        %3339 = vmatmul.mubr.f32.gmra.mrb[0].mxu0 %v3259
        %v3340 = vpop.f32.mrb[0].mxu0
        %v3341 = vadd.f32 0.0, %v3340
        %v3342 = vpop.f32.mrb[0].mxu0
        %v3343 = vadd.f32 0.0, %v3342
        %3344 = vmatprep.mubr.f32.mxu0 0.0
        %3345 = vmatmul.mubr.f32.gmra.mrb[0].mxu0 %v3262
        %v3346 = vpop.f32.mrb[0].mxu0
        %v3347 = vadd.f32 0.0, %v3346
        %v3348 = vpop.f32.mrb[0].mxu0
        %v3349 = vadd.f32 0.0, %v3348
        %3350 = vdwg.mxu0
        %v3351 = vadd.f32 %v3236, %v3335
        %v3352 = vadd.f32 %v3237, %v3337
        %v3353 = vadd.f32 %v3238, %v3341
        %v3354 = vadd.f32 %v3239, %v3343
        %v3355 = vadd.f32 %v3240, %v3347
        %v3356 = vadd.f32 %v3241, %v3349
        %s3357 = scalar_lea.vmem %s2, 648
        %v3358 = vld [vmem:[%s3357] sm:$0xff]
        %v3359 = vld [vmem:[%s3357 + $0x8] sm:$0xff]
        %v3360 = vld [vmem:[%s3357 + $0x10] sm:$0xff]
        %3361 = vrot.lane.b32.xlu0 %v284, 56
        %v3362 = vpop.permute.xlu0 %3361
        %3363 = vrot.lane.b32.xlu0 %v287, 56
        %v3364 = vpop.permute.xlu0 %3363
        %3365 = vrot.lane.b32.xlu0 %v285, 56
        %v3366 = vpop.permute.xlu0 %3365
        %vm3367 = vcmask 457728
        %v3368 = vsel %vm3367, %v3362, %v3364
        %v3369 = vsel %vm3367, %v3364, %v3366
        %v3371 = vsel %vm306, %v3358, 0
        %v3374 = vsel %vm306, %v3359, 0
        %v3377 = vsel %vm306, %v3360, 0
        %v3379 = vsel %vm316, %v3368, 0
        %v3381 = vsel %vm316, %v3369, 0
        %3383 = vmatprep.subr.mxu0 %v3381
        %3384 = vmatpush1.msra.mxu0 %v3379
        %3385 = vmatprep.subr.mxu0 0.0
        %3386 = vmatpush1.msra.mxu0 0.0
        %3387 = vmatprep.subr.mxu0 0.0
        %3388 = vmatpush1.msra.mxu0 0.0
        %3389 = vmatprep.subr.mxu0 0.0
        %3390 = vmatpush1.msra.mxu0 0.0
        %3391 = vmatprep.subr.mxu0 0.0
        %3392 = vmatpush1.msra.mxu0 0.0
        %3393 = vmatprep.subr.mxu0 0.0
        %3394 = vmatpush1.msra.mxu0 0.0
        %3395 = vmatprep.subr.mxu0 0.0
        %3396 = vmatpush1.msra.mxu0 0.0
        %3397 = vmatprep.subr.mxu0 0.0
        %3398 = vmatpush1.msra.mxu0 0.0
        %3399 = vmatprep.subr.mxu0 0.0
        %3400 = vmatpush1.msra.mxu0 0.0
        %3401 = vmatprep.subr.mxu0 0.0
        %3402 = vmatpush1.msra.mxu0 0.0
        %3403 = vmatprep.subr.mxu0 0.0
        %3404 = vmatpush1.msra.mxu0 0.0
        %3405 = vmatprep.subr.mxu0 0.0
        %3406 = vmatpush1.msra.mxu0 0.0
        %3407 = vmatprep.subr.mxu0 0.0
        %3408 = vmatpush1.msra.mxu0 0.0
        %3409 = vmatprep.subr.mxu0 0.0
        %3410 = vmatpush1.msra.mxu0 0.0
        %3411 = vmatprep.subr.mxu0 0.0
        %3412 = vmatpush1.msra.mxu0 0.0
        %3413 = vmatprep.subr.mxu0 0.0
        %3414 = vmatpush1.msra.mxu0 0.0
        %3415 = vmatprep.subr.mxu0 0.0
        %3416 = vmatpush1.msra.mxu0 0.0
        %3417 = vmatprep.subr.mxu0 0.0
        %3418 = vmatpush1.msra.mxu0 0.0
        %3419 = vmatprep.subr.mxu0 0.0
        %3420 = vmatpush1.msra.mxu0 0.0
        %3421 = vmatprep.subr.mxu0 0.0
        %3422 = vmatpush1.msra.mxu0 0.0
        %3423 = vmatprep.subr.mxu0 0.0
        %3424 = vmatpush1.msra.mxu0 0.0
        %3425 = vmatprep.subr.mxu0 0.0
        %3426 = vmatpush1.msra.mxu0 0.0
        %3427 = vmatprep.subr.mxu0 0.0
        %3428 = vmatpush1.msra.mxu0 0.0
        %3429 = vmatprep.subr.mxu0 0.0
        %3430 = vmatpush1.msra.mxu0 0.0
        %3431 = vmatprep.subr.mxu0 0.0
        %3432 = vmatpush1.msra.mxu0 0.0
        %3433 = vmatprep.subr.mxu0 0.0
        %3434 = vmatpush1.msra.mxu0 0.0
        %3435 = vmatprep.subr.mxu0 0.0
        %3436 = vmatpush1.msra.mxu0 0.0
        %3437 = vmatprep.subr.mxu0 0.0
        %3438 = vmatpush1.msra.mxu0 0.0
        %3439 = vmatprep.subr.mxu0 0.0
        %3440 = vmatpush1.msra.mxu0 0.0
        %3441 = vmatprep.subr.mxu0 0.0
        %3442 = vmatpush1.msra.mxu0 0.0
        %3443 = vmatprep.subr.mxu0 0.0
        %3444 = vmatpush1.msra.mxu0 0.0
        %3445 = vmatprep.subr.mxu0 0.0
        %3446 = vmatpush1.msra.mxu0 0.0
        %3447 = vmatprep.mubr.f32.mxu0 0.0
        %3448 = vmatmul.mubr.f32.gmra.mrb[0].mxu0 %v3371
        %v3449 = vpop.f32.mrb[0].mxu0
        %v3450 = vadd.f32 0.0, %v3449
        %v3451 = vpop.f32.mrb[0].mxu0
        %v3452 = vadd.f32 0.0, %v3451
        %3453 = vmatprep.mubr.f32.mxu0 0.0
        %3454 = vmatmul.mubr.f32.gmra.mrb[0].mxu0 %v3374
        %v3455 = vpop.f32.mrb[0].mxu0
        %v3456 = vadd.f32 0.0, %v3455
        %v3457 = vpop.f32.mrb[0].mxu0
        %v3458 = vadd.f32 0.0, %v3457
        %3459 = vmatprep.mubr.f32.mxu0 0.0
        %3460 = vmatmul.mubr.f32.gmra.mrb[0].mxu0 %v3377
        %v3461 = vpop.f32.mrb[0].mxu0
        %v3462 = vadd.f32 0.0, %v3461
        %v3463 = vpop.f32.mrb[0].mxu0
        %v3464 = vadd.f32 0.0, %v3463
        %3465 = vdwg.mxu0
        %v3466 = vadd.f32 %v3351, %v3450
        %v3467 = vadd.f32 %v3352, %v3452
        %v3468 = vadd.f32 %v3353, %v3456
        %v3469 = vadd.f32 %v3354, %v3458
        %v3470 = vadd.f32 %v3355, %v3462
        %v3471 = vadd.f32 %v3356, %v3464
        %v3472 = vadd.f32 %v2673, %v3466
        %v3473 = vadd.f32 %v2674, %v3467
        %v3474 = vadd.f32 %v2675, %v3468
        %v3475 = vadd.f32 %v2676, %v3469
        %v3476 = vadd.f32 %v2677, %v3470
        %v3477 = vadd.f32 %v2678, %v3471
        %s3478 = scalar_lea.vmem %s2, 672
        %v3479 = vld [vmem:[%s3478] sm:$0xff]
        %v3480 = vld [vmem:[%s3478 + $0x8] sm:$0xff]
        %v3481 = vld [vmem:[%s3478 + $0x10] sm:$0xff]
        %s3482 = scalar_lea.vmem %s2, 696
        %v3483 = vld [vmem:[%s3482] sm:$0xff]
        %v3484 = vld [vmem:[%s3482 + $0x8] sm:$0xff]
        %v3485 = vld [vmem:[%s3482 + $0x10] sm:$0xff]
        %3486 = vrot.lane.b32.xlu0 %v284, 39
        %v3487 = vpop.permute.xlu0 %3486
        %3488 = vrot.lane.b32.xlu0 %v287, 39
        %v3489 = vpop.permute.xlu0 %3488
        %3490 = vrot.lane.b32.xlu0 %v285, 39
        %v3491 = vpop.permute.xlu0 %3490
        %vm3492 = vcmask 318464
        %v3493 = vsel %vm3492, %v3487, %v3489
        %v3494 = vsel %vm3492, %v3489, %v3491
        %v3496 = vsel %vm306, %v3483, 0
        %v3499 = vsel %vm306, %v3484, 0
        %v3502 = vsel %vm306, %v3485, 0
        %v3504 = vsel %vm316, %v3493, 0
        %v3506 = vsel %vm316, %v3494, 0
        %3508 = vmatprep.subr.mxu0 %v3506
        %3509 = vmatpush1.msra.mxu0 %v3504
        %3510 = vmatprep.subr.mxu0 0.0
        %3511 = vmatpush1.msra.mxu0 0.0
        %3512 = vmatprep.subr.mxu0 0.0
        %3513 = vmatpush1.msra.mxu0 0.0
        %3514 = vmatprep.subr.mxu0 0.0
        %3515 = vmatpush1.msra.mxu0 0.0
        %3516 = vmatprep.subr.mxu0 0.0
        %3517 = vmatpush1.msra.mxu0 0.0
        %3518 = vmatprep.subr.mxu0 0.0
        %3519 = vmatpush1.msra.mxu0 0.0
        %3520 = vmatprep.subr.mxu0 0.0
        %3521 = vmatpush1.msra.mxu0 0.0
        %3522 = vmatprep.subr.mxu0 0.0
        %3523 = vmatpush1.msra.mxu0 0.0
        %3524 = vmatprep.subr.mxu0 0.0
        %3525 = vmatpush1.msra.mxu0 0.0
        %3526 = vmatprep.subr.mxu0 0.0
        %3527 = vmatpush1.msra.mxu0 0.0
        %3528 = vmatprep.subr.mxu0 0.0
        %3529 = vmatpush1.msra.mxu0 0.0
        %3530 = vmatprep.subr.mxu0 0.0
        %3531 = vmatpush1.msra.mxu0 0.0
        %3532 = vmatprep.subr.mxu0 0.0
        %3533 = vmatpush1.msra.mxu0 0.0
        %3534 = vmatprep.subr.mxu0 0.0
        %3535 = vmatpush1.msra.mxu0 0.0
        %3536 = vmatprep.subr.mxu0 0.0
        %3537 = vmatpush1.msra.mxu0 0.0
        %3538 = vmatprep.subr.mxu0 0.0
        %3539 = vmatpush1.msra.mxu0 0.0
        %3540 = vmatprep.subr.mxu0 0.0
        %3541 = vmatpush1.msra.mxu0 0.0
        %3542 = vmatprep.subr.mxu0 0.0
        %3543 = vmatpush1.msra.mxu0 0.0
        %3544 = vmatprep.subr.mxu0 0.0
        %3545 = vmatpush1.msra.mxu0 0.0
        %3546 = vmatprep.subr.mxu0 0.0
        %3547 = vmatpush1.msra.mxu0 0.0
        %3548 = vmatprep.subr.mxu0 0.0
        %3549 = vmatpush1.msra.mxu0 0.0
        %3550 = vmatprep.subr.mxu0 0.0
        %3551 = vmatpush1.msra.mxu0 0.0
        %3552 = vmatprep.subr.mxu0 0.0
        %3553 = vmatpush1.msra.mxu0 0.0
        %3554 = vmatprep.subr.mxu0 0.0
        %3555 = vmatpush1.msra.mxu0 0.0
        %3556 = vmatprep.subr.mxu0 0.0
        %3557 = vmatpush1.msra.mxu0 0.0
        %3558 = vmatprep.subr.mxu0 0.0
        %3559 = vmatpush1.msra.mxu0 0.0
        %3560 = vmatprep.subr.mxu0 0.0
        %3561 = vmatpush1.msra.mxu0 0.0
        %3562 = vmatprep.subr.mxu0 0.0
        %3563 = vmatpush1.msra.mxu0 0.0
        %3564 = vmatprep.subr.mxu0 0.0
        %3565 = vmatpush1.msra.mxu0 0.0
        %3566 = vmatprep.subr.mxu0 0.0
        %3567 = vmatpush1.msra.mxu0 0.0
        %3568 = vmatprep.subr.mxu0 0.0
        %3569 = vmatpush1.msra.mxu0 0.0
        %3570 = vmatprep.subr.mxu0 0.0
        %3571 = vmatpush1.msra.mxu0 0.0
        %3572 = vmatprep.mubr.f32.mxu0 0.0
        %3573 = vmatmul.mubr.f32.gmra.mrb[0].mxu0 %v3496
        %v3574 = vpop.f32.mrb[0].mxu0
        %v3575 = vadd.f32 0.0, %v3574
        %v3576 = vpop.f32.mrb[0].mxu0
        %v3577 = vadd.f32 0.0, %v3576
        %3578 = vmatprep.mubr.f32.mxu0 0.0
        %3579 = vmatmul.mubr.f32.gmra.mrb[0].mxu0 %v3499
        %v3580 = vpop.f32.mrb[0].mxu0
        %v3581 = vadd.f32 0.0, %v3580
        %v3582 = vpop.f32.mrb[0].mxu0
        %v3583 = vadd.f32 0.0, %v3582
        %3584 = vmatprep.mubr.f32.mxu0 0.0
        %3585 = vmatmul.mubr.f32.gmra.mrb[0].mxu0 %v3502
        %v3586 = vpop.f32.mrb[0].mxu0
        %v3587 = vadd.f32 0.0, %v3586
        %v3588 = vpop.f32.mrb[0].mxu0
        %v3589 = vadd.f32 0.0, %v3588
        %3590 = vdwg.mxu0
        %3591 = vrot.lane.b32.xlu0 %v284, 40
        %v3592 = vpop.permute.xlu0 %3591
        %3593 = vrot.lane.b32.xlu0 %v287, 40
        %v3594 = vpop.permute.xlu0 %3593
        %3595 = vrot.lane.b32.xlu0 %v285, 40
        %v3596 = vpop.permute.xlu0 %3595
        %vm3597 = vcmask 326656
        %v3598 = vsel %vm3597, %v3592, %v3594
        %v3599 = vsel %vm3597, %v3594, %v3596
        %v3601 = vsel %vm306, %v3479, 0
        %v3604 = vsel %vm306, %v3480, 0
        %v3607 = vsel %vm306, %v3481, 0
        %v3609 = vsel %vm316, %v3598, 0
        %v3611 = vsel %vm316, %v3599, 0
        %3613 = vmatprep.subr.mxu0 %v3611
        %3614 = vmatpush1.msra.mxu0 %v3609
        %3615 = vmatprep.subr.mxu0 0.0
        %3616 = vmatpush1.msra.mxu0 0.0
        %3617 = vmatprep.subr.mxu0 0.0
        %3618 = vmatpush1.msra.mxu0 0.0
        %3619 = vmatprep.subr.mxu0 0.0
        %3620 = vmatpush1.msra.mxu0 0.0
        %3621 = vmatprep.subr.mxu0 0.0
        %3622 = vmatpush1.msra.mxu0 0.0
        %3623 = vmatprep.subr.mxu0 0.0
        %3624 = vmatpush1.msra.mxu0 0.0
        %3625 = vmatprep.subr.mxu0 0.0
        %3626 = vmatpush1.msra.mxu0 0.0
        %3627 = vmatprep.subr.mxu0 0.0
        %3628 = vmatpush1.msra.mxu0 0.0
        %3629 = vmatprep.subr.mxu0 0.0
        %3630 = vmatpush1.msra.mxu0 0.0
        %3631 = vmatprep.subr.mxu0 0.0
        %3632 = vmatpush1.msra.mxu0 0.0
        %3633 = vmatprep.subr.mxu0 0.0
        %3634 = vmatpush1.msra.mxu0 0.0
        %3635 = vmatprep.subr.mxu0 0.0
        %3636 = vmatpush1.msra.mxu0 0.0
        %3637 = vmatprep.subr.mxu0 0.0
        %3638 = vmatpush1.msra.mxu0 0.0
        %3639 = vmatprep.subr.mxu0 0.0
        %3640 = vmatpush1.msra.mxu0 0.0
        %3641 = vmatprep.subr.mxu0 0.0
        %3642 = vmatpush1.msra.mxu0 0.0
        %3643 = vmatprep.subr.mxu0 0.0
        %3644 = vmatpush1.msra.mxu0 0.0
        %3645 = vmatprep.subr.mxu0 0.0
        %3646 = vmatpush1.msra.mxu0 0.0
        %3647 = vmatprep.subr.mxu0 0.0
        %3648 = vmatpush1.msra.mxu0 0.0
        %3649 = vmatprep.subr.mxu0 0.0
        %3650 = vmatpush1.msra.mxu0 0.0
        %3651 = vmatprep.subr.mxu0 0.0
        %3652 = vmatpush1.msra.mxu0 0.0
        %3653 = vmatprep.subr.mxu0 0.0
        %3654 = vmatpush1.msra.mxu0 0.0
        %3655 = vmatprep.subr.mxu0 0.0
        %3656 = vmatpush1.msra.mxu0 0.0
        %3657 = vmatprep.subr.mxu0 0.0
        %3658 = vmatpush1.msra.mxu0 0.0
        %3659 = vmatprep.subr.mxu0 0.0
        %3660 = vmatpush1.msra.mxu0 0.0
        %3661 = vmatprep.subr.mxu0 0.0
        %3662 = vmatpush1.msra.mxu0 0.0
        %3663 = vmatprep.subr.mxu0 0.0
        %3664 = vmatpush1.msra.mxu0 0.0
        %3665 = vmatprep.subr.mxu0 0.0
        %3666 = vmatpush1.msra.mxu0 0.0
        %3667 = vmatprep.subr.mxu0 0.0
        %3668 = vmatpush1.msra.mxu0 0.0
        %3669 = vmatprep.subr.mxu0 0.0
        %3670 = vmatpush1.msra.mxu0 0.0
        %3671 = vmatprep.subr.mxu0 0.0
        %3672 = vmatpush1.msra.mxu0 0.0
        %3673 = vmatprep.subr.mxu0 0.0
        %3674 = vmatpush1.msra.mxu0 0.0
        %3675 = vmatprep.subr.mxu0 0.0
        %3676 = vmatpush1.msra.mxu0 0.0
        %3677 = vmatprep.mubr.f32.mxu0 0.0
        %3678 = vmatmul.mubr.f32.gmra.mrb[0].mxu0 %v3601
        %v3679 = vpop.f32.mrb[0].mxu0
        %v3680 = vadd.f32 %v3575, %v3679
        %v3681 = vpop.f32.mrb[0].mxu0
        %v3682 = vadd.f32 %v3577, %v3681
        %3683 = vmatprep.mubr.f32.mxu0 0.0
        %3684 = vmatmul.mubr.f32.gmra.mrb[0].mxu0 %v3604
        %v3685 = vpop.f32.mrb[0].mxu0
        %v3686 = vadd.f32 %v3581, %v3685
        %v3687 = vpop.f32.mrb[0].mxu0
        %v3688 = vadd.f32 %v3583, %v3687
        %3689 = vmatprep.mubr.f32.mxu0 0.0
        %3690 = vmatmul.mubr.f32.gmra.mrb[0].mxu0 %v3607
        %v3691 = vpop.f32.mrb[0].mxu0
        %v3692 = vadd.f32 %v3587, %v3691
        %v3693 = vpop.f32.mrb[0].mxu0
        %v3694 = vadd.f32 %v3589, %v3693
        %3695 = vdwg.mxu0
        %s3696 = scalar_lea.vmem %s2, 720
        %v3697 = vld [vmem:[%s3696] sm:$0xff]
        %v3698 = vld [vmem:[%s3696 + $0x8] sm:$0xff]
        %v3699 = vld [vmem:[%s3696 + $0x10] sm:$0xff]
        %3700 = vrot.lane.b32.xlu0 %v284, 38
        %v3701 = vpop.permute.xlu0 %3700
        %3702 = vrot.lane.b32.xlu0 %v287, 38
        %v3703 = vpop.permute.xlu0 %3702
        %3704 = vrot.lane.b32.xlu0 %v285, 38
        %v3705 = vpop.permute.xlu0 %3704
        %vm3706 = vcmask 310272
        %v3707 = vsel %vm3706, %v3701, %v3703
        %v3708 = vsel %vm3706, %v3703, %v3705
        %v3710 = vsel %vm306, %v3697, 0
        %v3713 = vsel %vm306, %v3698, 0
        %v3716 = vsel %vm306, %v3699, 0
        %v3718 = vsel %vm316, %v3707, 0
        %v3720 = vsel %vm316, %v3708, 0
        %3722 = vmatprep.subr.mxu0 %v3720
        %3723 = vmatpush1.msra.mxu0 %v3718
        %3724 = vmatprep.subr.mxu0 0.0
        %3725 = vmatpush1.msra.mxu0 0.0
        %3726 = vmatprep.subr.mxu0 0.0
        %3727 = vmatpush1.msra.mxu0 0.0
        %3728 = vmatprep.subr.mxu0 0.0
        %3729 = vmatpush1.msra.mxu0 0.0
        %3730 = vmatprep.subr.mxu0 0.0
        %3731 = vmatpush1.msra.mxu0 0.0
        %3732 = vmatprep.subr.mxu0 0.0
        %3733 = vmatpush1.msra.mxu0 0.0
        %3734 = vmatprep.subr.mxu0 0.0
        %3735 = vmatpush1.msra.mxu0 0.0
        %3736 = vmatprep.subr.mxu0 0.0
        %3737 = vmatpush1.msra.mxu0 0.0
        %3738 = vmatprep.subr.mxu0 0.0
        %3739 = vmatpush1.msra.mxu0 0.0
        %3740 = vmatprep.subr.mxu0 0.0
        %3741 = vmatpush1.msra.mxu0 0.0
        %3742 = vmatprep.subr.mxu0 0.0
        %3743 = vmatpush1.msra.mxu0 0.0
        %3744 = vmatprep.subr.mxu0 0.0
        %3745 = vmatpush1.msra.mxu0 0.0
        %3746 = vmatprep.subr.mxu0 0.0
        %3747 = vmatpush1.msra.mxu0 0.0
        %3748 = vmatprep.subr.mxu0 0.0
        %3749 = vmatpush1.msra.mxu0 0.0
        %3750 = vmatprep.subr.mxu0 0.0
        %3751 = vmatpush1.msra.mxu0 0.0
        %3752 = vmatprep.subr.mxu0 0.0
        %3753 = vmatpush1.msra.mxu0 0.0
        %3754 = vmatprep.subr.mxu0 0.0
        %3755 = vmatpush1.msra.mxu0 0.0
        %3756 = vmatprep.subr.mxu0 0.0
        %3757 = vmatpush1.msra.mxu0 0.0
        %3758 = vmatprep.subr.mxu0 0.0
        %3759 = vmatpush1.msra.mxu0 0.0
        %3760 = vmatprep.subr.mxu0 0.0
        %3761 = vmatpush1.msra.mxu0 0.0
        %3762 = vmatprep.subr.mxu0 0.0
        %3763 = vmatpush1.msra.mxu0 0.0
        %3764 = vmatprep.subr.mxu0 0.0
        %3765 = vmatpush1.msra.mxu0 0.0
        %3766 = vmatprep.subr.mxu0 0.0
        %3767 = vmatpush1.msra.mxu0 0.0
        %3768 = vmatprep.subr.mxu0 0.0
        %3769 = vmatpush1.msra.mxu0 0.0
        %3770 = vmatprep.subr.mxu0 0.0
        %3771 = vmatpush1.msra.mxu0 0.0
        %3772 = vmatprep.subr.mxu0 0.0
        %3773 = vmatpush1.msra.mxu0 0.0
        %3774 = vmatprep.subr.mxu0 0.0
        %3775 = vmatpush1.msra.mxu0 0.0
        %3776 = vmatprep.subr.mxu0 0.0
        %3777 = vmatpush1.msra.mxu0 0.0
        %3778 = vmatprep.subr.mxu0 0.0
        %3779 = vmatpush1.msra.mxu0 0.0
        %3780 = vmatprep.subr.mxu0 0.0
        %3781 = vmatpush1.msra.mxu0 0.0
        %3782 = vmatprep.subr.mxu0 0.0
        %3783 = vmatpush1.msra.mxu0 0.0
        %3784 = vmatprep.subr.mxu0 0.0
        %3785 = vmatpush1.msra.mxu0 0.0
        %3786 = vmatprep.mubr.f32.mxu0 0.0
        %3787 = vmatmul.mubr.f32.gmra.mrb[0].mxu0 %v3710
        %v3788 = vpop.f32.mrb[0].mxu0
        %v3789 = vadd.f32 0.0, %v3788
        %v3790 = vpop.f32.mrb[0].mxu0
        %v3791 = vadd.f32 0.0, %v3790
        %3792 = vmatprep.mubr.f32.mxu0 0.0
        %3793 = vmatmul.mubr.f32.gmra.mrb[0].mxu0 %v3713
        %v3794 = vpop.f32.mrb[0].mxu0
        %v3795 = vadd.f32 0.0, %v3794
        %v3796 = vpop.f32.mrb[0].mxu0
        %v3797 = vadd.f32 0.0, %v3796
        %3798 = vmatprep.mubr.f32.mxu0 0.0
        %3799 = vmatmul.mubr.f32.gmra.mrb[0].mxu0 %v3716
        %v3800 = vpop.f32.mrb[0].mxu0
        %v3801 = vadd.f32 0.0, %v3800
        %v3802 = vpop.f32.mrb[0].mxu0
        %v3803 = vadd.f32 0.0, %v3802
        %3804 = vdwg.mxu0
        %v3805 = vadd.f32 %v3680, %v3789
        %v3806 = vadd.f32 %v3682, %v3791
        %v3807 = vadd.f32 %v3686, %v3795
        %v3808 = vadd.f32 %v3688, %v3797
        %v3809 = vadd.f32 %v3692, %v3801
        %v3810 = vadd.f32 %v3694, %v3803
        %s3811 = scalar_lea.vmem %s2, 744
        %v3812 = vld [vmem:[%s3811] sm:$0xff]
        %v3813 = vld [vmem:[%s3811 + $0x8] sm:$0xff]
        %v3814 = vld [vmem:[%s3811 + $0x10] sm:$0xff]
        %3815 = vrot.lane.b32.xlu0 %v284, 37
        %v3816 = vpop.permute.xlu0 %3815
        %3817 = vrot.lane.b32.xlu0 %v287, 37
        %v3818 = vpop.permute.xlu0 %3817
        %3819 = vrot.lane.b32.xlu0 %v285, 37
        %v3820 = vpop.permute.xlu0 %3819
        %vm3821 = vcmask 302080
        %v3822 = vsel %vm3821, %v3816, %v3818
        %v3823 = vsel %vm3821, %v3818, %v3820
        %v3825 = vsel %vm306, %v3812, 0
        %v3828 = vsel %vm306, %v3813, 0
        %v3831 = vsel %vm306, %v3814, 0
        %v3833 = vsel %vm316, %v3822, 0
        %v3835 = vsel %vm316, %v3823, 0
        %3837 = vmatprep.subr.mxu0 %v3835
        %3838 = vmatpush1.msra.mxu0 %v3833
        %3839 = vmatprep.subr.mxu0 0.0
        %3840 = vmatpush1.msra.mxu0 0.0
        %3841 = vmatprep.subr.mxu0 0.0
        %3842 = vmatpush1.msra.mxu0 0.0
        %3843 = vmatprep.subr.mxu0 0.0
        %3844 = vmatpush1.msra.mxu0 0.0
        %3845 = vmatprep.subr.mxu0 0.0
        %3846 = vmatpush1.msra.mxu0 0.0
        %3847 = vmatprep.subr.mxu0 0.0
        %3848 = vmatpush1.msra.mxu0 0.0
        %3849 = vmatprep.subr.mxu0 0.0
        %3850 = vmatpush1.msra.mxu0 0.0
        %3851 = vmatprep.subr.mxu0 0.0
        %3852 = vmatpush1.msra.mxu0 0.0
        %3853 = vmatprep.subr.mxu0 0.0
        %3854 = vmatpush1.msra.mxu0 0.0
        %3855 = vmatprep.subr.mxu0 0.0
        %3856 = vmatpush1.msra.mxu0 0.0
        %3857 = vmatprep.subr.mxu0 0.0
        %3858 = vmatpush1.msra.mxu0 0.0
        %3859 = vmatprep.subr.mxu0 0.0
        %3860 = vmatpush1.msra.mxu0 0.0
        %3861 = vmatprep.subr.mxu0 0.0
        %3862 = vmatpush1.msra.mxu0 0.0
        %3863 = vmatprep.subr.mxu0 0.0
        %3864 = vmatpush1.msra.mxu0 0.0
        %3865 = vmatprep.subr.mxu0 0.0
        %3866 = vmatpush1.msra.mxu0 0.0
        %3867 = vmatprep.subr.mxu0 0.0
        %3868 = vmatpush1.msra.mxu0 0.0
        %3869 = vmatprep.subr.mxu0 0.0
        %3870 = vmatpush1.msra.mxu0 0.0
        %3871 = vmatprep.subr.mxu0 0.0
        %3872 = vmatpush1.msra.mxu0 0.0
        %3873 = vmatprep.subr.mxu0 0.0
        %3874 = vmatpush1.msra.mxu0 0.0
        %3875 = vmatprep.subr.mxu0 0.0
        %3876 = vmatpush1.msra.mxu0 0.0
        %3877 = vmatprep.subr.mxu0 0.0
        %3878 = vmatpush1.msra.mxu0 0.0
        %3879 = vmatprep.subr.mxu0 0.0
        %3880 = vmatpush1.msra.mxu0 0.0
        %3881 = vmatprep.subr.mxu0 0.0
        %3882 = vmatpush1.msra.mxu0 0.0
        %3883 = vmatprep.subr.mxu0 0.0
        %3884 = vmatpush1.msra.mxu0 0.0
        %3885 = vmatprep.subr.mxu0 0.0
        %3886 = vmatpush1.msra.mxu0 0.0
        %3887 = vmatprep.subr.mxu0 0.0
        %3888 = vmatpush1.msra.mxu0 0.0
        %3889 = vmatprep.subr.mxu0 0.0
        %3890 = vmatpush1.msra.mxu0 0.0
        %3891 = vmatprep.subr.mxu0 0.0
        %3892 = vmatpush1.msra.mxu0 0.0
        %3893 = vmatprep.subr.mxu0 0.0
        %3894 = vmatpush1.msra.mxu0 0.0
        %3895 = vmatprep.subr.mxu0 0.0
        %3896 = vmatpush1.msra.mxu0 0.0
        %3897 = vmatprep.subr.mxu0 0.0
        %3898 = vmatpush1.msra.mxu0 0.0
        %3899 = vmatprep.subr.mxu0 0.0
        %3900 = vmatpush1.msra.mxu0 0.0
        %3901 = vmatprep.mubr.f32.mxu0 0.0
        %3902 = vmatmul.mubr.f32.gmra.mrb[0].mxu0 %v3825
        %v3903 = vpop.f32.mrb[0].mxu0
        %v3904 = vadd.f32 0.0, %v3903
        %v3905 = vpop.f32.mrb[0].mxu0
        %v3906 = vadd.f32 0.0, %v3905
        %3907 = vmatprep.mubr.f32.mxu0 0.0
        %3908 = vmatmul.mubr.f32.gmra.mrb[0].mxu0 %v3828
        %v3909 = vpop.f32.mrb[0].mxu0
        %v3910 = vadd.f32 0.0, %v3909
        %v3911 = vpop.f32.mrb[0].mxu0
        %v3912 = vadd.f32 0.0, %v3911
        %3913 = vmatprep.mubr.f32.mxu0 0.0
        %3914 = vmatmul.mubr.f32.gmra.mrb[0].mxu0 %v3831
        %v3915 = vpop.f32.mrb[0].mxu0
        %v3916 = vadd.f32 0.0, %v3915
        %v3917 = vpop.f32.mrb[0].mxu0
        %v3918 = vadd.f32 0.0, %v3917
        %3919 = vdwg.mxu0
        %v3920 = vadd.f32 %v3805, %v3904
        %v3921 = vadd.f32 %v3806, %v3906
        %v3922 = vadd.f32 %v3807, %v3910
        %v3923 = vadd.f32 %v3808, %v3912
        %v3924 = vadd.f32 %v3809, %v3916
        %v3925 = vadd.f32 %v3810, %v3918
        %s3926 = scalar_lea.vmem %s2, 768
        %v3927 = vld [vmem:[%s3926] sm:$0xff]
        %v3928 = vld [vmem:[%s3926 + $0x8] sm:$0xff]
        %v3929 = vld [vmem:[%s3926 + $0x10] sm:$0xff]
        %3930 = vrot.lane.b32.xlu0 %v284, 36
        %v3931 = vpop.permute.xlu0 %3930
        %3932 = vrot.lane.b32.xlu0 %v287, 36
        %v3933 = vpop.permute.xlu0 %3932
        %3934 = vrot.lane.b32.xlu0 %v285, 36
        %v3935 = vpop.permute.xlu0 %3934
        %vm3936 = vcmask 293888
        %v3937 = vsel %vm3936, %v3931, %v3933
        %v3938 = vsel %vm3936, %v3933, %v3935
        %v3940 = vsel %vm306, %v3927, 0
        %v3943 = vsel %vm306, %v3928, 0
        %v3946 = vsel %vm306, %v3929, 0
        %v3948 = vsel %vm316, %v3937, 0
        %v3950 = vsel %vm316, %v3938, 0
        %3952 = vmatprep.subr.mxu0 %v3950
        %3953 = vmatpush1.msra.mxu0 %v3948
        %3954 = vmatprep.subr.mxu0 0.0
        %3955 = vmatpush1.msra.mxu0 0.0
        %3956 = vmatprep.subr.mxu0 0.0
        %3957 = vmatpush1.msra.mxu0 0.0
        %3958 = vmatprep.subr.mxu0 0.0
        %3959 = vmatpush1.msra.mxu0 0.0
        %3960 = vmatprep.subr.mxu0 0.0
        %3961 = vmatpush1.msra.mxu0 0.0
        %3962 = vmatprep.subr.mxu0 0.0
        %3963 = vmatpush1.msra.mxu0 0.0
        %3964 = vmatprep.subr.mxu0 0.0
        %3965 = vmatpush1.msra.mxu0 0.0
        %3966 = vmatprep.subr.mxu0 0.0
        %3967 = vmatpush1.msra.mxu0 0.0
        %3968 = vmatprep.subr.mxu0 0.0
        %3969 = vmatpush1.msra.mxu0 0.0
        %3970 = vmatprep.subr.mxu0 0.0
        %3971 = vmatpush1.msra.mxu0 0.0
        %3972 = vmatprep.subr.mxu0 0.0
        %3973 = vmatpush1.msra.mxu0 0.0
        %3974 = vmatprep.subr.mxu0 0.0
        %3975 = vmatpush1.msra.mxu0 0.0
        %3976 = vmatprep.subr.mxu0 0.0
        %3977 = vmatpush1.msra.mxu0 0.0
        %3978 = vmatprep.subr.mxu0 0.0
        %3979 = vmatpush1.msra.mxu0 0.0
        %3980 = vmatprep.subr.mxu0 0.0
        %3981 = vmatpush1.msra.mxu0 0.0
        %3982 = vmatprep.subr.mxu0 0.0
        %3983 = vmatpush1.msra.mxu0 0.0
        %3984 = vmatprep.subr.mxu0 0.0
        %3985 = vmatpush1.msra.mxu0 0.0
        %3986 = vmatprep.subr.mxu0 0.0
        %3987 = vmatpush1.msra.mxu0 0.0
        %3988 = vmatprep.subr.mxu0 0.0
        %3989 = vmatpush1.msra.mxu0 0.0
        %3990 = vmatprep.subr.mxu0 0.0
        %3991 = vmatpush1.msra.mxu0 0.0
        %3992 = vmatprep.subr.mxu0 0.0
        %3993 = vmatpush1.msra.mxu0 0.0
        %3994 = vmatprep.subr.mxu0 0.0
        %3995 = vmatpush1.msra.mxu0 0.0
        %3996 = vmatprep.subr.mxu0 0.0
        %3997 = vmatpush1.msra.mxu0 0.0
        %3998 = vmatprep.subr.mxu0 0.0
        %3999 = vmatpush1.msra.mxu0 0.0
        %4000 = vmatprep.subr.mxu0 0.0
        %4001 = vmatpush1.msra.mxu0 0.0
        %4002 = vmatprep.subr.mxu0 0.0
        %4003 = vmatpush1.msra.mxu0 0.0
        %4004 = vmatprep.subr.mxu0 0.0
        %4005 = vmatpush1.msra.mxu0 0.0
        %4006 = vmatprep.subr.mxu0 0.0
        %4007 = vmatpush1.msra.mxu0 0.0
        %4008 = vmatprep.subr.mxu0 0.0
        %4009 = vmatpush1.msra.mxu0 0.0
        %4010 = vmatprep.subr.mxu0 0.0
        %4011 = vmatpush1.msra.mxu0 0.0
        %4012 = vmatprep.subr.mxu0 0.0
        %4013 = vmatpush1.msra.mxu0 0.0
        %4014 = vmatprep.subr.mxu0 0.0
        %4015 = vmatpush1.msra.mxu0 0.0
        %4016 = vmatprep.mubr.f32.mxu0 0.0
        %4017 = vmatmul.mubr.f32.gmra.mrb[0].mxu0 %v3940
        %v4018 = vpop.f32.mrb[0].mxu0
        %v4019 = vadd.f32 0.0, %v4018
        %v4020 = vpop.f32.mrb[0].mxu0
        %v4021 = vadd.f32 0.0, %v4020
        %4022 = vmatprep.mubr.f32.mxu0 0.0
        %4023 = vmatmul.mubr.f32.gmra.mrb[0].mxu0 %v3943
        %v4024 = vpop.f32.mrb[0].mxu0
        %v4025 = vadd.f32 0.0, %v4024
        %v4026 = vpop.f32.mrb[0].mxu0
        %v4027 = vadd.f32 0.0, %v4026
        %4028 = vmatprep.mubr.f32.mxu0 0.0
        %4029 = vmatmul.mubr.f32.gmra.mrb[0].mxu0 %v3946
        %v4030 = vpop.f32.mrb[0].mxu0
        %v4031 = vadd.f32 0.0, %v4030
        %v4032 = vpop.f32.mrb[0].mxu0
        %v4033 = vadd.f32 0.0, %v4032
        %4034 = vdwg.mxu0
        %v4035 = vadd.f32 %v3920, %v4019
        %v4036 = vadd.f32 %v3921, %v4021
        %v4037 = vadd.f32 %v3922, %v4025
        %v4038 = vadd.f32 %v3923, %v4027
        %v4039 = vadd.f32 %v3924, %v4031
        %v4040 = vadd.f32 %v3925, %v4033
        %s4041 = scalar_lea.vmem %s2, 792
        %v4042 = vld [vmem:[%s4041] sm:$0xff]
        %v4043 = vld [vmem:[%s4041 + $0x8] sm:$0xff]
        %v4044 = vld [vmem:[%s4041 + $0x10] sm:$0xff]
        %4045 = vrot.lane.b32.xlu0 %v284, 35
        %v4046 = vpop.permute.xlu0 %4045
        %4047 = vrot.lane.b32.xlu0 %v287, 35
        %v4048 = vpop.permute.xlu0 %4047
        %4049 = vrot.lane.b32.xlu0 %v285, 35
        %v4050 = vpop.permute.xlu0 %4049
        %vm4051 = vcmask 285696
        %v4052 = vsel %vm4051, %v4046, %v4048
        %v4053 = vsel %vm4051, %v4048, %v4050
        %v4055 = vsel %vm306, %v4042, 0
        %v4058 = vsel %vm306, %v4043, 0
        %v4061 = vsel %vm306, %v4044, 0
        %v4063 = vsel %vm316, %v4052, 0
        %v4065 = vsel %vm316, %v4053, 0
        %4067 = vmatprep.subr.mxu0 %v4065
        %4068 = vmatpush1.msra.mxu0 %v4063
        %4069 = vmatprep.subr.mxu0 0.0
        %4070 = vmatpush1.msra.mxu0 0.0
        %4071 = vmatprep.subr.mxu0 0.0
        %4072 = vmatpush1.msra.mxu0 0.0
        %4073 = vmatprep.subr.mxu0 0.0
        %4074 = vmatpush1.msra.mxu0 0.0
        %4075 = vmatprep.subr.mxu0 0.0
        %4076 = vmatpush1.msra.mxu0 0.0
        %4077 = vmatprep.subr.mxu0 0.0
        %4078 = vmatpush1.msra.mxu0 0.0
        %4079 = vmatprep.subr.mxu0 0.0
        %4080 = vmatpush1.msra.mxu0 0.0
        %4081 = vmatprep.subr.mxu0 0.0
        %4082 = vmatpush1.msra.mxu0 0.0
        %4083 = vmatprep.subr.mxu0 0.0
        %4084 = vmatpush1.msra.mxu0 0.0
        %4085 = vmatprep.subr.mxu0 0.0
        %4086 = vmatpush1.msra.mxu0 0.0
        %4087 = vmatprep.subr.mxu0 0.0
        %4088 = vmatpush1.msra.mxu0 0.0
        %4089 = vmatprep.subr.mxu0 0.0
        %4090 = vmatpush1.msra.mxu0 0.0
        %4091 = vmatprep.subr.mxu0 0.0
        %4092 = vmatpush1.msra.mxu0 0.0
        %4093 = vmatprep.subr.mxu0 0.0
        %4094 = vmatpush1.msra.mxu0 0.0
        %4095 = vmatprep.subr.mxu0 0.0
        %4096 = vmatpush1.msra.mxu0 0.0
        %4097 = vmatprep.subr.mxu0 0.0
        %4098 = vmatpush1.msra.mxu0 0.0
        %4099 = vmatprep.subr.mxu0 0.0
        %4100 = vmatpush1.msra.mxu0 0.0
        %4101 = vmatprep.subr.mxu0 0.0
        %4102 = vmatpush1.msra.mxu0 0.0
        %4103 = vmatprep.subr.mxu0 0.0
        %4104 = vmatpush1.msra.mxu0 0.0
        %4105 = vmatprep.subr.mxu0 0.0
        %4106 = vmatpush1.msra.mxu0 0.0
        %4107 = vmatprep.subr.mxu0 0.0
        %4108 = vmatpush1.msra.mxu0 0.0
        %4109 = vmatprep.subr.mxu0 0.0
        %4110 = vmatpush1.msra.mxu0 0.0
        %4111 = vmatprep.subr.mxu0 0.0
        %4112 = vmatpush1.msra.mxu0 0.0
        %4113 = vmatprep.subr.mxu0 0.0
        %4114 = vmatpush1.msra.mxu0 0.0
        %4115 = vmatprep.subr.mxu0 0.0
        %4116 = vmatpush1.msra.mxu0 0.0
        %4117 = vmatprep.subr.mxu0 0.0
        %4118 = vmatpush1.msra.mxu0 0.0
        %4119 = vmatprep.subr.mxu0 0.0
        %4120 = vmatpush1.msra.mxu0 0.0
        %4121 = vmatprep.subr.mxu0 0.0
        %4122 = vmatpush1.msra.mxu0 0.0
        %4123 = vmatprep.subr.mxu0 0.0
        %4124 = vmatpush1.msra.mxu0 0.0
        %4125 = vmatprep.subr.mxu0 0.0
        %4126 = vmatpush1.msra.mxu0 0.0
        %4127 = vmatprep.subr.mxu0 0.0
        %4128 = vmatpush1.msra.mxu0 0.0
        %4129 = vmatprep.subr.mxu0 0.0
        %4130 = vmatpush1.msra.mxu0 0.0
        %4131 = vmatprep.mubr.f32.mxu0 0.0
        %4132 = vmatmul.mubr.f32.gmra.mrb[0].mxu0 %v4055
        %v4133 = vpop.f32.mrb[0].mxu0
        %v4134 = vadd.f32 0.0, %v4133
        %v4135 = vpop.f32.mrb[0].mxu0
        %v4136 = vadd.f32 0.0, %v4135
        %4137 = vmatprep.mubr.f32.mxu0 0.0
        %4138 = vmatmul.mubr.f32.gmra.mrb[0].mxu0 %v4058
        %v4139 = vpop.f32.mrb[0].mxu0
        %v4140 = vadd.f32 0.0, %v4139
        %v4141 = vpop.f32.mrb[0].mxu0
        %v4142 = vadd.f32 0.0, %v4141
        %4143 = vmatprep.mubr.f32.mxu0 0.0
        %4144 = vmatmul.mubr.f32.gmra.mrb[0].mxu0 %v4061
        %v4145 = vpop.f32.mrb[0].mxu0
        %v4146 = vadd.f32 0.0, %v4145
        %v4147 = vpop.f32.mrb[0].mxu0
        %v4148 = vadd.f32 0.0, %v4147
        %4149 = vdwg.mxu0
        %v4150 = vadd.f32 %v4035, %v4134
        %v4151 = vadd.f32 %v4036, %v4136
        %v4152 = vadd.f32 %v4037, %v4140
        %v4153 = vadd.f32 %v4038, %v4142
        %v4154 = vadd.f32 %v4039, %v4146
        %v4155 = vadd.f32 %v4040, %v4148
        %s4156 = scalar_lea.vmem %s2, 816
        %v4157 = vld [vmem:[%s4156] sm:$0xff]
        %v4158 = vld [vmem:[%s4156 + $0x8] sm:$0xff]
        %v4159 = vld [vmem:[%s4156 + $0x10] sm:$0xff]
        %4160 = vrot.lane.b32.xlu0 %v284, 34
        %v4161 = vpop.permute.xlu0 %4160
        %4162 = vrot.lane.b32.xlu0 %v287, 34
        %v4163 = vpop.permute.xlu0 %4162
        %4164 = vrot.lane.b32.xlu0 %v285, 34
        %v4165 = vpop.permute.xlu0 %4164
        %vm4166 = vcmask 277504
        %v4167 = vsel %vm4166, %v4161, %v4163
        %v4168 = vsel %vm4166, %v4163, %v4165
        %v4170 = vsel %vm306, %v4157, 0
        %v4173 = vsel %vm306, %v4158, 0
        %v4176 = vsel %vm306, %v4159, 0
        %v4178 = vsel %vm316, %v4167, 0
        %v4180 = vsel %vm316, %v4168, 0
        %4182 = vmatprep.subr.mxu0 %v4180
        %4183 = vmatpush1.msra.mxu0 %v4178
        %4184 = vmatprep.subr.mxu0 0.0
        %4185 = vmatpush1.msra.mxu0 0.0
        %4186 = vmatprep.subr.mxu0 0.0
        %4187 = vmatpush1.msra.mxu0 0.0
        %4188 = vmatprep.subr.mxu0 0.0
        %4189 = vmatpush1.msra.mxu0 0.0
        %4190 = vmatprep.subr.mxu0 0.0
        %4191 = vmatpush1.msra.mxu0 0.0
        %4192 = vmatprep.subr.mxu0 0.0
        %4193 = vmatpush1.msra.mxu0 0.0
        %4194 = vmatprep.subr.mxu0 0.0
        %4195 = vmatpush1.msra.mxu0 0.0
        %4196 = vmatprep.subr.mxu0 0.0
        %4197 = vmatpush1.msra.mxu0 0.0
        %4198 = vmatprep.subr.mxu0 0.0
        %4199 = vmatpush1.msra.mxu0 0.0
        %4200 = vmatprep.subr.mxu0 0.0
        %4201 = vmatpush1.msra.mxu0 0.0
        %4202 = vmatprep.subr.mxu0 0.0
        %4203 = vmatpush1.msra.mxu0 0.0
        %4204 = vmatprep.subr.mxu0 0.0
        %4205 = vmatpush1.msra.mxu0 0.0
        %4206 = vmatprep.subr.mxu0 0.0
        %4207 = vmatpush1.msra.mxu0 0.0
        %4208 = vmatprep.subr.mxu0 0.0
        %4209 = vmatpush1.msra.mxu0 0.0
        %4210 = vmatprep.subr.mxu0 0.0
        %4211 = vmatpush1.msra.mxu0 0.0
        %4212 = vmatprep.subr.mxu0 0.0
        %4213 = vmatpush1.msra.mxu0 0.0
        %4214 = vmatprep.subr.mxu0 0.0
        %4215 = vmatpush1.msra.mxu0 0.0
        %4216 = vmatprep.subr.mxu0 0.0
        %4217 = vmatpush1.msra.mxu0 0.0
        %4218 = vmatprep.subr.mxu0 0.0
        %4219 = vmatpush1.msra.mxu0 0.0
        %4220 = vmatprep.subr.mxu0 0.0
        %4221 = vmatpush1.msra.mxu0 0.0
        %4222 = vmatprep.subr.mxu0 0.0
        %4223 = vmatpush1.msra.mxu0 0.0
        %4224 = vmatprep.subr.mxu0 0.0
        %4225 = vmatpush1.msra.mxu0 0.0
        %4226 = vmatprep.subr.mxu0 0.0
        %4227 = vmatpush1.msra.mxu0 0.0
        %4228 = vmatprep.subr.mxu0 0.0
        %4229 = vmatpush1.msra.mxu0 0.0
        %4230 = vmatprep.subr.mxu0 0.0
        %4231 = vmatpush1.msra.mxu0 0.0
        %4232 = vmatprep.subr.mxu0 0.0
        %4233 = vmatpush1.msra.mxu0 0.0
        %4234 = vmatprep.subr.mxu0 0.0
        %4235 = vmatpush1.msra.mxu0 0.0
        %4236 = vmatprep.subr.mxu0 0.0
        %4237 = vmatpush1.msra.mxu0 0.0
        %4238 = vmatprep.subr.mxu0 0.0
        %4239 = vmatpush1.msra.mxu0 0.0
        %4240 = vmatprep.subr.mxu0 0.0
        %4241 = vmatpush1.msra.mxu0 0.0
        %4242 = vmatprep.subr.mxu0 0.0
        %4243 = vmatpush1.msra.mxu0 0.0
        %4244 = vmatprep.subr.mxu0 0.0
        %4245 = vmatpush1.msra.mxu0 0.0
        %4246 = vmatprep.mubr.f32.mxu0 0.0
        %4247 = vmatmul.mubr.f32.gmra.mrb[0].mxu0 %v4170
        %v4248 = vpop.f32.mrb[0].mxu0
        %v4249 = vadd.f32 0.0, %v4248
        %v4250 = vpop.f32.mrb[0].mxu0
        %v4251 = vadd.f32 0.0, %v4250
        %4252 = vmatprep.mubr.f32.mxu0 0.0
        %4253 = vmatmul.mubr.f32.gmra.mrb[0].mxu0 %v4173
        %v4254 = vpop.f32.mrb[0].mxu0
        %v4255 = vadd.f32 0.0, %v4254
        %v4256 = vpop.f32.mrb[0].mxu0
        %v4257 = vadd.f32 0.0, %v4256
        %4258 = vmatprep.mubr.f32.mxu0 0.0
        %4259 = vmatmul.mubr.f32.gmra.mrb[0].mxu0 %v4176
        %v4260 = vpop.f32.mrb[0].mxu0
        %v4261 = vadd.f32 0.0, %v4260
        %v4262 = vpop.f32.mrb[0].mxu0
        %v4263 = vadd.f32 0.0, %v4262
        %4264 = vdwg.mxu0
        %v4265 = vadd.f32 %v4150, %v4249
        %v4266 = vadd.f32 %v4151, %v4251
        %v4267 = vadd.f32 %v4152, %v4255
        %v4268 = vadd.f32 %v4153, %v4257
        %v4269 = vadd.f32 %v4154, %v4261
        %v4270 = vadd.f32 %v4155, %v4263
        %v4271 = vadd.f32 %v3472, %v4265
        %v4272 = vadd.f32 %v3473, %v4266
        %v4273 = vadd.f32 %v3474, %v4267
        %v4274 = vadd.f32 %v3475, %v4268
        %v4275 = vadd.f32 %v3476, %v4269
        %v4276 = vadd.f32 %v3477, %v4270
        %s4277 = scalar_lea.vmem %s2, 840
        %v4278 = vld [vmem:[%s4277] sm:$0xff]
        %v4279 = vld [vmem:[%s4277 + $0x8] sm:$0xff]
        %v4280 = vld [vmem:[%s4277 + $0x10] sm:$0xff]
        %s4281 = scalar_lea.vmem %s2, 864
        %v4282 = vld [vmem:[%s4281] sm:$0xff]
        %v4283 = vld [vmem:[%s4281 + $0x8] sm:$0xff]
        %v4284 = vld [vmem:[%s4281 + $0x10] sm:$0xff]
        %4285 = vrot.lane.b32.xlu0 %v284, 17
        %v4286 = vpop.permute.xlu0 %4285
        %4287 = vrot.lane.b32.xlu0 %v287, 17
        %v4288 = vpop.permute.xlu0 %4287
        %4289 = vrot.lane.b32.xlu0 %v285, 17
        %v4290 = vpop.permute.xlu0 %4289
        %vm4291 = vcmask 138240
        %v4292 = vsel %vm4291, %v4286, %v4288
        %v4293 = vsel %vm4291, %v4288, %v4290
        %v4295 = vsel %vm306, %v4282, 0
        %v4298 = vsel %vm306, %v4283, 0
        %v4301 = vsel %vm306, %v4284, 0
        %v4303 = vsel %vm316, %v4292, 0
        %v4305 = vsel %vm316, %v4293, 0
        %4307 = vmatprep.subr.mxu0 %v4305
        %4308 = vmatpush1.msra.mxu0 %v4303
        %4309 = vmatprep.subr.mxu0 0.0
        %4310 = vmatpush1.msra.mxu0 0.0
        %4311 = vmatprep.subr.mxu0 0.0
        %4312 = vmatpush1.msra.mxu0 0.0
        %4313 = vmatprep.subr.mxu0 0.0
        %4314 = vmatpush1.msra.mxu0 0.0
        %4315 = vmatprep.subr.mxu0 0.0
        %4316 = vmatpush1.msra.mxu0 0.0
        %4317 = vmatprep.subr.mxu0 0.0
        %4318 = vmatpush1.msra.mxu0 0.0
        %4319 = vmatprep.subr.mxu0 0.0
        %4320 = vmatpush1.msra.mxu0 0.0
        %4321 = vmatprep.subr.mxu0 0.0
        %4322 = vmatpush1.msra.mxu0 0.0
        %4323 = vmatprep.subr.mxu0 0.0
        %4324 = vmatpush1.msra.mxu0 0.0
        %4325 = vmatprep.subr.mxu0 0.0
        %4326 = vmatpush1.msra.mxu0 0.0
        %4327 = vmatprep.subr.mxu0 0.0
        %4328 = vmatpush1.msra.mxu0 0.0
        %4329 = vmatprep.subr.mxu0 0.0
        %4330 = vmatpush1.msra.mxu0 0.0
        %4331 = vmatprep.subr.mxu0 0.0
        %4332 = vmatpush1.msra.mxu0 0.0
        %4333 = vmatprep.subr.mxu0 0.0
        %4334 = vmatpush1.msra.mxu0 0.0
        %4335 = vmatprep.subr.mxu0 0.0
        %4336 = vmatpush1.msra.mxu0 0.0
        %4337 = vmatprep.subr.mxu0 0.0
        %4338 = vmatpush1.msra.mxu0 0.0
        %4339 = vmatprep.subr.mxu0 0.0
        %4340 = vmatpush1.msra.mxu0 0.0
        %4341 = vmatprep.subr.mxu0 0.0
        %4342 = vmatpush1.msra.mxu0 0.0
        %4343 = vmatprep.subr.mxu0 0.0
        %4344 = vmatpush1.msra.mxu0 0.0
        %4345 = vmatprep.subr.mxu0 0.0
        %4346 = vmatpush1.msra.mxu0 0.0
        %4347 = vmatprep.subr.mxu0 0.0
        %4348 = vmatpush1.msra.mxu0 0.0
        %4349 = vmatprep.subr.mxu0 0.0
        %4350 = vmatpush1.msra.mxu0 0.0
        %4351 = vmatprep.subr.mxu0 0.0
        %4352 = vmatpush1.msra.mxu0 0.0
        %4353 = vmatprep.subr.mxu0 0.0
        %4354 = vmatpush1.msra.mxu0 0.0
        %4355 = vmatprep.subr.mxu0 0.0
        %4356 = vmatpush1.msra.mxu0 0.0
        %4357 = vmatprep.subr.mxu0 0.0
        %4358 = vmatpush1.msra.mxu0 0.0
        %4359 = vmatprep.subr.mxu0 0.0
        %4360 = vmatpush1.msra.mxu0 0.0
        %4361 = vmatprep.subr.mxu0 0.0
        %4362 = vmatpush1.msra.mxu0 0.0
        %4363 = vmatprep.subr.mxu0 0.0
        %4364 = vmatpush1.msra.mxu0 0.0
        %4365 = vmatprep.subr.mxu0 0.0
        %4366 = vmatpush1.msra.mxu0 0.0
        %4367 = vmatprep.subr.mxu0 0.0
        %4368 = vmatpush1.msra.mxu0 0.0
        %4369 = vmatprep.subr.mxu0 0.0
        %4370 = vmatpush1.msra.mxu0 0.0
        %4371 = vmatprep.mubr.f32.mxu0 0.0
        %4372 = vmatmul.mubr.f32.gmra.mrb[0].mxu0 %v4295
        %v4373 = vpop.f32.mrb[0].mxu0
        %v4374 = vadd.f32 0.0, %v4373
        %v4375 = vpop.f32.mrb[0].mxu0
        %v4376 = vadd.f32 0.0, %v4375
        %4377 = vmatprep.mubr.f32.mxu0 0.0
        %4378 = vmatmul.mubr.f32.gmra.mrb[0].mxu0 %v4298
        %v4379 = vpop.f32.mrb[0].mxu0
        %v4380 = vadd.f32 0.0, %v4379
        %v4381 = vpop.f32.mrb[0].mxu0
        %v4382 = vadd.f32 0.0, %v4381
        %4383 = vmatprep.mubr.f32.mxu0 0.0
        %4384 = vmatmul.mubr.f32.gmra.mrb[0].mxu0 %v4301
        %v4385 = vpop.f32.mrb[0].mxu0
        %v4386 = vadd.f32 0.0, %v4385
        %v4387 = vpop.f32.mrb[0].mxu0
        %v4388 = vadd.f32 0.0, %v4387
        %4389 = vdwg.mxu0
        %4390 = vrot.lane.b32.xlu0 %v284, 18
        %v4391 = vpop.permute.xlu0 %4390
        %4392 = vrot.lane.b32.xlu0 %v287, 18
        %v4393 = vpop.permute.xlu0 %4392
        %4394 = vrot.lane.b32.xlu0 %v285, 18
        %v4395 = vpop.permute.xlu0 %4394
        %vm4396 = vcmask 146432
        %v4397 = vsel %vm4396, %v4391, %v4393
        %v4398 = vsel %vm4396, %v4393, %v4395
        %v4400 = vsel %vm306, %v4278, 0
        %v4403 = vsel %vm306, %v4279, 0
        %v4406 = vsel %vm306, %v4280, 0
        %v4408 = vsel %vm316, %v4397, 0
        %v4410 = vsel %vm316, %v4398, 0
        %4412 = vmatprep.subr.mxu0 %v4410
        %4413 = vmatpush1.msra.mxu0 %v4408
        %4414 = vmatprep.subr.mxu0 0.0
        %4415 = vmatpush1.msra.mxu0 0.0
        %4416 = vmatprep.subr.mxu0 0.0
        %4417 = vmatpush1.msra.mxu0 0.0
        %4418 = vmatprep.subr.mxu0 0.0
        %4419 = vmatpush1.msra.mxu0 0.0
        %4420 = vmatprep.subr.mxu0 0.0
        %4421 = vmatpush1.msra.mxu0 0.0
        %4422 = vmatprep.subr.mxu0 0.0
        %4423 = vmatpush1.msra.mxu0 0.0
        %4424 = vmatprep.subr.mxu0 0.0
        %4425 = vmatpush1.msra.mxu0 0.0
        %4426 = vmatprep.subr.mxu0 0.0
        %4427 = vmatpush1.msra.mxu0 0.0
        %4428 = vmatprep.subr.mxu0 0.0
        %4429 = vmatpush1.msra.mxu0 0.0
        %4430 = vmatprep.subr.mxu0 0.0
        %4431 = vmatpush1.msra.mxu0 0.0
        %4432 = vmatprep.subr.mxu0 0.0
        %4433 = vmatpush1.msra.mxu0 0.0
        %4434 = vmatprep.subr.mxu0 0.0
        %4435 = vmatpush1.msra.mxu0 0.0
        %4436 = vmatprep.subr.mxu0 0.0
        %4437 = vmatpush1.msra.mxu0 0.0
        %4438 = vmatprep.subr.mxu0 0.0
        %4439 = vmatpush1.msra.mxu0 0.0
        %4440 = vmatprep.subr.mxu0 0.0
        %4441 = vmatpush1.msra.mxu0 0.0
        %4442 = vmatprep.subr.mxu0 0.0
        %4443 = vmatpush1.msra.mxu0 0.0
        %4444 = vmatprep.subr.mxu0 0.0
        %4445 = vmatpush1.msra.mxu0 0.0
        %4446 = vmatprep.subr.mxu0 0.0
        %4447 = vmatpush1.msra.mxu0 0.0
        %4448 = vmatprep.subr.mxu0 0.0
        %4449 = vmatpush1.msra.mxu0 0.0
        %4450 = vmatprep.subr.mxu0 0.0
        %4451 = vmatpush1.msra.mxu0 0.0
        %4452 = vmatprep.subr.mxu0 0.0
        %4453 = vmatpush1.msra.mxu0 0.0
        %4454 = vmatprep.subr.mxu0 0.0
        %4455 = vmatpush1.msra.mxu0 0.0
        %4456 = vmatprep.subr.mxu0 0.0
        %4457 = vmatpush1.msra.mxu0 0.0
        %4458 = vmatprep.subr.mxu0 0.0
        %4459 = vmatpush1.msra.mxu0 0.0
        %4460 = vmatprep.subr.mxu0 0.0
        %4461 = vmatpush1.msra.mxu0 0.0
        %4462 = vmatprep.subr.mxu0 0.0
        %4463 = vmatpush1.msra.mxu0 0.0
        %4464 = vmatprep.subr.mxu0 0.0
        %4465 = vmatpush1.msra.mxu0 0.0
        %4466 = vmatprep.subr.mxu0 0.0
        %4467 = vmatpush1.msra.mxu0 0.0
        %4468 = vmatprep.subr.mxu0 0.0
        %4469 = vmatpush1.msra.mxu0 0.0
        %4470 = vmatprep.subr.mxu0 0.0
        %4471 = vmatpush1.msra.mxu0 0.0
        %4472 = vmatprep.subr.mxu0 0.0
        %4473 = vmatpush1.msra.mxu0 0.0
        %4474 = vmatprep.subr.mxu0 0.0
        %4475 = vmatpush1.msra.mxu0 0.0
        %4476 = vmatprep.mubr.f32.mxu0 0.0
        %4477 = vmatmul.mubr.f32.gmra.mrb[0].mxu0 %v4400
        %v4478 = vpop.f32.mrb[0].mxu0
        %v4479 = vadd.f32 %v4374, %v4478
        %v4480 = vpop.f32.mrb[0].mxu0
        %v4481 = vadd.f32 %v4376, %v4480
        %4482 = vmatprep.mubr.f32.mxu0 0.0
        %4483 = vmatmul.mubr.f32.gmra.mrb[0].mxu0 %v4403
        %v4484 = vpop.f32.mrb[0].mxu0
        %v4485 = vadd.f32 %v4380, %v4484
        %v4486 = vpop.f32.mrb[0].mxu0
        %v4487 = vadd.f32 %v4382, %v4486
        %4488 = vmatprep.mubr.f32.mxu0 0.0
        %4489 = vmatmul.mubr.f32.gmra.mrb[0].mxu0 %v4406
        %v4490 = vpop.f32.mrb[0].mxu0
        %v4491 = vadd.f32 %v4386, %v4490
        %v4492 = vpop.f32.mrb[0].mxu0
        %v4493 = vadd.f32 %v4388, %v4492
        %4494 = vdwg.mxu0
        %s4495 = scalar_lea.vmem %s2, 888
        %v4496 = vld [vmem:[%s4495] sm:$0xff]
        %v4497 = vld [vmem:[%s4495 + $0x8] sm:$0xff]
        %v4498 = vld [vmem:[%s4495 + $0x10] sm:$0xff]
        %4499 = vrot.lane.b32.xlu0 %v284, 16
        %v4500 = vpop.permute.xlu0 %4499
        %4501 = vrot.lane.b32.xlu0 %v287, 16
        %v4502 = vpop.permute.xlu0 %4501
        %4503 = vrot.lane.b32.xlu0 %v285, 16
        %v4504 = vpop.permute.xlu0 %4503
        %vm4505 = vcmask 130048
        %v4506 = vsel %vm4505, %v4500, %v4502
        %v4507 = vsel %vm4505, %v4502, %v4504
        %v4509 = vsel %vm306, %v4496, 0
        %v4512 = vsel %vm306, %v4497, 0
        %v4515 = vsel %vm306, %v4498, 0
        %v4517 = vsel %vm316, %v4506, 0
        %v4519 = vsel %vm316, %v4507, 0
        %4521 = vmatprep.subr.mxu0 %v4519
        %4522 = vmatpush1.msra.mxu0 %v4517
        %4523 = vmatprep.subr.mxu0 0.0
        %4524 = vmatpush1.msra.mxu0 0.0
        %4525 = vmatprep.subr.mxu0 0.0
        %4526 = vmatpush1.msra.mxu0 0.0
        %4527 = vmatprep.subr.mxu0 0.0
        %4528 = vmatpush1.msra.mxu0 0.0
        %4529 = vmatprep.subr.mxu0 0.0
        %4530 = vmatpush1.msra.mxu0 0.0
        %4531 = vmatprep.subr.mxu0 0.0
        %4532 = vmatpush1.msra.mxu0 0.0
        %4533 = vmatprep.subr.mxu0 0.0
        %4534 = vmatpush1.msra.mxu0 0.0
        %4535 = vmatprep.subr.mxu0 0.0
        %4536 = vmatpush1.msra.mxu0 0.0
        %4537 = vmatprep.subr.mxu0 0.0
        %4538 = vmatpush1.msra.mxu0 0.0
        %4539 = vmatprep.subr.mxu0 0.0
        %4540 = vmatpush1.msra.mxu0 0.0
        %4541 = vmatprep.subr.mxu0 0.0
        %4542 = vmatpush1.msra.mxu0 0.0
        %4543 = vmatprep.subr.mxu0 0.0
        %4544 = vmatpush1.msra.mxu0 0.0
        %4545 = vmatprep.subr.mxu0 0.0
        %4546 = vmatpush1.msra.mxu0 0.0
        %4547 = vmatprep.subr.mxu0 0.0
        %4548 = vmatpush1.msra.mxu0 0.0
        %4549 = vmatprep.subr.mxu0 0.0
        %4550 = vmatpush1.msra.mxu0 0.0
        %4551 = vmatprep.subr.mxu0 0.0
        %4552 = vmatpush1.msra.mxu0 0.0
        %4553 = vmatprep.subr.mxu0 0.0
        %4554 = vmatpush1.msra.mxu0 0.0
        %4555 = vmatprep.subr.mxu0 0.0
        %4556 = vmatpush1.msra.mxu0 0.0
        %4557 = vmatprep.subr.mxu0 0.0
        %4558 = vmatpush1.msra.mxu0 0.0
        %4559 = vmatprep.subr.mxu0 0.0
        %4560 = vmatpush1.msra.mxu0 0.0
        %4561 = vmatprep.subr.mxu0 0.0
        %4562 = vmatpush1.msra.mxu0 0.0
        %4563 = vmatprep.subr.mxu0 0.0
        %4564 = vmatpush1.msra.mxu0 0.0
        %4565 = vmatprep.subr.mxu0 0.0
        %4566 = vmatpush1.msra.mxu0 0.0
        %4567 = vmatprep.subr.mxu0 0.0
        %4568 = vmatpush1.msra.mxu0 0.0
        %4569 = vmatprep.subr.mxu0 0.0
        %4570 = vmatpush1.msra.mxu0 0.0
        %4571 = vmatprep.subr.mxu0 0.0
        %4572 = vmatpush1.msra.mxu0 0.0
        %4573 = vmatprep.subr.mxu0 0.0
        %4574 = vmatpush1.msra.mxu0 0.0
        %4575 = vmatprep.subr.mxu0 0.0
        %4576 = vmatpush1.msra.mxu0 0.0
        %4577 = vmatprep.subr.mxu0 0.0
        %4578 = vmatpush1.msra.mxu0 0.0
        %4579 = vmatprep.subr.mxu0 0.0
        %4580 = vmatpush1.msra.mxu0 0.0
        %4581 = vmatprep.subr.mxu0 0.0
        %4582 = vmatpush1.msra.mxu0 0.0
        %4583 = vmatprep.subr.mxu0 0.0
        %4584 = vmatpush1.msra.mxu0 0.0
        %4585 = vmatprep.mubr.f32.mxu0 0.0
        %4586 = vmatmul.mubr.f32.gmra.mrb[0].mxu0 %v4509
        %v4587 = vpop.f32.mrb[0].mxu0
        %v4588 = vadd.f32 0.0, %v4587
        %v4589 = vpop.f32.mrb[0].mxu0
        %v4590 = vadd.f32 0.0, %v4589
        %4591 = vmatprep.mubr.f32.mxu0 0.0
        %4592 = vmatmul.mubr.f32.gmra.mrb[0].mxu0 %v4512
        %v4593 = vpop.f32.mrb[0].mxu0
        %v4594 = vadd.f32 0.0, %v4593
        %v4595 = vpop.f32.mrb[0].mxu0
        %v4596 = vadd.f32 0.0, %v4595
        %4597 = vmatprep.mubr.f32.mxu0 0.0
        %4598 = vmatmul.mubr.f32.gmra.mrb[0].mxu0 %v4515
        %v4599 = vpop.f32.mrb[0].mxu0
        %v4600 = vadd.f32 0.0, %v4599
        %v4601 = vpop.f32.mrb[0].mxu0
        %v4602 = vadd.f32 0.0, %v4601
        %4603 = vdwg.mxu0
        %v4604 = vadd.f32 %v4479, %v4588
        %v4605 = vadd.f32 %v4481, %v4590
        %v4606 = vadd.f32 %v4485, %v4594
        %v4607 = vadd.f32 %v4487, %v4596
        %v4608 = vadd.f32 %v4491, %v4600
        %v4609 = vadd.f32 %v4493, %v4602
        %s4610 = scalar_lea.vmem %s2, 912
        %v4611 = vld [vmem:[%s4610] sm:$0xff]
        %v4612 = vld [vmem:[%s4610 + $0x8] sm:$0xff]
        %v4613 = vld [vmem:[%s4610 + $0x10] sm:$0xff]
        %4614 = vrot.lane.b32.xlu0 %v284, 15
        %v4615 = vpop.permute.xlu0 %4614
        %4616 = vrot.lane.b32.xlu0 %v287, 15
        %v4617 = vpop.permute.xlu0 %4616
        %4618 = vrot.lane.b32.xlu0 %v285, 15
        %v4619 = vpop.permute.xlu0 %4618
        %vm4620 = vcmask 121856
        %v4621 = vsel %vm4620, %v4615, %v4617
        %v4622 = vsel %vm4620, %v4617, %v4619
        %v4624 = vsel %vm306, %v4611, 0
        %v4627 = vsel %vm306, %v4612, 0
        %v4630 = vsel %vm306, %v4613, 0
        %v4632 = vsel %vm316, %v4621, 0
        %v4634 = vsel %vm316, %v4622, 0
        %4636 = vmatprep.subr.mxu0 %v4634
        %4637 = vmatpush1.msra.mxu0 %v4632
        %4638 = vmatprep.subr.mxu0 0.0
        %4639 = vmatpush1.msra.mxu0 0.0
        %4640 = vmatprep.subr.mxu0 0.0
        %4641 = vmatpush1.msra.mxu0 0.0
        %4642 = vmatprep.subr.mxu0 0.0
        %4643 = vmatpush1.msra.mxu0 0.0
        %4644 = vmatprep.subr.mxu0 0.0
        %4645 = vmatpush1.msra.mxu0 0.0
        %4646 = vmatprep.subr.mxu0 0.0
        %4647 = vmatpush1.msra.mxu0 0.0
        %4648 = vmatprep.subr.mxu0 0.0
        %4649 = vmatpush1.msra.mxu0 0.0
        %4650 = vmatprep.subr.mxu0 0.0
        %4651 = vmatpush1.msra.mxu0 0.0
        %4652 = vmatprep.subr.mxu0 0.0
        %4653 = vmatpush1.msra.mxu0 0.0
        %4654 = vmatprep.subr.mxu0 0.0
        %4655 = vmatpush1.msra.mxu0 0.0
        %4656 = vmatprep.subr.mxu0 0.0
        %4657 = vmatpush1.msra.mxu0 0.0
        %4658 = vmatprep.subr.mxu0 0.0
        %4659 = vmatpush1.msra.mxu0 0.0
        %4660 = vmatprep.subr.mxu0 0.0
        %4661 = vmatpush1.msra.mxu0 0.0
        %4662 = vmatprep.subr.mxu0 0.0
        %4663 = vmatpush1.msra.mxu0 0.0
        %4664 = vmatprep.subr.mxu0 0.0
        %4665 = vmatpush1.msra.mxu0 0.0
        %4666 = vmatprep.subr.mxu0 0.0
        %4667 = vmatpush1.msra.mxu0 0.0
        %4668 = vmatprep.subr.mxu0 0.0
        %4669 = vmatpush1.msra.mxu0 0.0
        %4670 = vmatprep.subr.mxu0 0.0
        %4671 = vmatpush1.msra.mxu0 0.0
        %4672 = vmatprep.subr.mxu0 0.0
        %4673 = vmatpush1.msra.mxu0 0.0
        %4674 = vmatprep.subr.mxu0 0.0
        %4675 = vmatpush1.msra.mxu0 0.0
        %4676 = vmatprep.subr.mxu0 0.0
        %4677 = vmatpush1.msra.mxu0 0.0
        %4678 = vmatprep.subr.mxu0 0.0
        %4679 = vmatpush1.msra.mxu0 0.0
        %4680 = vmatprep.subr.mxu0 0.0
        %4681 = vmatpush1.msra.mxu0 0.0
        %4682 = vmatprep.subr.mxu0 0.0
        %4683 = vmatpush1.msra.mxu0 0.0
        %4684 = vmatprep.subr.mxu0 0.0
        %4685 = vmatpush1.msra.mxu0 0.0
        %4686 = vmatprep.subr.mxu0 0.0
        %4687 = vmatpush1.msra.mxu0 0.0
        %4688 = vmatprep.subr.mxu0 0.0
        %4689 = vmatpush1.msra.mxu0 0.0
        %4690 = vmatprep.subr.mxu0 0.0
        %4691 = vmatpush1.msra.mxu0 0.0
        %4692 = vmatprep.subr.mxu0 0.0
        %4693 = vmatpush1.msra.mxu0 0.0
        %4694 = vmatprep.subr.mxu0 0.0
        %4695 = vmatpush1.msra.mxu0 0.0
        %4696 = vmatprep.subr.mxu0 0.0
        %4697 = vmatpush1.msra.mxu0 0.0
        %4698 = vmatprep.subr.mxu0 0.0
        %4699 = vmatpush1.msra.mxu0 0.0
        %4700 = vmatprep.mubr.f32.mxu0 0.0
        %4701 = vmatmul.mubr.f32.gmra.mrb[0].mxu0 %v4624
        %v4702 = vpop.f32.mrb[0].mxu0
        %v4703 = vadd.f32 0.0, %v4702
        %v4704 = vpop.f32.mrb[0].mxu0
        %v4705 = vadd.f32 0.0, %v4704
        %4706 = vmatprep.mubr.f32.mxu0 0.0
        %4707 = vmatmul.mubr.f32.gmra.mrb[0].mxu0 %v4627
        %v4708 = vpop.f32.mrb[0].mxu0
        %v4709 = vadd.f32 0.0, %v4708
        %v4710 = vpop.f32.mrb[0].mxu0
        %v4711 = vadd.f32 0.0, %v4710
        %4712 = vmatprep.mubr.f32.mxu0 0.0
        %4713 = vmatmul.mubr.f32.gmra.mrb[0].mxu0 %v4630
        %v4714 = vpop.f32.mrb[0].mxu0
        %v4715 = vadd.f32 0.0, %v4714
        %v4716 = vpop.f32.mrb[0].mxu0
        %v4717 = vadd.f32 0.0, %v4716
        %4718 = vdwg.mxu0
        %v4719 = vadd.f32 %v4604, %v4703
        %v4720 = vadd.f32 %v4605, %v4705
        %v4721 = vadd.f32 %v4606, %v4709
        %v4722 = vadd.f32 %v4607, %v4711
        %v4723 = vadd.f32 %v4608, %v4715
        %v4724 = vadd.f32 %v4609, %v4717
        %s4725 = scalar_lea.vmem %s2, 936
        %v4726 = vld [vmem:[%s4725] sm:$0xff]
        %v4727 = vld [vmem:[%s4725 + $0x8] sm:$0xff]
        %v4728 = vld [vmem:[%s4725 + $0x10] sm:$0xff]
        %4729 = vrot.lane.b32.xlu0 %v284, 14
        %v4730 = vpop.permute.xlu0 %4729
        %4731 = vrot.lane.b32.xlu0 %v287, 14
        %v4732 = vpop.permute.xlu0 %4731
        %4733 = vrot.lane.b32.xlu0 %v285, 14
        %v4734 = vpop.permute.xlu0 %4733
        %vm4735 = vcmask 113664
        %v4736 = vsel %vm4735, %v4730, %v4732
        %v4737 = vsel %vm4735, %v4732, %v4734
        %v4739 = vsel %vm306, %v4726, 0
        %v4742 = vsel %vm306, %v4727, 0
        %v4745 = vsel %vm306, %v4728, 0
        %v4747 = vsel %vm316, %v4736, 0
        %v4749 = vsel %vm316, %v4737, 0
        %4751 = vmatprep.subr.mxu0 %v4749
        %4752 = vmatpush1.msra.mxu0 %v4747
        %4753 = vmatprep.subr.mxu0 0.0
        %4754 = vmatpush1.msra.mxu0 0.0
        %4755 = vmatprep.subr.mxu0 0.0
        %4756 = vmatpush1.msra.mxu0 0.0
        %4757 = vmatprep.subr.mxu0 0.0
        %4758 = vmatpush1.msra.mxu0 0.0
        %4759 = vmatprep.subr.mxu0 0.0
        %4760 = vmatpush1.msra.mxu0 0.0
        %4761 = vmatprep.subr.mxu0 0.0
        %4762 = vmatpush1.msra.mxu0 0.0
        %4763 = vmatprep.subr.mxu0 0.0
        %4764 = vmatpush1.msra.mxu0 0.0
        %4765 = vmatprep.subr.mxu0 0.0
        %4766 = vmatpush1.msra.mxu0 0.0
        %4767 = vmatprep.subr.mxu0 0.0
        %4768 = vmatpush1.msra.mxu0 0.0
        %4769 = vmatprep.subr.mxu0 0.0
        %4770 = vmatpush1.msra.mxu0 0.0
        %4771 = vmatprep.subr.mxu0 0.0
        %4772 = vmatpush1.msra.mxu0 0.0
        %4773 = vmatprep.subr.mxu0 0.0
        %4774 = vmatpush1.msra.mxu0 0.0
        %4775 = vmatprep.subr.mxu0 0.0
        %4776 = vmatpush1.msra.mxu0 0.0
        %4777 = vmatprep.subr.mxu0 0.0
        %4778 = vmatpush1.msra.mxu0 0.0
        %4779 = vmatprep.subr.mxu0 0.0
        %4780 = vmatpush1.msra.mxu0 0.0
        %4781 = vmatprep.subr.mxu0 0.0
        %4782 = vmatpush1.msra.mxu0 0.0
        %4783 = vmatprep.subr.mxu0 0.0
        %4784 = vmatpush1.msra.mxu0 0.0
        %4785 = vmatprep.subr.mxu0 0.0
        %4786 = vmatpush1.msra.mxu0 0.0
        %4787 = vmatprep.subr.mxu0 0.0
        %4788 = vmatpush1.msra.mxu0 0.0
        %4789 = vmatprep.subr.mxu0 0.0
        %4790 = vmatpush1.msra.mxu0 0.0
        %4791 = vmatprep.subr.mxu0 0.0
        %4792 = vmatpush1.msra.mxu0 0.0
        %4793 = vmatprep.subr.mxu0 0.0
        %4794 = vmatpush1.msra.mxu0 0.0
        %4795 = vmatprep.subr.mxu0 0.0
        %4796 = vmatpush1.msra.mxu0 0.0
        %4797 = vmatprep.subr.mxu0 0.0
        %4798 = vmatpush1.msra.mxu0 0.0
        %4799 = vmatprep.subr.mxu0 0.0
        %4800 = vmatpush1.msra.mxu0 0.0
        %4801 = vmatprep.subr.mxu0 0.0
        %4802 = vmatpush1.msra.mxu0 0.0
        %4803 = vmatprep.subr.mxu0 0.0
        %4804 = vmatpush1.msra.mxu0 0.0
        %4805 = vmatprep.subr.mxu0 0.0
        %4806 = vmatpush1.msra.mxu0 0.0
        %4807 = vmatprep.subr.mxu0 0.0
        %4808 = vmatpush1.msra.mxu0 0.0
        %4809 = vmatprep.subr.mxu0 0.0
        %4810 = vmatpush1.msra.mxu0 0.0
        %4811 = vmatprep.subr.mxu0 0.0
        %4812 = vmatpush1.msra.mxu0 0.0
        %4813 = vmatprep.subr.mxu0 0.0
        %4814 = vmatpush1.msra.mxu0 0.0
        %4815 = vmatprep.mubr.f32.mxu0 0.0
        %4816 = vmatmul.mubr.f32.gmra.mrb[0].mxu0 %v4739
        %v4817 = vpop.f32.mrb[0].mxu0
        %v4818 = vadd.f32 0.0, %v4817
        %v4819 = vpop.f32.mrb[0].mxu0
        %v4820 = vadd.f32 0.0, %v4819
        %4821 = vmatprep.mubr.f32.mxu0 0.0
        %4822 = vmatmul.mubr.f32.gmra.mrb[0].mxu0 %v4742
        %v4823 = vpop.f32.mrb[0].mxu0
        %v4824 = vadd.f32 0.0, %v4823
        %v4825 = vpop.f32.mrb[0].mxu0
        %v4826 = vadd.f32 0.0, %v4825
        %4827 = vmatprep.mubr.f32.mxu0 0.0
        %4828 = vmatmul.mubr.f32.gmra.mrb[0].mxu0 %v4745
        %v4829 = vpop.f32.mrb[0].mxu0
        %v4830 = vadd.f32 0.0, %v4829
        %v4831 = vpop.f32.mrb[0].mxu0
        %v4832 = vadd.f32 0.0, %v4831
        %4833 = vdwg.mxu0
        %v4834 = vadd.f32 %v4719, %v4818
        %v4835 = vadd.f32 %v4720, %v4820
        %v4836 = vadd.f32 %v4721, %v4824
        %v4837 = vadd.f32 %v4722, %v4826
        %v4838 = vadd.f32 %v4723, %v4830
        %v4839 = vadd.f32 %v4724, %v4832
        %s4840 = scalar_lea.vmem %s2, 960
        %v4841 = vld [vmem:[%s4840] sm:$0xff]
        %v4842 = vld [vmem:[%s4840 + $0x8] sm:$0xff]
        %v4843 = vld [vmem:[%s4840 + $0x10] sm:$0xff]
        %4844 = vrot.lane.b32.xlu0 %v284, 13
        %v4845 = vpop.permute.xlu0 %4844
        %4846 = vrot.lane.b32.xlu0 %v287, 13
        %v4847 = vpop.permute.xlu0 %4846
        %4848 = vrot.lane.b32.xlu0 %v285, 13
        %v4849 = vpop.permute.xlu0 %4848
        %vm4850 = vcmask 105472
        %v4851 = vsel %vm4850, %v4845, %v4847
        %v4852 = vsel %vm4850, %v4847, %v4849
        %v4854 = vsel %vm306, %v4841, 0
        %v4857 = vsel %vm306, %v4842, 0
        %v4860 = vsel %vm306, %v4843, 0
        %v4862 = vsel %vm316, %v4851, 0
        %v4864 = vsel %vm316, %v4852, 0
        %4866 = vmatprep.subr.mxu0 %v4864
        %4867 = vmatpush1.msra.mxu0 %v4862
        %4868 = vmatprep.subr.mxu0 0.0
        %4869 = vmatpush1.msra.mxu0 0.0
        %4870 = vmatprep.subr.mxu0 0.0
        %4871 = vmatpush1.msra.mxu0 0.0
        %4872 = vmatprep.subr.mxu0 0.0
        %4873 = vmatpush1.msra.mxu0 0.0
        %4874 = vmatprep.subr.mxu0 0.0
        %4875 = vmatpush1.msra.mxu0 0.0
        %4876 = vmatprep.subr.mxu0 0.0
        %4877 = vmatpush1.msra.mxu0 0.0
        %4878 = vmatprep.subr.mxu0 0.0
        %4879 = vmatpush1.msra.mxu0 0.0
        %4880 = vmatprep.subr.mxu0 0.0
        %4881 = vmatpush1.msra.mxu0 0.0
        %4882 = vmatprep.subr.mxu0 0.0
        %4883 = vmatpush1.msra.mxu0 0.0
        %4884 = vmatprep.subr.mxu0 0.0
        %4885 = vmatpush1.msra.mxu0 0.0
        %4886 = vmatprep.subr.mxu0 0.0
        %4887 = vmatpush1.msra.mxu0 0.0
        %4888 = vmatprep.subr.mxu0 0.0
        %4889 = vmatpush1.msra.mxu0 0.0
        %4890 = vmatprep.subr.mxu0 0.0
        %4891 = vmatpush1.msra.mxu0 0.0
        %4892 = vmatprep.subr.mxu0 0.0
        %4893 = vmatpush1.msra.mxu0 0.0
        %4894 = vmatprep.subr.mxu0 0.0
        %4895 = vmatpush1.msra.mxu0 0.0
        %4896 = vmatprep.subr.mxu0 0.0
        %4897 = vmatpush1.msra.mxu0 0.0
        %4898 = vmatprep.subr.mxu0 0.0
        %4899 = vmatpush1.msra.mxu0 0.0
        %4900 = vmatprep.subr.mxu0 0.0
        %4901 = vmatpush1.msra.mxu0 0.0
        %4902 = vmatprep.subr.mxu0 0.0
        %4903 = vmatpush1.msra.mxu0 0.0
        %4904 = vmatprep.subr.mxu0 0.0
        %4905 = vmatpush1.msra.mxu0 0.0
        %4906 = vmatprep.subr.mxu0 0.0
        %4907 = vmatpush1.msra.mxu0 0.0
        %4908 = vmatprep.subr.mxu0 0.0
        %4909 = vmatpush1.msra.mxu0 0.0
        %4910 = vmatprep.subr.mxu0 0.0
        %4911 = vmatpush1.msra.mxu0 0.0
        %4912 = vmatprep.subr.mxu0 0.0
        %4913 = vmatpush1.msra.mxu0 0.0
        %4914 = vmatprep.subr.mxu0 0.0
        %4915 = vmatpush1.msra.mxu0 0.0
        %4916 = vmatprep.subr.mxu0 0.0
        %4917 = vmatpush1.msra.mxu0 0.0
        %4918 = vmatprep.subr.mxu0 0.0
        %4919 = vmatpush1.msra.mxu0 0.0
        %4920 = vmatprep.subr.mxu0 0.0
        %4921 = vmatpush1.msra.mxu0 0.0
        %4922 = vmatprep.subr.mxu0 0.0
        %4923 = vmatpush1.msra.mxu0 0.0
        %4924 = vmatprep.subr.mxu0 0.0
        %4925 = vmatpush1.msra.mxu0 0.0
        %4926 = vmatprep.subr.mxu0 0.0
        %4927 = vmatpush1.msra.mxu0 0.0
        %4928 = vmatprep.subr.mxu0 0.0
        %4929 = vmatpush1.msra.mxu0 0.0
        %4930 = vmatprep.mubr.f32.mxu0 0.0
        %4931 = vmatmul.mubr.f32.gmra.mrb[0].mxu0 %v4854
        %v4932 = vpop.f32.mrb[0].mxu0
        %v4933 = vadd.f32 0.0, %v4932
        %v4934 = vpop.f32.mrb[0].mxu0
        %v4935 = vadd.f32 0.0, %v4934
        %4936 = vmatprep.mubr.f32.mxu0 0.0
        %4937 = vmatmul.mubr.f32.gmra.mrb[0].mxu0 %v4857
        %v4938 = vpop.f32.mrb[0].mxu0
        %v4939 = vadd.f32 0.0, %v4938
        %v4940 = vpop.f32.mrb[0].mxu0
        %v4941 = vadd.f32 0.0, %v4940
        %4942 = vmatprep.mubr.f32.mxu0 0.0
        %4943 = vmatmul.mubr.f32.gmra.mrb[0].mxu0 %v4860
        %v4944 = vpop.f32.mrb[0].mxu0
        %v4945 = vadd.f32 0.0, %v4944
        %v4946 = vpop.f32.mrb[0].mxu0
        %v4947 = vadd.f32 0.0, %v4946
        %4948 = vdwg.mxu0
        %v4949 = vadd.f32 %v4834, %v4933
        %v4950 = vadd.f32 %v4835, %v4935
        %v4951 = vadd.f32 %v4836, %v4939
        %v4952 = vadd.f32 %v4837, %v4941
        %v4953 = vadd.f32 %v4838, %v4945
        %v4954 = vadd.f32 %v4839, %v4947
        %s4955 = scalar_lea.vmem %s2, 984
        %v4956 = vld [vmem:[%s4955] sm:$0xff]
        %v4957 = vld [vmem:[%s4955 + $0x8] sm:$0xff]
        %v4958 = vld [vmem:[%s4955 + $0x10] sm:$0xff]
        %4959 = vrot.lane.b32.xlu0 %v284, 12
        %v4960 = vpop.permute.xlu0 %4959
        %4961 = vrot.lane.b32.xlu0 %v287, 12
        %v4962 = vpop.permute.xlu0 %4961
        %4963 = vrot.lane.b32.xlu0 %v285, 12
        %v4964 = vpop.permute.xlu0 %4963
        %vm4965 = vcmask 97280
        %v4966 = vsel %vm4965, %v4960, %v4962
        %v4967 = vsel %vm4965, %v4962, %v4964
        %v4969 = vsel %vm306, %v4956, 0
        %v4972 = vsel %vm306, %v4957, 0
        %v4975 = vsel %vm306, %v4958, 0
        %v4977 = vsel %vm316, %v4966, 0
        %v4979 = vsel %vm316, %v4967, 0
        %4981 = vmatprep.subr.mxu0 %v4979
        %4982 = vmatpush1.msra.mxu0 %v4977
        %4983 = vmatprep.subr.mxu0 0.0
        %4984 = vmatpush1.msra.mxu0 0.0
        %4985 = vmatprep.subr.mxu0 0.0
        %4986 = vmatpush1.msra.mxu0 0.0
        %4987 = vmatprep.subr.mxu0 0.0
        %4988 = vmatpush1.msra.mxu0 0.0
        %4989 = vmatprep.subr.mxu0 0.0
        %4990 = vmatpush1.msra.mxu0 0.0
        %4991 = vmatprep.subr.mxu0 0.0
        %4992 = vmatpush1.msra.mxu0 0.0
        %4993 = vmatprep.subr.mxu0 0.0
        %4994 = vmatpush1.msra.mxu0 0.0
        %4995 = vmatprep.subr.mxu0 0.0
        %4996 = vmatpush1.msra.mxu0 0.0
        %4997 = vmatprep.subr.mxu0 0.0
        %4998 = vmatpush1.msra.mxu0 0.0
        %4999 = vmatprep.subr.mxu0 0.0
        %5000 = vmatpush1.msra.mxu0 0.0
        %5001 = vmatprep.subr.mxu0 0.0
        %5002 = vmatpush1.msra.mxu0 0.0
        %5003 = vmatprep.subr.mxu0 0.0
        %5004 = vmatpush1.msra.mxu0 0.0
        %5005 = vmatprep.subr.mxu0 0.0
        %5006 = vmatpush1.msra.mxu0 0.0
        %5007 = vmatprep.subr.mxu0 0.0
        %5008 = vmatpush1.msra.mxu0 0.0
        %5009 = vmatprep.subr.mxu0 0.0
        %5010 = vmatpush1.msra.mxu0 0.0
        %5011 = vmatprep.subr.mxu0 0.0
        %5012 = vmatpush1.msra.mxu0 0.0
        %5013 = vmatprep.subr.mxu0 0.0
        %5014 = vmatpush1.msra.mxu0 0.0
        %5015 = vmatprep.subr.mxu0 0.0
        %5016 = vmatpush1.msra.mxu0 0.0
        %5017 = vmatprep.subr.mxu0 0.0
        %5018 = vmatpush1.msra.mxu0 0.0
        %5019 = vmatprep.subr.mxu0 0.0
        %5020 = vmatpush1.msra.mxu0 0.0
        %5021 = vmatprep.subr.mxu0 0.0
        %5022 = vmatpush1.msra.mxu0 0.0
        %5023 = vmatprep.subr.mxu0 0.0
        %5024 = vmatpush1.msra.mxu0 0.0
        %5025 = vmatprep.subr.mxu0 0.0
        %5026 = vmatpush1.msra.mxu0 0.0
        %5027 = vmatprep.subr.mxu0 0.0
        %5028 = vmatpush1.msra.mxu0 0.0
        %5029 = vmatprep.subr.mxu0 0.0
        %5030 = vmatpush1.msra.mxu0 0.0
        %5031 = vmatprep.subr.mxu0 0.0
        %5032 = vmatpush1.msra.mxu0 0.0
        %5033 = vmatprep.subr.mxu0 0.0
        %5034 = vmatpush1.msra.mxu0 0.0
        %5035 = vmatprep.subr.mxu0 0.0
        %5036 = vmatpush1.msra.mxu0 0.0
        %5037 = vmatprep.subr.mxu0 0.0
        %5038 = vmatpush1.msra.mxu0 0.0
        %5039 = vmatprep.subr.mxu0 0.0
        %5040 = vmatpush1.msra.mxu0 0.0
        %5041 = vmatprep.subr.mxu0 0.0
        %5042 = vmatpush1.msra.mxu0 0.0
        %5043 = vmatprep.subr.mxu0 0.0
        %5044 = vmatpush1.msra.mxu0 0.0
        %5045 = vmatprep.mubr.f32.mxu0 0.0
        %5046 = vmatmul.mubr.f32.gmra.mrb[0].mxu0 %v4969
        %v5047 = vpop.f32.mrb[0].mxu0
        %v5048 = vadd.f32 0.0, %v5047
        %v5049 = vpop.f32.mrb[0].mxu0
        %v5050 = vadd.f32 0.0, %v5049
        %5051 = vmatprep.mubr.f32.mxu0 0.0
        %5052 = vmatmul.mubr.f32.gmra.mrb[0].mxu0 %v4972
        %v5053 = vpop.f32.mrb[0].mxu0
        %v5054 = vadd.f32 0.0, %v5053
        %v5055 = vpop.f32.mrb[0].mxu0
        %v5056 = vadd.f32 0.0, %v5055
        %5057 = vmatprep.mubr.f32.mxu0 0.0
        %5058 = vmatmul.mubr.f32.gmra.mrb[0].mxu0 %v4975
        %v5059 = vpop.f32.mrb[0].mxu0
        %v5060 = vadd.f32 0.0, %v5059
        %v5061 = vpop.f32.mrb[0].mxu0
        %v5062 = vadd.f32 0.0, %v5061
        %5063 = vdwg.mxu0
        %v5064 = vadd.f32 %v4949, %v5048
        %v5065 = vadd.f32 %v4950, %v5050
        %v5066 = vadd.f32 %v4951, %v5054
        %v5067 = vadd.f32 %v4952, %v5056
        %v5068 = vadd.f32 %v4953, %v5060
        %v5069 = vadd.f32 %v4954, %v5062
        %v5070 = vadd.f32 %v4271, %v5064
        %v5071 = vadd.f32 %v4272, %v5065
        %v5072 = vadd.f32 %v4273, %v5066
        %v5073 = vadd.f32 %v4274, %v5067
        %v5074 = vadd.f32 %v4275, %v5068
        %v5075 = vadd.f32 %v4276, %v5069
        %s5076 = scalar_lea.vmem %s2, 1008
        %v5077 = vld [vmem:[%s5076] sm:$0xff]
        %v5078 = vld [vmem:[%s5076 + $0x8] sm:$0xff]
        %v5079 = vld [vmem:[%s5076 + $0x10] sm:$0xff]
        %s5080 = scalar_lea.vmem %s2, 1032
        %v5081 = vld [vmem:[%s5080] sm:$0xff]
        %v5082 = vld [vmem:[%s5080 + $0x8] sm:$0xff]
        %v5083 = vld [vmem:[%s5080 + $0x10] sm:$0xff]
        %5084 = vrot.lane.b32.xlu0 %v289, 123
        %v5085 = vpop.permute.xlu0 %5084
        %v5086 = vsel %vm855, %v854, %v5085
        %v5088 = vsel %vm306, %v5081, 0
        %v5091 = vsel %vm306, %v5082, 0
        %v5094 = vsel %vm306, %v5083, 0
        %v5096 = vsel %vm316, %v5086, 0
        %5098 = vmatprep.subr.mxu0 %v5096
        %5099 = vmatpush1.msra.mxu0 %v869
        %5100 = vmatprep.subr.mxu0 0.0
        %5101 = vmatpush1.msra.mxu0 0.0
        %5102 = vmatprep.subr.mxu0 0.0
        %5103 = vmatpush1.msra.mxu0 0.0
        %5104 = vmatprep.subr.mxu0 0.0
        %5105 = vmatpush1.msra.mxu0 0.0
        %5106 = vmatprep.subr.mxu0 0.0
        %5107 = vmatpush1.msra.mxu0 0.0
        %5108 = vmatprep.subr.mxu0 0.0
        %5109 = vmatpush1.msra.mxu0 0.0
        %5110 = vmatprep.subr.mxu0 0.0
        %5111 = vmatpush1.msra.mxu0 0.0
        %5112 = vmatprep.subr.mxu0 0.0
        %5113 = vmatpush1.msra.mxu0 0.0
        %5114 = vmatprep.subr.mxu0 0.0
        %5115 = vmatpush1.msra.mxu0 0.0
        %5116 = vmatprep.subr.mxu0 0.0
        %5117 = vmatpush1.msra.mxu0 0.0
        %5118 = vmatprep.subr.mxu0 0.0
        %5119 = vmatpush1.msra.mxu0 0.0
        %5120 = vmatprep.subr.mxu0 0.0
        %5121 = vmatpush1.msra.mxu0 0.0
        %5122 = vmatprep.subr.mxu0 0.0
        %5123 = vmatpush1.msra.mxu0 0.0
        %5124 = vmatprep.subr.mxu0 0.0
        %5125 = vmatpush1.msra.mxu0 0.0
        %5126 = vmatprep.subr.mxu0 0.0
        %5127 = vmatpush1.msra.mxu0 0.0
        %5128 = vmatprep.subr.mxu0 0.0
        %5129 = vmatpush1.msra.mxu0 0.0
        %5130 = vmatprep.subr.mxu0 0.0
        %5131 = vmatpush1.msra.mxu0 0.0
        %5132 = vmatprep.subr.mxu0 0.0
        %5133 = vmatpush1.msra.mxu0 0.0
        %5134 = vmatprep.subr.mxu0 0.0
        %5135 = vmatpush1.msra.mxu0 0.0
        %5136 = vmatprep.subr.mxu0 0.0
        %5137 = vmatpush1.msra.mxu0 0.0
        %5138 = vmatprep.subr.mxu0 0.0
        %5139 = vmatpush1.msra.mxu0 0.0
        %5140 = vmatprep.subr.mxu0 0.0
        %5141 = vmatpush1.msra.mxu0 0.0
        %5142 = vmatprep.subr.mxu0 0.0
        %5143 = vmatpush1.msra.mxu0 0.0
        %5144 = vmatprep.subr.mxu0 0.0
        %5145 = vmatpush1.msra.mxu0 0.0
        %5146 = vmatprep.subr.mxu0 0.0
        %5147 = vmatpush1.msra.mxu0 0.0
        %5148 = vmatprep.subr.mxu0 0.0
        %5149 = vmatpush1.msra.mxu0 0.0
        %5150 = vmatprep.subr.mxu0 0.0
        %5151 = vmatpush1.msra.mxu0 0.0
        %5152 = vmatprep.subr.mxu0 0.0
        %5153 = vmatpush1.msra.mxu0 0.0
        %5154 = vmatprep.subr.mxu0 0.0
        %5155 = vmatpush1.msra.mxu0 0.0
        %5156 = vmatprep.subr.mxu0 0.0
        %5157 = vmatpush1.msra.mxu0 0.0
        %5158 = vmatprep.subr.mxu0 0.0
        %5159 = vmatpush1.msra.mxu0 0.0
        %5160 = vmatprep.subr.mxu0 0.0
        %5161 = vmatpush1.msra.mxu0 0.0
        %5162 = vmatprep.mubr.f32.mxu0 0.0
        %5163 = vmatmul.mubr.f32.gmra.mrb[0].mxu0 %v5088
        %v5164 = vpop.f32.mrb[0].mxu0
        %v5165 = vadd.f32 0.0, %v5164
        %v5166 = vpop.f32.mrb[0].mxu0
        %v5167 = vadd.f32 0.0, %v5166
        %5168 = vmatprep.mubr.f32.mxu0 0.0
        %5169 = vmatmul.mubr.f32.gmra.mrb[0].mxu0 %v5091
        %v5170 = vpop.f32.mrb[0].mxu0
        %v5171 = vadd.f32 0.0, %v5170
        %v5172 = vpop.f32.mrb[0].mxu0
        %v5173 = vadd.f32 0.0, %v5172
        %5174 = vmatprep.mubr.f32.mxu0 0.0
        %5175 = vmatmul.mubr.f32.gmra.mrb[0].mxu0 %v5094
        %v5176 = vpop.f32.mrb[0].mxu0
        %v5177 = vadd.f32 0.0, %v5176
        %v5178 = vpop.f32.mrb[0].mxu0
        %v5179 = vadd.f32 0.0, %v5178
        %5180 = vdwg.mxu0
        %5181 = vrot.lane.b32.xlu0 %v289, 124
        %v5182 = vpop.permute.xlu0 %5181
        %v5183 = vsel %vm740, %v739, %v5182
        %v5185 = vsel %vm306, %v5077, 0
        %v5188 = vsel %vm306, %v5078, 0
        %v5191 = vsel %vm306, %v5079, 0
        %v5193 = vsel %vm316, %v5183, 0
        %5195 = vmatprep.subr.mxu0 %v5193
        %5196 = vmatpush1.msra.mxu0 %v754
        %5197 = vmatprep.subr.mxu0 0.0
        %5198 = vmatpush1.msra.mxu0 0.0
        %5199 = vmatprep.subr.mxu0 0.0
        %5200 = vmatpush1.msra.mxu0 0.0
        %5201 = vmatprep.subr.mxu0 0.0
        %5202 = vmatpush1.msra.mxu0 0.0
        %5203 = vmatprep.subr.mxu0 0.0
        %5204 = vmatpush1.msra.mxu0 0.0
        %5205 = vmatprep.subr.mxu0 0.0
        %5206 = vmatpush1.msra.mxu0 0.0
        %5207 = vmatprep.subr.mxu0 0.0
        %5208 = vmatpush1.msra.mxu0 0.0
        %5209 = vmatprep.subr.mxu0 0.0
        %5210 = vmatpush1.msra.mxu0 0.0
        %5211 = vmatprep.subr.mxu0 0.0
        %5212 = vmatpush1.msra.mxu0 0.0
        %5213 = vmatprep.subr.mxu0 0.0
        %5214 = vmatpush1.msra.mxu0 0.0
        %5215 = vmatprep.subr.mxu0 0.0
        %5216 = vmatpush1.msra.mxu0 0.0
        %5217 = vmatprep.subr.mxu0 0.0
        %5218 = vmatpush1.msra.mxu0 0.0
        %5219 = vmatprep.subr.mxu0 0.0
        %5220 = vmatpush1.msra.mxu0 0.0
        %5221 = vmatprep.subr.mxu0 0.0
        %5222 = vmatpush1.msra.mxu0 0.0
        %5223 = vmatprep.subr.mxu0 0.0
        %5224 = vmatpush1.msra.mxu0 0.0
        %5225 = vmatprep.subr.mxu0 0.0
        %5226 = vmatpush1.msra.mxu0 0.0
        %5227 = vmatprep.subr.mxu0 0.0
        %5228 = vmatpush1.msra.mxu0 0.0
        %5229 = vmatprep.subr.mxu0 0.0
        %5230 = vmatpush1.msra.mxu0 0.0
        %5231 = vmatprep.subr.mxu0 0.0
        %5232 = vmatpush1.msra.mxu0 0.0
        %5233 = vmatprep.subr.mxu0 0.0
        %5234 = vmatpush1.msra.mxu0 0.0
        %5235 = vmatprep.subr.mxu0 0.0
        %5236 = vmatpush1.msra.mxu0 0.0
        %5237 = vmatprep.subr.mxu0 0.0
        %5238 = vmatpush1.msra.mxu0 0.0
        %5239 = vmatprep.subr.mxu0 0.0
        %5240 = vmatpush1.msra.mxu0 0.0
        %5241 = vmatprep.subr.mxu0 0.0
        %5242 = vmatpush1.msra.mxu0 0.0
        %5243 = vmatprep.subr.mxu0 0.0
        %5244 = vmatpush1.msra.mxu0 0.0
        %5245 = vmatprep.subr.mxu0 0.0
        %5246 = vmatpush1.msra.mxu0 0.0
        %5247 = vmatprep.subr.mxu0 0.0
        %5248 = vmatpush1.msra.mxu0 0.0
        %5249 = vmatprep.subr.mxu0 0.0
        %5250 = vmatpush1.msra.mxu0 0.0
        %5251 = vmatprep.subr.mxu0 0.0
        %5252 = vmatpush1.msra.mxu0 0.0
        %5253 = vmatprep.subr.mxu0 0.0
        %5254 = vmatpush1.msra.mxu0 0.0
        %5255 = vmatprep.subr.mxu0 0.0
        %5256 = vmatpush1.msra.mxu0 0.0
        %5257 = vmatprep.subr.mxu0 0.0
        %5258 = vmatpush1.msra.mxu0 0.0
        %5259 = vmatprep.mubr.f32.mxu0 0.0
        %5260 = vmatmul.mubr.f32.gmra.mrb[0].mxu0 %v5185
        %v5261 = vpop.f32.mrb[0].mxu0
        %v5262 = vadd.f32 %v5165, %v5261
        %v5263 = vpop.f32.mrb[0].mxu0
        %v5264 = vadd.f32 %v5167, %v5263
        %5265 = vmatprep.mubr.f32.mxu0 0.0
        %5266 = vmatmul.mubr.f32.gmra.mrb[0].mxu0 %v5188
        %v5267 = vpop.f32.mrb[0].mxu0
        %v5268 = vadd.f32 %v5171, %v5267
        %v5269 = vpop.f32.mrb[0].mxu0
        %v5270 = vadd.f32 %v5173, %v5269
        %5271 = vmatprep.mubr.f32.mxu0 0.0
        %5272 = vmatmul.mubr.f32.gmra.mrb[0].mxu0 %v5191
        %v5273 = vpop.f32.mrb[0].mxu0
        %v5274 = vadd.f32 %v5177, %v5273
        %v5275 = vpop.f32.mrb[0].mxu0
        %v5276 = vadd.f32 %v5179, %v5275
        %5277 = vdwg.mxu0
        %s5278 = scalar_lea.vmem %s2, 1056
        %v5279 = vld [vmem:[%s5278] sm:$0xff]
        %v5280 = vld [vmem:[%s5278 + $0x8] sm:$0xff]
        %v5281 = vld [vmem:[%s5278 + $0x10] sm:$0xff]
        %5282 = vrot.lane.b32.xlu0 %v289, 122
        %v5283 = vpop.permute.xlu0 %5282
        %v5284 = vsel %vm970, %v969, %v5283
        %v5286 = vsel %vm306, %v5279, 0
        %v5289 = vsel %vm306, %v5280, 0
        %v5292 = vsel %vm306, %v5281, 0
        %v5294 = vsel %vm316, %v5284, 0
        %5296 = vmatprep.subr.mxu0 %v5294
        %5297 = vmatpush1.msra.mxu0 %v984
        %5298 = vmatprep.subr.mxu0 0.0
        %5299 = vmatpush1.msra.mxu0 0.0
        %5300 = vmatprep.subr.mxu0 0.0
        %5301 = vmatpush1.msra.mxu0 0.0
        %5302 = vmatprep.subr.mxu0 0.0
        %5303 = vmatpush1.msra.mxu0 0.0
        %5304 = vmatprep.subr.mxu0 0.0
        %5305 = vmatpush1.msra.mxu0 0.0
        %5306 = vmatprep.subr.mxu0 0.0
        %5307 = vmatpush1.msra.mxu0 0.0
        %5308 = vmatprep.subr.mxu0 0.0
        %5309 = vmatpush1.msra.mxu0 0.0
        %5310 = vmatprep.subr.mxu0 0.0
        %5311 = vmatpush1.msra.mxu0 0.0
        %5312 = vmatprep.subr.mxu0 0.0
        %5313 = vmatpush1.msra.mxu0 0.0
        %5314 = vmatprep.subr.mxu0 0.0
        %5315 = vmatpush1.msra.mxu0 0.0
        %5316 = vmatprep.subr.mxu0 0.0
        %5317 = vmatpush1.msra.mxu0 0.0
        %5318 = vmatprep.subr.mxu0 0.0
        %5319 = vmatpush1.msra.mxu0 0.0
        %5320 = vmatprep.subr.mxu0 0.0
        %5321 = vmatpush1.msra.mxu0 0.0
        %5322 = vmatprep.subr.mxu0 0.0
        %5323 = vmatpush1.msra.mxu0 0.0
        %5324 = vmatprep.subr.mxu0 0.0
        %5325 = vmatpush1.msra.mxu0 0.0
        %5326 = vmatprep.subr.mxu0 0.0
        %5327 = vmatpush1.msra.mxu0 0.0
        %5328 = vmatprep.subr.mxu0 0.0
        %5329 = vmatpush1.msra.mxu0 0.0
        %5330 = vmatprep.subr.mxu0 0.0
        %5331 = vmatpush1.msra.mxu0 0.0
        %5332 = vmatprep.subr.mxu0 0.0
        %5333 = vmatpush1.msra.mxu0 0.0
        %5334 = vmatprep.subr.mxu0 0.0
        %5335 = vmatpush1.msra.mxu0 0.0
        %5336 = vmatprep.subr.mxu0 0.0
        %5337 = vmatpush1.msra.mxu0 0.0
        %5338 = vmatprep.subr.mxu0 0.0
        %5339 = vmatpush1.msra.mxu0 0.0
        %5340 = vmatprep.subr.mxu0 0.0
        %5341 = vmatpush1.msra.mxu0 0.0
        %5342 = vmatprep.subr.mxu0 0.0
        %5343 = vmatpush1.msra.mxu0 0.0
        %5344 = vmatprep.subr.mxu0 0.0
        %5345 = vmatpush1.msra.mxu0 0.0
        %5346 = vmatprep.subr.mxu0 0.0
        %5347 = vmatpush1.msra.mxu0 0.0
        %5348 = vmatprep.subr.mxu0 0.0
        %5349 = vmatpush1.msra.mxu0 0.0
        %5350 = vmatprep.subr.mxu0 0.0
        %5351 = vmatpush1.msra.mxu0 0.0
        %5352 = vmatprep.subr.mxu0 0.0
        %5353 = vmatpush1.msra.mxu0 0.0
        %5354 = vmatprep.subr.mxu0 0.0
        %5355 = vmatpush1.msra.mxu0 0.0
        %5356 = vmatprep.subr.mxu0 0.0
        %5357 = vmatpush1.msra.mxu0 0.0
        %5358 = vmatprep.subr.mxu0 0.0
        %5359 = vmatpush1.msra.mxu0 0.0
        %5360 = vmatprep.mubr.f32.mxu0 0.0
        %5361 = vmatmul.mubr.f32.gmra.mrb[0].mxu0 %v5286
        %v5362 = vpop.f32.mrb[0].mxu0
        %v5363 = vadd.f32 0.0, %v5362
        %v5364 = vpop.f32.mrb[0].mxu0
        %v5365 = vadd.f32 0.0, %v5364
        %5366 = vmatprep.mubr.f32.mxu0 0.0
        %5367 = vmatmul.mubr.f32.gmra.mrb[0].mxu0 %v5289
        %v5368 = vpop.f32.mrb[0].mxu0
        %v5369 = vadd.f32 0.0, %v5368
        %v5370 = vpop.f32.mrb[0].mxu0
        %v5371 = vadd.f32 0.0, %v5370
        %5372 = vmatprep.mubr.f32.mxu0 0.0
        %5373 = vmatmul.mubr.f32.gmra.mrb[0].mxu0 %v5292
        %v5374 = vpop.f32.mrb[0].mxu0
        %v5375 = vadd.f32 0.0, %v5374
        %v5376 = vpop.f32.mrb[0].mxu0
        %v5377 = vadd.f32 0.0, %v5376
        %5378 = vdwg.mxu0
        %v5379 = vadd.f32 %v5262, %v5363
        %v5380 = vadd.f32 %v5264, %v5365
        %v5381 = vadd.f32 %v5268, %v5369
        %v5382 = vadd.f32 %v5270, %v5371
        %v5383 = vadd.f32 %v5274, %v5375
        %v5384 = vadd.f32 %v5276, %v5377
        %s5385 = scalar_lea.vmem %s2, 1080
        %v5386 = vld [vmem:[%s5385] sm:$0xff]
        %v5387 = vld [vmem:[%s5385 + $0x8] sm:$0xff]
        %v5388 = vld [vmem:[%s5385 + $0x10] sm:$0xff]
        %5389 = vrot.lane.b32.xlu0 %v287, 121
        %v5390 = vpop.permute.xlu0 %5389
        %5391 = vrot.lane.b32.xlu0 %v285, 121
        %v5392 = vpop.permute.xlu0 %5391
        %5393 = vrot.lane.b32.xlu0 %v289, 121
        %v5394 = vpop.permute.xlu0 %5393
        %vm5395 = vcmask 990208
        %v5396 = vsel %vm5395, %v5390, %v5392
        %v5397 = vsel %vm5395, %v5392, %v5394
        %v5399 = vsel %vm306, %v5386, 0
        %v5402 = vsel %vm306, %v5387, 0
        %v5405 = vsel %vm306, %v5388, 0
        %v5407 = vsel %vm316, %v5396, 0
        %v5409 = vsel %vm316, %v5397, 0
        %5411 = vmatprep.subr.mxu0 %v5409
        %5412 = vmatpush1.msra.mxu0 %v5407
        %5413 = vmatprep.subr.mxu0 0.0
        %5414 = vmatpush1.msra.mxu0 0.0
        %5415 = vmatprep.subr.mxu0 0.0
        %5416 = vmatpush1.msra.mxu0 0.0
        %5417 = vmatprep.subr.mxu0 0.0
        %5418 = vmatpush1.msra.mxu0 0.0
        %5419 = vmatprep.subr.mxu0 0.0
        %5420 = vmatpush1.msra.mxu0 0.0
        %5421 = vmatprep.subr.mxu0 0.0
        %5422 = vmatpush1.msra.mxu0 0.0
        %5423 = vmatprep.subr.mxu0 0.0
        %5424 = vmatpush1.msra.mxu0 0.0
        %5425 = vmatprep.subr.mxu0 0.0
        %5426 = vmatpush1.msra.mxu0 0.0
        %5427 = vmatprep.subr.mxu0 0.0
        %5428 = vmatpush1.msra.mxu0 0.0
        %5429 = vmatprep.subr.mxu0 0.0
        %5430 = vmatpush1.msra.mxu0 0.0
        %5431 = vmatprep.subr.mxu0 0.0
        %5432 = vmatpush1.msra.mxu0 0.0
        %5433 = vmatprep.subr.mxu0 0.0
        %5434 = vmatpush1.msra.mxu0 0.0
        %5435 = vmatprep.subr.mxu0 0.0
        %5436 = vmatpush1.msra.mxu0 0.0
        %5437 = vmatprep.subr.mxu0 0.0
        %5438 = vmatpush1.msra.mxu0 0.0
        %5439 = vmatprep.subr.mxu0 0.0
        %5440 = vmatpush1.msra.mxu0 0.0
        %5441 = vmatprep.subr.mxu0 0.0
        %5442 = vmatpush1.msra.mxu0 0.0
        %5443 = vmatprep.subr.mxu0 0.0
        %5444 = vmatpush1.msra.mxu0 0.0
        %5445 = vmatprep.subr.mxu0 0.0
        %5446 = vmatpush1.msra.mxu0 0.0
        %5447 = vmatprep.subr.mxu0 0.0
        %5448 = vmatpush1.msra.mxu0 0.0
        %5449 = vmatprep.subr.mxu0 0.0
        %5450 = vmatpush1.msra.mxu0 0.0
        %5451 = vmatprep.subr.mxu0 0.0
        %5452 = vmatpush1.msra.mxu0 0.0
        %5453 = vmatprep.subr.mxu0 0.0
        %5454 = vmatpush1.msra.mxu0 0.0
        %5455 = vmatprep.subr.mxu0 0.0
        %5456 = vmatpush1.msra.mxu0 0.0
        %5457 = vmatprep.subr.mxu0 0.0
        %5458 = vmatpush1.msra.mxu0 0.0
        %5459 = vmatprep.subr.mxu0 0.0
        %5460 = vmatpush1.msra.mxu0 0.0
        %5461 = vmatprep.subr.mxu0 0.0
        %5462 = vmatpush1.msra.mxu0 0.0
        %5463 = vmatprep.subr.mxu0 0.0
        %5464 = vmatpush1.msra.mxu0 0.0
        %5465 = vmatprep.subr.mxu0 0.0
        %5466 = vmatpush1.msra.mxu0 0.0
        %5467 = vmatprep.subr.mxu0 0.0
        %5468 = vmatpush1.msra.mxu0 0.0
        %5469 = vmatprep.subr.mxu0 0.0
        %5470 = vmatpush1.msra.mxu0 0.0
        %5471 = vmatprep.subr.mxu0 0.0
        %5472 = vmatpush1.msra.mxu0 0.0
        %5473 = vmatprep.subr.mxu0 0.0
        %5474 = vmatpush1.msra.mxu0 0.0
        %5475 = vmatprep.mubr.f32.mxu0 0.0
        %5476 = vmatmul.mubr.f32.gmra.mrb[0].mxu0 %v5399
        %v5477 = vpop.f32.mrb[0].mxu0
        %v5478 = vadd.f32 0.0, %v5477
        %v5479 = vpop.f32.mrb[0].mxu0
        %v5480 = vadd.f32 0.0, %v5479
        %5481 = vmatprep.mubr.f32.mxu0 0.0
        %5482 = vmatmul.mubr.f32.gmra.mrb[0].mxu0 %v5402
        %v5483 = vpop.f32.mrb[0].mxu0
        %v5484 = vadd.f32 0.0, %v5483
        %v5485 = vpop.f32.mrb[0].mxu0
        %v5486 = vadd.f32 0.0, %v5485
        %5487 = vmatprep.mubr.f32.mxu0 0.0
        %5488 = vmatmul.mubr.f32.gmra.mrb[0].mxu0 %v5405
        %v5489 = vpop.f32.mrb[0].mxu0
        %v5490 = vadd.f32 0.0, %v5489
        %v5491 = vpop.f32.mrb[0].mxu0
        %v5492 = vadd.f32 0.0, %v5491
        %5493 = vdwg.mxu0
        %v5494 = vadd.f32 %v5379, %v5478
        %v5495 = vadd.f32 %v5380, %v5480
        %v5496 = vadd.f32 %v5381, %v5484
        %v5497 = vadd.f32 %v5382, %v5486
        %v5498 = vadd.f32 %v5383, %v5490
        %v5499 = vadd.f32 %v5384, %v5492
        %s5500 = scalar_lea.vmem %s2, 1104
        %v5501 = vld [vmem:[%s5500] sm:$0xff]
        %v5502 = vld [vmem:[%s5500 + $0x8] sm:$0xff]
        %v5503 = vld [vmem:[%s5500 + $0x10] sm:$0xff]
        %5504 = vrot.lane.b32.xlu0 %v287, 120
        %v5505 = vpop.permute.xlu0 %5504
        %5506 = vrot.lane.b32.xlu0 %v285, 120
        %v5507 = vpop.permute.xlu0 %5506
        %5508 = vrot.lane.b32.xlu0 %v289, 120
        %v5509 = vpop.permute.xlu0 %5508
        %vm5510 = vcmask 982016
        %v5511 = vsel %vm5510, %v5505, %v5507
        %v5512 = vsel %vm5510, %v5507, %v5509
        %v5514 = vsel %vm306, %v5501, 0
        %v5517 = vsel %vm306, %v5502, 0
        %v5520 = vsel %vm306, %v5503, 0
        %v5522 = vsel %vm316, %v5511, 0
        %v5524 = vsel %vm316, %v5512, 0
        %5526 = vmatprep.subr.mxu0 %v5524
        %5527 = vmatpush1.msra.mxu0 %v5522
        %5528 = vmatprep.subr.mxu0 0.0
        %5529 = vmatpush1.msra.mxu0 0.0
        %5530 = vmatprep.subr.mxu0 0.0
        %5531 = vmatpush1.msra.mxu0 0.0
        %5532 = vmatprep.subr.mxu0 0.0
        %5533 = vmatpush1.msra.mxu0 0.0
        %5534 = vmatprep.subr.mxu0 0.0
        %5535 = vmatpush1.msra.mxu0 0.0
        %5536 = vmatprep.subr.mxu0 0.0
        %5537 = vmatpush1.msra.mxu0 0.0
        %5538 = vmatprep.subr.mxu0 0.0
        %5539 = vmatpush1.msra.mxu0 0.0
        %5540 = vmatprep.subr.mxu0 0.0
        %5541 = vmatpush1.msra.mxu0 0.0
        %5542 = vmatprep.subr.mxu0 0.0
        %5543 = vmatpush1.msra.mxu0 0.0
        %5544 = vmatprep.subr.mxu0 0.0
        %5545 = vmatpush1.msra.mxu0 0.0
        %5546 = vmatprep.subr.mxu0 0.0
        %5547 = vmatpush1.msra.mxu0 0.0
        %5548 = vmatprep.subr.mxu0 0.0
        %5549 = vmatpush1.msra.mxu0 0.0
        %5550 = vmatprep.subr.mxu0 0.0
        %5551 = vmatpush1.msra.mxu0 0.0
        %5552 = vmatprep.subr.mxu0 0.0
        %5553 = vmatpush1.msra.mxu0 0.0
        %5554 = vmatprep.subr.mxu0 0.0
        %5555 = vmatpush1.msra.mxu0 0.0
        %5556 = vmatprep.subr.mxu0 0.0
        %5557 = vmatpush1.msra.mxu0 0.0
        %5558 = vmatprep.subr.mxu0 0.0
        %5559 = vmatpush1.msra.mxu0 0.0
        %5560 = vmatprep.subr.mxu0 0.0
        %5561 = vmatpush1.msra.mxu0 0.0
        %5562 = vmatprep.subr.mxu0 0.0
        %5563 = vmatpush1.msra.mxu0 0.0
        %5564 = vmatprep.subr.mxu0 0.0
        %5565 = vmatpush1.msra.mxu0 0.0
        %5566 = vmatprep.subr.mxu0 0.0
        %5567 = vmatpush1.msra.mxu0 0.0
        %5568 = vmatprep.subr.mxu0 0.0
        %5569 = vmatpush1.msra.mxu0 0.0
        %5570 = vmatprep.subr.mxu0 0.0
        %5571 = vmatpush1.msra.mxu0 0.0
        %5572 = vmatprep.subr.mxu0 0.0
        %5573 = vmatpush1.msra.mxu0 0.0
        %5574 = vmatprep.subr.mxu0 0.0
        %5575 = vmatpush1.msra.mxu0 0.0
        %5576 = vmatprep.subr.mxu0 0.0
        %5577 = vmatpush1.msra.mxu0 0.0
        %5578 = vmatprep.subr.mxu0 0.0
        %5579 = vmatpush1.msra.mxu0 0.0
        %5580 = vmatprep.subr.mxu0 0.0
        %5581 = vmatpush1.msra.mxu0 0.0
        %5582 = vmatprep.subr.mxu0 0.0
        %5583 = vmatpush1.msra.mxu0 0.0
        %5584 = vmatprep.subr.mxu0 0.0
        %5585 = vmatpush1.msra.mxu0 0.0
        %5586 = vmatprep.subr.mxu0 0.0
        %5587 = vmatpush1.msra.mxu0 0.0
        %5588 = vmatprep.subr.mxu0 0.0
        %5589 = vmatpush1.msra.mxu0 0.0
        %5590 = vmatprep.mubr.f32.mxu0 0.0
        %5591 = vmatmul.mubr.f32.gmra.mrb[0].mxu0 %v5514
        %v5592 = vpop.f32.mrb[0].mxu0
        %v5593 = vadd.f32 0.0, %v5592
        %v5594 = vpop.f32.mrb[0].mxu0
        %v5595 = vadd.f32 0.0, %v5594
        %5596 = vmatprep.mubr.f32.mxu0 0.0
        %5597 = vmatmul.mubr.f32.gmra.mrb[0].mxu0 %v5517
        %v5598 = vpop.f32.mrb[0].mxu0
        %v5599 = vadd.f32 0.0, %v5598
        %v5600 = vpop.f32.mrb[0].mxu0
        %v5601 = vadd.f32 0.0, %v5600
        %5602 = vmatprep.mubr.f32.mxu0 0.0
        %5603 = vmatmul.mubr.f32.gmra.mrb[0].mxu0 %v5520
        %v5604 = vpop.f32.mrb[0].mxu0
        %v5605 = vadd.f32 0.0, %v5604
        %v5606 = vpop.f32.mrb[0].mxu0
        %v5607 = vadd.f32 0.0, %v5606
        %5608 = vdwg.mxu0
        %v5609 = vadd.f32 %v5494, %v5593
        %v5610 = vadd.f32 %v5495, %v5595
        %v5611 = vadd.f32 %v5496, %v5599
        %v5612 = vadd.f32 %v5497, %v5601
        %v5613 = vadd.f32 %v5498, %v5605
        %v5614 = vadd.f32 %v5499, %v5607
        %s5615 = scalar_lea.vmem %s2, 1128
        %v5616 = vld [vmem:[%s5615] sm:$0xff]
        %v5617 = vld [vmem:[%s5615 + $0x8] sm:$0xff]
        %v5618 = vld [vmem:[%s5615 + $0x10] sm:$0xff]
        %5619 = vrot.lane.b32.xlu0 %v287, 119
        %v5620 = vpop.permute.xlu0 %5619
        %5621 = vrot.lane.b32.xlu0 %v285, 119
        %v5622 = vpop.permute.xlu0 %5621
        %5623 = vrot.lane.b32.xlu0 %v289, 119
        %v5624 = vpop.permute.xlu0 %5623
        %vm5625 = vcmask 973824
        %v5626 = vsel %vm5625, %v5620, %v5622
        %v5627 = vsel %vm5625, %v5622, %v5624
        %v5629 = vsel %vm306, %v5616, 0
        %v5632 = vsel %vm306, %v5617, 0
        %v5635 = vsel %vm306, %v5618, 0
        %v5637 = vsel %vm316, %v5626, 0
        %v5639 = vsel %vm316, %v5627, 0
        %5641 = vmatprep.subr.mxu0 %v5639
        %5642 = vmatpush1.msra.mxu0 %v5637
        %5643 = vmatprep.subr.mxu0 0.0
        %5644 = vmatpush1.msra.mxu0 0.0
        %5645 = vmatprep.subr.mxu0 0.0
        %5646 = vmatpush1.msra.mxu0 0.0
        %5647 = vmatprep.subr.mxu0 0.0
        %5648 = vmatpush1.msra.mxu0 0.0
        %5649 = vmatprep.subr.mxu0 0.0
        %5650 = vmatpush1.msra.mxu0 0.0
        %5651 = vmatprep.subr.mxu0 0.0
        %5652 = vmatpush1.msra.mxu0 0.0
        %5653 = vmatprep.subr.mxu0 0.0
        %5654 = vmatpush1.msra.mxu0 0.0
        %5655 = vmatprep.subr.mxu0 0.0
        %5656 = vmatpush1.msra.mxu0 0.0
        %5657 = vmatprep.subr.mxu0 0.0
        %5658 = vmatpush1.msra.mxu0 0.0
        %5659 = vmatprep.subr.mxu0 0.0
        %5660 = vmatpush1.msra.mxu0 0.0
        %5661 = vmatprep.subr.mxu0 0.0
        %5662 = vmatpush1.msra.mxu0 0.0
        %5663 = vmatprep.subr.mxu0 0.0
        %5664 = vmatpush1.msra.mxu0 0.0
        %5665 = vmatprep.subr.mxu0 0.0
        %5666 = vmatpush1.msra.mxu0 0.0
        %5667 = vmatprep.subr.mxu0 0.0
        %5668 = vmatpush1.msra.mxu0 0.0
        %5669 = vmatprep.subr.mxu0 0.0
        %5670 = vmatpush1.msra.mxu0 0.0
        %5671 = vmatprep.subr.mxu0 0.0
        %5672 = vmatpush1.msra.mxu0 0.0
        %5673 = vmatprep.subr.mxu0 0.0
        %5674 = vmatpush1.msra.mxu0 0.0
        %5675 = vmatprep.subr.mxu0 0.0
        %5676 = vmatpush1.msra.mxu0 0.0
        %5677 = vmatprep.subr.mxu0 0.0
        %5678 = vmatpush1.msra.mxu0 0.0
        %5679 = vmatprep.subr.mxu0 0.0
        %5680 = vmatpush1.msra.mxu0 0.0
        %5681 = vmatprep.subr.mxu0 0.0
        %5682 = vmatpush1.msra.mxu0 0.0
        %5683 = vmatprep.subr.mxu0 0.0
        %5684 = vmatpush1.msra.mxu0 0.0
        %5685 = vmatprep.subr.mxu0 0.0
        %5686 = vmatpush1.msra.mxu0 0.0
        %5687 = vmatprep.subr.mxu0 0.0
        %5688 = vmatpush1.msra.mxu0 0.0
        %5689 = vmatprep.subr.mxu0 0.0
        %5690 = vmatpush1.msra.mxu0 0.0
        %5691 = vmatprep.subr.mxu0 0.0
        %5692 = vmatpush1.msra.mxu0 0.0
        %5693 = vmatprep.subr.mxu0 0.0
        %5694 = vmatpush1.msra.mxu0 0.0
        %5695 = vmatprep.subr.mxu0 0.0
        %5696 = vmatpush1.msra.mxu0 0.0
        %5697 = vmatprep.subr.mxu0 0.0
        %5698 = vmatpush1.msra.mxu0 0.0
        %5699 = vmatprep.subr.mxu0 0.0
        %5700 = vmatpush1.msra.mxu0 0.0
        %5701 = vmatprep.subr.mxu0 0.0
        %5702 = vmatpush1.msra.mxu0 0.0
        %5703 = vmatprep.subr.mxu0 0.0
        %5704 = vmatpush1.msra.mxu0 0.0
        %5705 = vmatprep.mubr.f32.mxu0 0.0
        %5706 = vmatmul.mubr.f32.gmra.mrb[0].mxu0 %v5629
        %v5707 = vpop.f32.mrb[0].mxu0
        %v5708 = vadd.f32 0.0, %v5707
        %v5709 = vpop.f32.mrb[0].mxu0
        %v5710 = vadd.f32 0.0, %v5709
        %5711 = vmatprep.mubr.f32.mxu0 0.0
        %5712 = vmatmul.mubr.f32.gmra.mrb[0].mxu0 %v5632
        %v5713 = vpop.f32.mrb[0].mxu0
        %v5714 = vadd.f32 0.0, %v5713
        %v5715 = vpop.f32.mrb[0].mxu0
        %v5716 = vadd.f32 0.0, %v5715
        %5717 = vmatprep.mubr.f32.mxu0 0.0
        %5718 = vmatmul.mubr.f32.gmra.mrb[0].mxu0 %v5635
        %v5719 = vpop.f32.mrb[0].mxu0
        %v5720 = vadd.f32 0.0, %v5719
        %v5721 = vpop.f32.mrb[0].mxu0
        %v5722 = vadd.f32 0.0, %v5721
        %5723 = vdwg.mxu0
        %v5724 = vadd.f32 %v5609, %v5708
        %v5725 = vadd.f32 %v5610, %v5710
        %v5726 = vadd.f32 %v5611, %v5714
        %v5727 = vadd.f32 %v5612, %v5716
        %v5728 = vadd.f32 %v5613, %v5720
        %v5729 = vadd.f32 %v5614, %v5722
        %s5730 = scalar_lea.vmem %s2, 1152
        %v5731 = vld [vmem:[%s5730] sm:$0xff]
        %v5732 = vld [vmem:[%s5730 + $0x8] sm:$0xff]
        %v5733 = vld [vmem:[%s5730 + $0x10] sm:$0xff]
        %5734 = vrot.lane.b32.xlu0 %v287, 118
        %v5735 = vpop.permute.xlu0 %5734
        %5736 = vrot.lane.b32.xlu0 %v285, 118
        %v5737 = vpop.permute.xlu0 %5736
        %5738 = vrot.lane.b32.xlu0 %v289, 118
        %v5739 = vpop.permute.xlu0 %5738
        %vm5740 = vcmask 965632
        %v5741 = vsel %vm5740, %v5735, %v5737
        %v5742 = vsel %vm5740, %v5737, %v5739
        %v5744 = vsel %vm306, %v5731, 0
        %v5747 = vsel %vm306, %v5732, 0
        %v5750 = vsel %vm306, %v5733, 0
        %v5752 = vsel %vm316, %v5741, 0
        %v5754 = vsel %vm316, %v5742, 0
        %5756 = vmatprep.subr.mxu0 %v5754
        %5757 = vmatpush1.msra.mxu0 %v5752
        %5758 = vmatprep.subr.mxu0 0.0
        %5759 = vmatpush1.msra.mxu0 0.0
        %5760 = vmatprep.subr.mxu0 0.0
        %5761 = vmatpush1.msra.mxu0 0.0
        %5762 = vmatprep.subr.mxu0 0.0
        %5763 = vmatpush1.msra.mxu0 0.0
        %5764 = vmatprep.subr.mxu0 0.0
        %5765 = vmatpush1.msra.mxu0 0.0
        %5766 = vmatprep.subr.mxu0 0.0
        %5767 = vmatpush1.msra.mxu0 0.0
        %5768 = vmatprep.subr.mxu0 0.0
        %5769 = vmatpush1.msra.mxu0 0.0
        %5770 = vmatprep.subr.mxu0 0.0
        %5771 = vmatpush1.msra.mxu0 0.0
        %5772 = vmatprep.subr.mxu0 0.0
        %5773 = vmatpush1.msra.mxu0 0.0
        %5774 = vmatprep.subr.mxu0 0.0
        %5775 = vmatpush1.msra.mxu0 0.0
        %5776 = vmatprep.subr.mxu0 0.0
        %5777 = vmatpush1.msra.mxu0 0.0
        %5778 = vmatprep.subr.mxu0 0.0
        %5779 = vmatpush1.msra.mxu0 0.0
        %5780 = vmatprep.subr.mxu0 0.0
        %5781 = vmatpush1.msra.mxu0 0.0
        %5782 = vmatprep.subr.mxu0 0.0
        %5783 = vmatpush1.msra.mxu0 0.0
        %5784 = vmatprep.subr.mxu0 0.0
        %5785 = vmatpush1.msra.mxu0 0.0
        %5786 = vmatprep.subr.mxu0 0.0
        %5787 = vmatpush1.msra.mxu0 0.0
        %5788 = vmatprep.subr.mxu0 0.0
        %5789 = vmatpush1.msra.mxu0 0.0
        %5790 = vmatprep.subr.mxu0 0.0
        %5791 = vmatpush1.msra.mxu0 0.0
        %5792 = vmatprep.subr.mxu0 0.0
        %5793 = vmatpush1.msra.mxu0 0.0
        %5794 = vmatprep.subr.mxu0 0.0
        %5795 = vmatpush1.msra.mxu0 0.0
        %5796 = vmatprep.subr.mxu0 0.0
        %5797 = vmatpush1.msra.mxu0 0.0
        %5798 = vmatprep.subr.mxu0 0.0
        %5799 = vmatpush1.msra.mxu0 0.0
        %5800 = vmatprep.subr.mxu0 0.0
        %5801 = vmatpush1.msra.mxu0 0.0
        %5802 = vmatprep.subr.mxu0 0.0
        %5803 = vmatpush1.msra.mxu0 0.0
        %5804 = vmatprep.subr.mxu0 0.0
        %5805 = vmatpush1.msra.mxu0 0.0
        %5806 = vmatprep.subr.mxu0 0.0
        %5807 = vmatpush1.msra.mxu0 0.0
        %5808 = vmatprep.subr.mxu0 0.0
        %5809 = vmatpush1.msra.mxu0 0.0
        %5810 = vmatprep.subr.mxu0 0.0
        %5811 = vmatpush1.msra.mxu0 0.0
        %5812 = vmatprep.subr.mxu0 0.0
        %5813 = vmatpush1.msra.mxu0 0.0
        %5814 = vmatprep.subr.mxu0 0.0
        %5815 = vmatpush1.msra.mxu0 0.0
        %5816 = vmatprep.subr.mxu0 0.0
        %5817 = vmatpush1.msra.mxu0 0.0
        %5818 = vmatprep.subr.mxu0 0.0
        %5819 = vmatpush1.msra.mxu0 0.0
        %5820 = vmatprep.mubr.f32.mxu0 0.0
        %5821 = vmatmul.mubr.f32.gmra.mrb[0].mxu0 %v5744
        %v5822 = vpop.f32.mrb[0].mxu0
        %v5823 = vadd.f32 0.0, %v5822
        %v5824 = vpop.f32.mrb[0].mxu0
        %v5825 = vadd.f32 0.0, %v5824
        %5826 = vmatprep.mubr.f32.mxu0 0.0
        %5827 = vmatmul.mubr.f32.gmra.mrb[0].mxu0 %v5747
        %v5828 = vpop.f32.mrb[0].mxu0
        %v5829 = vadd.f32 0.0, %v5828
        %v5830 = vpop.f32.mrb[0].mxu0
        %v5831 = vadd.f32 0.0, %v5830
        %5832 = vmatprep.mubr.f32.mxu0 0.0
        %5833 = vmatmul.mubr.f32.gmra.mrb[0].mxu0 %v5750
        %v5834 = vpop.f32.mrb[0].mxu0
        %v5835 = vadd.f32 0.0, %v5834
        %v5836 = vpop.f32.mrb[0].mxu0
        %v5837 = vadd.f32 0.0, %v5836
        %5838 = vdwg.mxu0
        %v5839 = vadd.f32 %v5724, %v5823
        %v5840 = vadd.f32 %v5725, %v5825
        %v5841 = vadd.f32 %v5726, %v5829
        %v5842 = vadd.f32 %v5727, %v5831
        %v5843 = vadd.f32 %v5728, %v5835
        %v5844 = vadd.f32 %v5729, %v5837
        %v5845 = vadd.f32 %v5070, %v5839
        %v5846 = vadd.f32 %v5071, %v5840
        %v5847 = vadd.f32 %v5072, %v5841
        %v5848 = vadd.f32 %v5073, %v5842
        %v5849 = vadd.f32 %v5074, %v5843
        %v5850 = vadd.f32 %v5075, %v5844
        %s5851 = sld [smem:[#allocation2]]
        %v5852 = vmax.f32 %v5845, 0.0
        %v5853 = vmax.f32 %v5846, 0.0
        %v5854 = vstv %s5851
        %v5855 = vmul.f32 %v5854, %v5852
        %v5856 = vmul.f32 %v5854, %v5853
        %s5857 = sld [smem:[#allocation2 + $0x1]]
        %v5858 = vmax.f32 %v5847, 0.0
        %v5859 = vmax.f32 %v5848, 0.0
        %v5860 = vstv %s5857
        %v5861 = vmul.f32 %v5860, %v5858
        %v5862 = vmul.f32 %v5860, %v5859
        %v5863 = vadd.f32 %v5855, %v5861
        %v5864 = vadd.f32 %v5856, %v5862
        %s5865 = sld [smem:[#allocation2 + $0x2]]
        %v5866 = vmax.f32 %v5849, 0.0
        %v5867 = vmax.f32 %v5850, 0.0
        %v5868 = vstv %s5865
        %v5869 = vmul.f32 %v5868, %v5866
        %v5870 = vmul.f32 %v5868, %v5867
        %v5871 = vadd.f32 %v5863, %v5869
        %v5872 = vadd.f32 %v5864, %v5870
        %5873 = vst [vmem:[%s260] sm:$0xff] %v5871
        %5874 = vst [vmem:[%s260 + $0x8] sm:$0xff] %v5872
        %s5875 = sand.u32 %s141, 1
        %s5876 = scalar_lea.sflag [#allocation3], %s5875
        %s5877 = sand.u32 %s141, 1
        %s5878 = smul.addr %s5877, 16
        %s5879 = scalar_lea.vmem [#allocation5], %s5878
        // Predicated region
        $region41: #{tpu_custom_call.1} parent=35 // pred_check
          %p5880 = pneg %p151
        $region42: #{tpu_custom_call.1} parent=35 // pred_check_branch
          %5882 = sbr.rel (%p5880) target = $region44
        $region43: #{tpu_custom_call.1} parent=35 // pred_region
          %s5883 = smul.u32 2, %s24
          %s5885 = ssub.s32 256, 256
          %5886 = vsyncadd %s5876, %s5885
          %s5887 = smul.addr %s23, 4
          %s5888 = sadd.s32 %s5883, %s5887
          %s5889 = smul.addr %s5888, 128
          %s5890 = scalar_lea.hbm %s4, %s5889
          %s5892 = sshll.u32 %s5879, 4
          %s5893 = int_to_ptr.vmem [resolvable:$true] %s5892
          %5895 = dma.vmem_to_hbm [thread:$0]  %s5893, 256, %s5890, %s5876
        $region44: #{tpu_custom_call.1} parent=35 // pred_fallthru
          _
      $region36: #{tpu_custom_call.1} parent=5 // pred_fallthru
        _
      %p5896 = scmp.le.s32.totalorder 2, %s14
      // Predicated region
      $region45: #{tpu_custom_call.1} parent=5 // pred_check
        %p5897 = pneg %p5896
      $region46: #{tpu_custom_call.1} parent=5 // pred_check_branch
        %5899 = sbr.rel (%p5897) target = $region48
      $region47: #{tpu_custom_call.1} parent=5 // pred_region
        %s5900 = ssub.s32 %s14, 2
        // Predicated region
        $region49: #{tpu_custom_call.1} parent=47 // pred_check
          %p5901 = pneg %p157
        $region50: #{tpu_custom_call.1} parent=47 // pred_check_branch
          %5903 = sbr.rel (%p5901) target = $region52
        $region51: #{tpu_custom_call.1} parent=47 // pred_region
          %s5904 = sand.u32 %s142, 1
          %s5905 = scalar_lea.sflag [#allocation3], %s5904
          %s5906 = sand.u32 %s142, 1
          %s5907 = smul.addr %s5906, 16
          %s5908 = scalar_lea.vmem [#allocation5], %s5907
          %5909 = dma.done %s5905, 256
        $region52: #{tpu_custom_call.1} parent=47 // pred_fallthru
          _
      $region48: #{tpu_custom_call.1} parent=5 // pred_fallthru
        _
    $region6: #{tpu_custom_call.1} parent=1 // loop_footer
      %s18 = sadd.s32 1, %s14
    $region7: #{tpu_custom_call.1} parent=1 // loop_footer_branch
      %13 = sbr.rel target = $region3
    $region8: #{tpu_custom_call.1} parent=1 // loop_exit
      _
    %5910 = vsyncpa [#allocation3], 1
    %s5911 = scalar_lea.sflag [#allocation3], 1
    %5912 = vsyncpa %s5911, 1
    %5913 = vsyncpa [#allocation4], 1
    %s5914 = scalar_lea.sflag [#allocation4], 1
    %5915 = vsyncpa %s5914, 1

</llo_original>
